<compile_context>
chip_gen: v7x
topology: tpu7x:2x2x1
jax: 0.10.0
libtpu: 0.0.40
codegen_flags: <defaults>
</compile_context>

<pallas_src>
import functools

import numpy as np
import jax
import jax.numpy as jnp
from jax import lax
from jax.experimental import pallas as pl
from jax.experimental.pallas import tpu as pltpu

KSIZE = 4
BN_EPS = 1e-5
CPAD = 128          # channel padding (multiple of 128 -> lane-dense columns)


# ----------------------------------------------------------------------------
# Pallas kernels
# ----------------------------------------------------------------------------
def _gemm_bn_relu_kernel(a_ref, b_ref, bias_ref, gamma_ref, beta_ref, o_ref,
                         *, n_groups, cpad, eps):
    """out = ReLU(BatchNorm(A @ B + bias)), fully fused, training-mode stats.

    GEMM columns are laid out as `n_groups` blocks of `cpad` channels (the
    blocks are different output spatial positions of the SAME channels), so
    per-channel batch statistics are a row reduction followed by a reduction
    over the lane-aligned channel blocks.
    """
    acc = jnp.dot(a_ref[...], b_ref[...], preferred_element_type=jnp.float32)
    acc = acc + bias_ref[...]                           # (M, N) + (1, N)

    m_rows = acc.shape[0]
    inv_count = 1.0 / float(m_rows * n_groups)          # elements per channel

    s1 = jnp.sum(acc, axis=0, keepdims=True)            # (1, N)
    s2 = jnp.sum(acc * acc, axis=0, keepdims=True)      # (1, N)
    csum, csq = s1[:, 0:cpad], s2[:, 0:cpad]
    for g in range(1, n_groups):                        # 128-aligned slices
        csum = csum + s1[:, g * cpad:(g + 1) * cpad]
        csq = csq + s2[:, g * cpad:(g + 1) * cpad]

    mean = csum * inv_count                                   # (1, cpad)
    var = jnp.maximum(csq * inv_count - mean * mean, 0.0)     # biased (torch)
    inv = lax.rsqrt(var + eps)
    scale = gamma_ref[...] * inv                              # (1, cpad)
    shift = beta_ref[...] - mean * scale

    scale_f = jnp.concatenate([scale] * n_groups, axis=1)     # (1, N)
    shift_f = jnp.concatenate([shift] * n_groups, axis=1)
    o_ref[...] = jnp.maximum(acc * scale_f + shift_f, 0.0).astype(o_ref.dtype)


def _gemm_bias_tanh_kernel(a_ref, b_ref, bias_ref, o_ref):
    acc = jnp.dot(a_ref[...], b_ref[...], preferred_element_type=jnp.float32)
    o_ref[...] = jnp.tanh(acc + bias_ref[...]).astype(o_ref.dtype)


def gemm_bn_relu(a, b, bias, gamma, beta, *, n_groups, cpad, eps=BN_EPS):
    """A:(M,K) bf16 @ B:(K,N) bf16 + bias, fused BatchNorm + ReLU epilogue."""
    M, K = a.shape
    N = b.shape[1]
    return pl.pallas_call(
        functools.partial(_gemm_bn_relu_kernel, n_groups=n_groups, cpad=cpad,
                          eps=eps),
        out_shape=jax.ShapeDtypeStruct((M, N), jnp.float32),
        grid_spec=pltpu.PrefetchScalarGridSpec(
            num_scalar_prefetch=0,
            grid=(1,),                       # whole layer fits in VMEM at once
            in_specs=[
                pl.BlockSpec((M, K), lambda i: (0, 0)),
                pl.BlockSpec((K, N), lambda i: (0, 0)),
                pl.BlockSpec((1, N), lambda i: (0, 0)),
                pl.BlockSpec((1, cpad), lambda i: (0, 0)),
                pl.BlockSpec((1, cpad), lambda i: (0, 0)),
            ],
            out_specs=pl.BlockSpec((M, N), lambda i: (0, 0)),
        ),
        compiler_params=pltpu.CompilerParams(
            dimension_semantics=("arbitrary",)),
    )(a, b, bias, gamma, beta)


def gemm_bias_tanh(a, b, bias):
    """A @ B + bias with tanh epilogue; M-tiled 'parallel' grid (v7x 2 TCs)."""
    M, K = a.shape
    N = b.shape[1]
    tm = 256 if (M % 256 == 0) else M
    return pl.pallas_call(
        _gemm_bias_tanh_kernel,
        out_shape=jax.ShapeDtypeStruct((M, N), jnp.float32),
        grid_spec=pltpu.PrefetchScalarGridSpec(
            num_scalar_prefetch=0,
            grid=(M // tm,),
            in_specs=[
                pl.BlockSpec((tm, K), lambda i: (i, 0)),
                pl.BlockSpec((K, N), lambda i: (0, 0)),
                pl.BlockSpec((1, N), lambda i: (0, 0)),
            ],
            out_specs=pl.BlockSpec((tm, N), lambda i: (i, 0)),
        ),
        compiler_params=pltpu.CompilerParams(
            dimension_semantics=("parallel",)),
    )(a, b, bias)


# ----------------------------------------------------------------------------
# Plain-JAX glue: conv-transpose -> GEMM lowering (no zero-dilated im2col)
# ----------------------------------------------------------------------------
def _pad_channels(v, cpad):
    return jnp.pad(v, (0, cpad - v.shape[0]))


def head_weight_mat(W_t, bias, cpad):
    """ConvTranspose2d(k=4,s=1,p=0) on a 1x1 input is a pure GEMM.
    Weight (Cin,Cout,4,4) -> (Cin, 16*cpad); columns ordered (kh, kw, co)."""
    Cin, Cout, K, _ = W_t.shape
    Wm = jnp.transpose(W_t, (0, 2, 3, 1))                  # (Cin, K, K, Cout)
    Wm = jnp.pad(Wm, ((0, 0), (0, 0), (0, 0), (0, cpad - Cout)))
    Wm = Wm.reshape(Cin, K * K * cpad)
    bias_full = jnp.tile(_pad_channels(bias, cpad), K * K).reshape(1, K * K * cpad)
    return Wm, bias_full


# For stride=2, pad=1, k=4 the output phases (oh,ow)=(2m+a, 2n+b) each read a
# 2x2 subset of the 3x3 input neighbourhood around (m, n):
#   tap row t (ih = m-1+t) uses kernel row kh = 3 - 2*t + a  (if 0 <= kh < 4)
_PHASE_KMAP = ((3, 1, -1), (-1, 2, 0))       # [a][t] -> kh  (-1 = unused tap)


def phase_weight_mat(W_t, bias, cpad):
    """Weight (Cin,Cout,4,4) -> (9*Cin, 4*cpad); columns ordered (a, b, co)."""
    Cin, Cout, K, _ = W_t.shape
    Wm = jnp.zeros((3, 3, Cin, 2, 2, cpad), W_t.dtype)
    for a in range(2):
        for th in range(3):
            kh = _PHASE_KMAP[a][th]
            if kh < 0:
                continue
            for b in range(2):
                for tw in range(3):
                    kw = _PHASE_KMAP[b][tw]
                    if kw < 0:
                        continue
                    Wm = Wm.at[th, tw, :, a, b, :Cout].set(W_t[:, :, kh, kw])
    Wm = Wm.reshape(9 * Cin, 4 * cpad)
    bias_full = jnp.tile(_pad_channels(bias, cpad), 4).reshape(1, 4 * cpad)
    return Wm, bias_full


def phase_patches(x_nhwc):
    """(B,H,W,C) -> (B*H*W, 9*C): 3x3 neighbourhood taps (zero pad 1)."""
    B, H, W, C = x_nhwc.shape
    xp = jnp.pad(x_nhwc, ((0, 0), (1, 1), (1, 1), (0, 0)))
    taps = [xp[:, th:th + H, tw:tw + W, :] for th in range(3) for tw in range(3)]
    p = jnp.stack(taps, axis=3)                            # (B, H, W, 9, C)
    return p.reshape(B * H * W, 9 * C)


# ----------------------------------------------------------------------------
# Conv_G: parameter init + forward
# ----------------------------------------------------------------------------
def init_conv_g_params(key, dim, output_nc=3, ndf=64, n_layers=2):
    cfgs = [(dim, ndf, 1, 0, True)]                        # (cin,cout,s,p,bn)
    cur = ndf
    for _ in range(n_layers):
        cfgs.append((cur, cur >> 1, 2, 1, True))
        cur >>= 1
    cfgs.append((cur, output_nc, 2, 1, False))

    params = []
    for (cin, cout, s, p, has_bn) in cfgs:
        key, kw, kb = jax.random.split(key, 3)
        bound = 1.0 / float(np.sqrt(cin * KSIZE * KSIZE))
        W = jax.random.uniform(kw, (cin, cout, KSIZE, KSIZE), jnp.float32,
                               -bound, bound)
        b = jax.random.uniform(kb, (cout,), jnp.float32, -bound, bound)
        gamma = jnp.ones((cout,), jnp.float32) if has_bn else None
        beta = jnp.zeros((cout,), jnp.float32) if has_bn else None
        params.append(dict(W=W, b=b, gamma=gamma, beta=beta,
                           stride=s, pad=p, has_bn=has_bn))
    return params


def conv_g_forward(x_nchw, params):
    x = jnp.transpose(x_nchw, (0, 2, 3, 1))                # NCHW -> NHWC
    n = len(params)
    for i, lp in enumerate(params):
        last = (i == n - 1)
        B, H, W, _ = x.shape
        Cout = lp["W"].shape[1]

        if lp["stride"] == 1:
            # DCGAN head: 1x1 latent, k=4, s=1, p=0 -> single GEMM, no overlap.
            # TODO(synk): general stride-1 transposed conv with H,W > 1 is not
            # needed for DCGAN latents and is not implemented.
            assert H == 1 and W == 1 and lp["pad"] == 0
            a = x.reshape(B, -1)
            Wm, bias_full = head_weight_mat(lp["W"], lp["b"], CPAD)
            n_groups = KSIZE * KSIZE                       # 16 spatial outputs
        else:
            a = phase_patches(x)                           # (B*H*W, 9*Cin)
            Wm, bias_full = phase_weight_mat(lp["W"], lp["b"], CPAD)
            n_groups = 4                                   # 4 output phases

        a = a.astype(jnp.bfloat16)
        Wm = Wm.astype(jnp.bfloat16)

        if last:
            y = gemm_bias_tanh(a, Wm, bias_full)
        else:
            gamma = _pad_channels(lp["gamma"], CPAD).reshape(1, CPAD)
            beta = _pad_channels(lp["beta"], CPAD).reshape(1, CPAD)
            y = gemm_bn_relu(a, Wm, bias_full, gamma, beta,
                             n_groups=n_groups, cpad=CPAD)

        if lp["stride"] == 1:
            x = y.reshape(B, KSIZE, KSIZE, CPAD)[..., :Cout]
        else:
            x = (y.reshape(B, H, W, 2, 2, CPAD)
                  .transpose(0, 1, 3, 2, 4, 5)
                  .reshape(B, 2 * H, 2 * W, CPAD)[..., :Cout])
    return jnp.transpose(x, (0, 3, 1, 2))                  # NHWC -> NCHW


# ----------------------------------------------------------------------------
if __name__ == "__main__":
    key = jax.random.PRNGKey(0)
    k_params, k_input = jax.random.split(key)

    # Small, consistent shapes: latent dim=32, ndf=64, n_layers=2, output_nc=3.
    DIM, NDF, NLAYERS, OUT_NC, BATCH = 32, 64, 2, 3, 2
    params = init_conv_g_params(k_params, DIM, OUT_NC, NDF, NLAYERS)

    # DCGAN generator input: (B, dim, 1, 1) latent codes (NCHW).
    x = jax.random.normal(k_input, (BATCH, DIM, 1, 1), dtype=jnp.float32)

    fwd = jax.jit(lambda inp: conv_g_forward(inp, params))
    out = jax.block_until_ready(fwd(x))

    expected_spatial = 4 * (2 ** (NLAYERS + 1))            # 4 -> 8 -> 16 -> 32
    assert out.shape == (BATCH, OUT_NC, expected_spatial, expected_spatial), out.shape
    assert bool(jnp.all(jnp.isfinite(out)))
    assert bool(jnp.all(jnp.abs(out) <= 1.0 + 1e-6))       # tanh range
    print("KERNEL_OK")
</pallas_src>

<mosaic_0001>
module attributes {stable_mosaic.version = 11 : i64} {
  func.func @_gemm_bn_relu_kernel(%arg0: i32, %arg1: memref<2x32xbf16, #tpu.memory_space<vmem>>, %arg2: memref<32x2048xbf16, #tpu.memory_space<vmem>>, %arg3: memref<1x2048xf32, #tpu.memory_space<vmem>>, %arg4: memref<1x128xf32, #tpu.memory_space<vmem>>, %arg5: memref<1x128xf32, #tpu.memory_space<vmem>>, %arg6: memref<2x2048xf32, #tpu.memory_space<vmem>>) attributes {dimension_semantics = [#tpu.dimension_semantics<arbitrary>], iteration_bounds = array<i64: 1>, scalar_prefetch = 0 : i64, scratch_operands = 0 : i64, tpu.core_type = #tpu.core_type<tc>, window_params = [{pipeline_mode = #tpu.pipeline_mode<synchronous>, transform_indices = @transform_0, window_bounds = array<i64: 2, 32>}, {pipeline_mode = #tpu.pipeline_mode<synchronous>, transform_indices = @transform_1, window_bounds = array<i64: 32, 2048>}, {pipeline_mode = #tpu.pipeline_mode<synchronous>, transform_indices = @transform_2, window_bounds = array<i64: 1, 2048>}, {pipeline_mode = #tpu.pipeline_mode<synchronous>, transform_indices = @transform_3, window_bounds = array<i64: 1, 128>}, {pipeline_mode = #tpu.pipeline_mode<synchronous>, transform_indices = @transform_4, window_bounds = array<i64: 1, 128>}, {pipeline_mode = #tpu.pipeline_mode<synchronous>, transform_indices = @transform_5, window_bounds = array<i64: 2, 2048>}]} {
    %c0 = arith.constant 0 : index
    %c0_0 = arith.constant 0 : index
    %0 = vector.load %arg1[%c0, %c0_0] : memref<2x32xbf16, #tpu.memory_space<vmem>>, vector<2x32xbf16>
    %c0_1 = arith.constant 0 : index
    %c0_2 = arith.constant 0 : index
    %1 = vector.load %arg2[%c0_1, %c0_2] : memref<32x2048xbf16, #tpu.memory_space<vmem>>, vector<32x2048xbf16>
    %cst = arith.constant dense<0.000000e+00> : vector<2x2048xf32>
    %2 = tpu.matmul %0, %1, %cst {dimension_numbers = #tpu.dot_dimension_numbers<[1], [0], [0], [1], [0, 0, 1, 1], [], []>} : vector<2x32xbf16>, vector<32x2048xbf16>, vector<2x2048xf32> -> vector<2x2048xf32>
    %c0_3 = arith.constant 0 : index
    %c0_4 = arith.constant 0 : index
    %3 = vector.load %arg3[%c0_3, %c0_4] : memref<1x2048xf32, #tpu.memory_space<vmem>>, vector<1x2048xf32>
    %4 = vector.broadcast %3 : vector<1x2048xf32> to vector<2x2048xf32>
    %5 = arith.addf %2, %4 : vector<2x2048xf32>
    %cst_5 = arith.constant dense<0.000000e+00> : vector<2048xf32>
    %6 = vector.multi_reduction <add>, %5, %cst_5 [0] : vector<2x2048xf32> to vector<2048xf32>
    %7 = vector.shape_cast %6 : vector<2048xf32> to vector<1x2048xf32>
    %8 = arith.mulf %5, %5 : vector<2x2048xf32>
    %cst_6 = arith.constant dense<0.000000e+00> : vector<2048xf32>
    %9 = vector.multi_reduction <add>, %8, %cst_6 [0] : vector<2x2048xf32> to vector<2048xf32>
    %10 = vector.shape_cast %9 : vector<2048xf32> to vector<1x2048xf32>
    %11 = vector.extract_strided_slice %7 {offsets = [0, 0], sizes = [1, 128], strides = [1, 1]} : vector<1x2048xf32> to vector<1x128xf32>
    %12 = vector.extract_strided_slice %10 {offsets = [0, 0], sizes = [1, 128], strides = [1, 1]} : vector<1x2048xf32> to vector<1x128xf32>
    %13 = vector.extract_strided_slice %7 {offsets = [0, 128], sizes = [1, 128], strides = [1, 1]} : vector<1x2048xf32> to vector<1x128xf32>
    %14 = arith.addf %11, %13 : vector<1x128xf32>
    %15 = vector.extract_strided_slice %10 {offsets = [0, 128], sizes = [1, 128], strides = [1, 1]} : vector<1x2048xf32> to vector<1x128xf32>
    %16 = arith.addf %12, %15 : vector<1x128xf32>
    %17 = vector.extract_strided_slice %7 {offsets = [0, 256], sizes = [1, 128], strides = [1, 1]} : vector<1x2048xf32> to vector<1x128xf32>
    %18 = arith.addf %14, %17 : vector<1x128xf32>
    %19 = vector.extract_strided_slice %10 {offsets = [0, 256], sizes = [1, 128], strides = [1, 1]} : vector<1x2048xf32> to vector<1x128xf32>
    %20 = arith.addf %16, %19 : vector<1x128xf32>
    %21 = vector.extract_strided_slice %7 {offsets = [0, 384], sizes = [1, 128], strides = [1, 1]} : vector<1x2048xf32> to vector<1x128xf32>
    %22 = arith.addf %18, %21 : vector<1x128xf32>
    %23 = vector.extract_strided_slice %10 {offsets = [0, 384], sizes = [1, 128], strides = [1, 1]} : vector<1x2048xf32> to vector<1x128xf32>
    %24 = arith.addf %20, %23 : vector<1x128xf32>
    %25 = vector.extract_strided_slice %7 {offsets = [0, 512], sizes = [1, 128], strides = [1, 1]} : vector<1x2048xf32> to vector<1x128xf32>
    %26 = arith.addf %22, %25 : vector<1x128xf32>
    %27 = vector.extract_strided_slice %10 {offsets = [0, 512], sizes = [1, 128], strides = [1, 1]} : vector<1x2048xf32> to vector<1x128xf32>
    %28 = arith.addf %24, %27 : vector<1x128xf32>
    %29 = vector.extract_strided_slice %7 {offsets = [0, 640], sizes = [1, 128], strides = [1, 1]} : vector<1x2048xf32> to vector<1x128xf32>
    %30 = arith.addf %26, %29 : vector<1x128xf32>
    %31 = vector.extract_strided_slice %10 {offsets = [0, 640], sizes = [1, 128], strides = [1, 1]} : vector<1x2048xf32> to vector<1x128xf32>
    %32 = arith.addf %28, %31 : vector<1x128xf32>
    %33 = vector.extract_strided_slice %7 {offsets = [0, 768], sizes = [1, 128], strides = [1, 1]} : vector<1x2048xf32> to vector<1x128xf32>
    %34 = arith.addf %30, %33 : vector<1x128xf32>
    %35 = vector.extract_strided_slice %10 {offsets = [0, 768], sizes = [1, 128], strides = [1, 1]} : vector<1x2048xf32> to vector<1x128xf32>
    %36 = arith.addf %32, %35 : vector<1x128xf32>
    %37 = vector.extract_strided_slice %7 {offsets = [0, 896], sizes = [1, 128], strides = [1, 1]} : vector<1x2048xf32> to vector<1x128xf32>
    %38 = arith.addf %34, %37 : vector<1x128xf32>
    %39 = vector.extract_strided_slice %10 {offsets = [0, 896], sizes = [1, 128], strides = [1, 1]} : vector<1x2048xf32> to vector<1x128xf32>
    %40 = arith.addf %36, %39 : vector<1x128xf32>
    %41 = vector.extract_strided_slice %7 {offsets = [0, 1024], sizes = [1, 128], strides = [1, 1]} : vector<1x2048xf32> to vector<1x128xf32>
    %42 = arith.addf %38, %41 : vector<1x128xf32>
    %43 = vector.extract_strided_slice %10 {offsets = [0, 1024], sizes = [1, 128], strides = [1, 1]} : vector<1x2048xf32> to vector<1x128xf32>
    %44 = arith.addf %40, %43 : vector<1x128xf32>
    %45 = vector.extract_strided_slice %7 {offsets = [0, 1152], sizes = [1, 128], strides = [1, 1]} : vector<1x2048xf32> to vector<1x128xf32>
    %46 = arith.addf %42, %45 : vector<1x128xf32>
    %47 = vector.extract_strided_slice %10 {offsets = [0, 1152], sizes = [1, 128], strides = [1, 1]} : vector<1x2048xf32> to vector<1x128xf32>
    %48 = arith.addf %44, %47 : vector<1x128xf32>
    %49 = vector.extract_strided_slice %7 {offsets = [0, 1280], sizes = [1, 128], strides = [1, 1]} : vector<1x2048xf32> to vector<1x128xf32>
    %50 = arith.addf %46, %49 : vector<1x128xf32>
    %51 = vector.extract_strided_slice %10 {offsets = [0, 1280], sizes = [1, 128], strides = [1, 1]} : vector<1x2048xf32> to vector<1x128xf32>
    %52 = arith.addf %48, %51 : vector<1x128xf32>
    %53 = vector.extract_strided_slice %7 {offsets = [0, 1408], sizes = [1, 128], strides = [1, 1]} : vector<1x2048xf32> to vector<1x128xf32>
    %54 = arith.addf %50, %53 : vector<1x128xf32>
    %55 = vector.extract_strided_slice %10 {offsets = [0, 1408], sizes = [1, 128], strides = [1, 1]} : vector<1x2048xf32> to vector<1x128xf32>
    %56 = arith.addf %52, %55 : vector<1x128xf32>
    %57 = vector.extract_strided_slice %7 {offsets = [0, 1536], sizes = [1, 128], strides = [1, 1]} : vector<1x2048xf32> to vector<1x128xf32>
    %58 = arith.addf %54, %57 : vector<1x128xf32>
    %59 = vector.extract_strided_slice %10 {offsets = [0, 1536], sizes = [1, 128], strides = [1, 1]} : vector<1x2048xf32> to vector<1x128xf32>
    %60 = arith.addf %56, %59 : vector<1x128xf32>
    %61 = vector.extract_strided_slice %7 {offsets = [0, 1664], sizes = [1, 128], strides = [1, 1]} : vector<1x2048xf32> to vector<1x128xf32>
    %62 = arith.addf %58, %61 : vector<1x128xf32>
    %63 = vector.extract_strided_slice %10 {offsets = [0, 1664], sizes = [1, 128], strides = [1, 1]} : vector<1x2048xf32> to vector<1x128xf32>
    %64 = arith.addf %60, %63 : vector<1x128xf32>
    %65 = vector.extract_strided_slice %7 {offsets = [0, 1792], sizes = [1, 128], strides = [1, 1]} : vector<1x2048xf32> to vector<1x128xf32>
    %66 = arith.addf %62, %65 : vector<1x128xf32>
    %67 = vector.extract_strided_slice %10 {offsets = [0, 1792], sizes = [1, 128], strides = [1, 1]} : vector<1x2048xf32> to vector<1x128xf32>
    %68 = arith.addf %64, %67 : vector<1x128xf32>
    %69 = vector.extract_strided_slice %7 {offsets = [0, 1920], sizes = [1, 128], strides = [1, 1]} : vector<1x2048xf32> to vector<1x128xf32>
    %70 = arith.addf %66, %69 : vector<1x128xf32>
    %71 = vector.extract_strided_slice %10 {offsets = [0, 1920], sizes = [1, 128], strides = [1, 1]} : vector<1x2048xf32> to vector<1x128xf32>
    %72 = arith.addf %68, %71 : vector<1x128xf32>
    %cst_7 = arith.constant 3.125000e-02 : f32
    %73 = vector.broadcast %cst_7 : f32 to vector<1x128xf32>
    %74 = arith.mulf %70, %73 : vector<1x128xf32>
    %cst_8 = arith.constant 3.125000e-02 : f32
    %75 = vector.broadcast %cst_8 : f32 to vector<1x128xf32>
    %76 = arith.mulf %72, %75 : vector<1x128xf32>
    %77 = arith.mulf %74, %74 : vector<1x128xf32>
    %78 = arith.subf %76, %77 : vector<1x128xf32>
    %cst_9 = arith.constant 0.000000e+00 : f32
    %79 = vector.broadcast %cst_9 : f32 to vector<1x128xf32>
    %80 = arith.maximumf %78, %79 : vector<1x128xf32>
    %cst_10 = arith.constant 9.99999974E-6 : f32
    %81 = vector.broadcast %cst_10 : f32 to vector<1x128xf32>
    %82 = arith.addf %80, %81 : vector<1x128xf32>
    %83 = math.rsqrt %82 : vector<1x128xf32>
    %c0_11 = arith.constant 0 : index
    %c0_12 = arith.constant 0 : index
    %84 = vector.load %arg4[%c0_11, %c0_12] : memref<1x128xf32, #tpu.memory_space<vmem>>, vector<1x128xf32>
    %85 = arith.mulf %84, %83 : vector<1x128xf32>
    %c0_13 = arith.constant 0 : index
    %c0_14 = arith.constant 0 : index
    %86 = vector.load %arg5[%c0_13, %c0_14] : memref<1x128xf32, #tpu.memory_space<vmem>>, vector<1x128xf32>
    %87 = arith.mulf %74, %85 : vector<1x128xf32>
    %88 = arith.subf %86, %87 : vector<1x128xf32>
    %89 = tpu.concatenate %85, %85, %85, %85, %85, %85, %85, %85, %85, %85, %85, %85, %85, %85, %85, %85 in 1 : vector<1x128xf32>, vector<1x128xf32>, vector<1x128xf32>, vector<1x128xf32>, vector<1x128xf32>, vector<1x128xf32>, vector<1x128xf32>, vector<1x128xf32>, vector<1x128xf32>, vector<1x128xf32>, vector<1x128xf32>, vector<1x128xf32>, vector<1x128xf32>, vector<1x128xf32>, vector<1x128xf32>, vector<1x128xf32> -> vector<1x2048xf32>
    %90 = tpu.concatenate %88, %88, %88, %88, %88, %88, %88, %88, %88, %88, %88, %88, %88, %88, %88, %88 in 1 : vector<1x128xf32>, vector<1x128xf32>, vector<1x128xf32>, vector<1x128xf32>, vector<1x128xf32>, vector<1x128xf32>, vector<1x128xf32>, vector<1x128xf32>, vector<1x128xf32>, vector<1x128xf32>, vector<1x128xf32>, vector<1x128xf32>, vector<1x128xf32>, vector<1x128xf32>, vector<1x128xf32>, vector<1x128xf32> -> vector<1x2048xf32>
    %91 = vector.broadcast %89 : vector<1x2048xf32> to vector<2x2048xf32>
    %92 = arith.mulf %5, %91 : vector<2x2048xf32>
    %93 = vector.broadcast %90 : vector<1x2048xf32> to vector<2x2048xf32>
    %94 = arith.addf %92, %93 : vector<2x2048xf32>
    %cst_15 = arith.constant 0.000000e+00 : f32
    %95 = vector.broadcast %cst_15 : f32 to vector<2x2048xf32>
    %96 = arith.maximumf %94, %95 : vector<2x2048xf32>
    %c0_16 = arith.constant 0 : index
    %c0_17 = arith.constant 0 : index
    %97 = vector.load %arg6[%c0_16, %c0_17] : memref<2x2048xf32, #tpu.memory_space<vmem>>, vector<2x2048xf32>
    tpu.vector_store %arg6[%c0_16, %c0_17], %96 {strides = array<i32>} : memref<2x2048xf32, #tpu.memory_space<vmem>>, vector<2x2048xf32>,
    return
  }
  func.func @transform_0(%arg0: i32) -> (i32, i32) {
    %c0_i32 = arith.constant 0 : i32
    %c0_i32_0 = arith.constant 0 : i32
    %c0_i32_1 = arith.constant 0 : i32
    return %c0_i32, %c0_i32_0 : i32, i32
  }
  func.func @transform_1(%arg0: i32) -> (i32, i32) {
    %c0_i32 = arith.constant 0 : i32
    %c0_i32_0 = arith.constant 0 : i32
    %c0_i32_1 = arith.constant 0 : i32
    return %c0_i32, %c0_i32_0 : i32, i32
  }
  func.func @transform_2(%arg0: i32) -> (i32, i32) {
    %c0_i32 = arith.constant 0 : i32
    %c0_i32_0 = arith.constant 0 : i32
    %c0_i32_1 = arith.constant 0 : i32
    return %c0_i32, %c0_i32_0 : i32, i32
  }
  func.func @transform_3(%arg0: i32) -> (i32, i32) {
    %c0_i32 = arith.constant 0 : i32
    %c0_i32_0 = arith.constant 0 : i32
    %c0_i32_1 = arith.constant 0 : i32
    return %c0_i32, %c0_i32_0 : i32, i32
  }
  func.func @transform_4(%arg0: i32) -> (i32, i32) {
    %c0_i32 = arith.constant 0 : i32
    %c0_i32_0 = arith.constant 0 : i32
    %c0_i32_1 = arith.constant 0 : i32
    return %c0_i32, %c0_i32_0 : i32, i32
  }
  func.func @transform_5(%arg0: i32) -> (i32, i32) {
    %c0_i32 = arith.constant 0 : i32
    %c0_i32_0 = arith.constant 0 : i32
    %c0_i32_1 = arith.constant 0 : i32
    return %c0_i32, %c0_i32_0 : i32, i32
  }
}

module attributes {stable_mosaic.version = 11 : i64} {
  func.func @_gemm_bn_relu_kernel(%arg0: i32, %arg1: memref<32x576xbf16, #tpu.memory_space<vmem>>, %arg2: memref<576x512xbf16, #tpu.memory_space<vmem>>, %arg3: memref<1x512xf32, #tpu.memory_space<vmem>>, %arg4: memref<1x128xf32, #tpu.memory_space<vmem>>, %arg5: memref<1x128xf32, #tpu.memory_space<vmem>>, %arg6: memref<32x512xf32, #tpu.memory_space<vmem>>) attributes {dimension_semantics = [#tpu.dimension_semantics<arbitrary>], iteration_bounds = array<i64: 1>, scalar_prefetch = 0 : i64, scratch_operands = 0 : i64, tpu.core_type = #tpu.core_type<tc>, window_params = [{pipeline_mode = #tpu.pipeline_mode<synchronous>, transform_indices = @transform_0, window_bounds = array<i64: 32, 576>}, {pipeline_mode = #tpu.pipeline_mode<synchronous>, transform_indices = @transform_1, window_bounds = array<i64: 576, 512>}, {pipeline_mode = #tpu.pipeline_mode<synchronous>, transform_indices = @transform_2, window_bounds = array<i64: 1, 512>}, {pipeline_mode = #tpu.pipeline_mode<synchronous>, transform_indices = @transform_3, window_bounds = array<i64: 1, 128>}, {pipeline_mode = #tpu.pipeline_mode<synchronous>, transform_indices = @transform_4, window_bounds = array<i64: 1, 128>}, {pipeline_mode = #tpu.pipeline_mode<synchronous>, transform_indices = @transform_5, window_bounds = array<i64: 32, 512>}]} {
    %c0 = arith.constant 0 : index
    %c0_0 = arith.constant 0 : index
    %0 = vector.load %arg1[%c0, %c0_0] : memref<32x576xbf16, #tpu.memory_space<vmem>>, vector<32x576xbf16>
    %c0_1 = arith.constant 0 : index
    %c0_2 = arith.constant 0 : index
    %1 = vector.load %arg2[%c0_1, %c0_2] : memref<576x512xbf16, #tpu.memory_space<vmem>>, vector<576x512xbf16>
    %cst = arith.constant dense<0.000000e+00> : vector<32x512xf32>
    %2 = tpu.matmul %0, %1, %cst {dimension_numbers = #tpu.dot_dimension_numbers<[1], [0], [0], [1], [0, 0, 1, 1], [], []>} : vector<32x576xbf16>, vector<576x512xbf16>, vector<32x512xf32> -> vector<32x512xf32>
    %c0_3 = arith.constant 0 : index
    %c0_4 = arith.constant 0 : index
    %3 = vector.load %arg3[%c0_3, %c0_4] : memref<1x512xf32, #tpu.memory_space<vmem>>, vector<1x512xf32>
    %4 = vector.broadcast %3 : vector<1x512xf32> to vector<32x512xf32>
    %5 = arith.addf %2, %4 : vector<32x512xf32>
    %cst_5 = arith.constant dense<0.000000e+00> : vector<512xf32>
    %6 = vector.multi_reduction <add>, %5, %cst_5 [0] : vector<32x512xf32> to vector<512xf32>
    %7 = vector.shape_cast %6 : vector<512xf32> to vector<1x512xf32>
    %8 = arith.mulf %5, %5 : vector<32x512xf32>
    %cst_6 = arith.constant dense<0.000000e+00> : vector<512xf32>
    %9 = vector.multi_reduction <add>, %8, %cst_6 [0] : vector<32x512xf32> to vector<512xf32>
    %10 = vector.shape_cast %9 : vector<512xf32> to vector<1x512xf32>
    %11 = vector.extract_strided_slice %7 {offsets = [0, 0], sizes = [1, 128], strides = [1, 1]} : vector<1x512xf32> to vector<1x128xf32>
    %12 = vector.extract_strided_slice %10 {offsets = [0, 0], sizes = [1, 128], strides = [1, 1]} : vector<1x512xf32> to vector<1x128xf32>
    %13 = vector.extract_strided_slice %7 {offsets = [0, 128], sizes = [1, 128], strides = [1, 1]} : vector<1x512xf32> to vector<1x128xf32>
    %14 = arith.addf %11, %13 : vector<1x128xf32>
    %15 = vector.extract_strided_slice %10 {offsets = [0, 128], sizes = [1, 128], strides = [1, 1]} : vector<1x512xf32> to vector<1x128xf32>
    %16 = arith.addf %12, %15 : vector<1x128xf32>
    %17 = vector.extract_strided_slice %7 {offsets = [0, 256], sizes = [1, 128], strides = [1, 1]} : vector<1x512xf32> to vector<1x128xf32>
    %18 = arith.addf %14, %17 : vector<1x128xf32>
    %19 = vector.extract_strided_slice %10 {offsets = [0, 256], sizes = [1, 128], strides = [1, 1]} : vector<1x512xf32> to vector<1x128xf32>
    %20 = arith.addf %16, %19 : vector<1x128xf32>
    %21 = vector.extract_strided_slice %7 {offsets = [0, 384], sizes = [1, 128], strides = [1, 1]} : vector<1x512xf32> to vector<1x128xf32>
    %22 = arith.addf %18, %21 : vector<1x128xf32>
    %23 = vector.extract_strided_slice %10 {offsets = [0, 384], sizes = [1, 128], strides = [1, 1]} : vector<1x512xf32> to vector<1x128xf32>
    %24 = arith.addf %20, %23 : vector<1x128xf32>
    %cst_7 = arith.constant 7.812500e-03 : f32
    %25 = vector.broadcast %cst_7 : f32 to vector<1x128xf32>
    %26 = arith.mulf %22, %25 : vector<1x128xf32>
    %cst_8 = arith.constant 7.812500e-03 : f32
    %27 = vector.broadcast %cst_8 : f32 to vector<1x128xf32>
    %28 = arith.mulf %24, %27 : vector<1x128xf32>
    %29 = arith.mulf %26, %26 : vector<1x128xf32>
    %30 = arith.subf %28, %29 : vector<1x128xf32>
    %cst_9 = arith.constant 0.000000e+00 : f32
    %31 = vector.broadcast %cst_9 : f32 to vector<1x128xf32>
    %32 = arith.maximumf %30, %31 : vector<1x128xf32>
    %cst_10 = arith.constant 9.99999974E-6 : f32
    %33 = vector.broadcast %cst_10 : f32 to vector<1x128xf32>
    %34 = arith.addf %32, %33 : vector<1x128xf32>
    %35 = math.rsqrt %34 : vector<1x128xf32>
    %c0_11 = arith.constant 0 : index
    %c0_12 = arith.constant 0 : index
    %36 = vector.load %arg4[%c0_11, %c0_12] : memref<1x128xf32, #tpu.memory_space<vmem>>, vector<1x128xf32>
    %37 = arith.mulf %36, %35 : vector<1x128xf32>
    %c0_13 = arith.constant 0 : index
    %c0_14 = arith.constant 0 : index
    %38 = vector.load %arg5[%c0_13, %c0_14] : memref<1x128xf32, #tpu.memory_space<vmem>>, vector<1x128xf32>
    %39 = arith.mulf %26, %37 : vector<1x128xf32>
    %40 = arith.subf %38, %39 : vector<1x128xf32>
    %41 = tpu.concatenate %37, %37, %37, %37 in 1 : vector<1x128xf32>, vector<1x128xf32>, vector<1x128xf32>, vector<1x128xf32> -> vector<1x512xf32>
    %42 = tpu.concatenate %40, %40, %40, %40 in 1 : vector<1x128xf32>, vector<1x128xf32>, vector<1x128xf32>, vector<1x128xf32> -> vector<1x512xf32>
    %43 = vector.broadcast %41 : vector<1x512xf32> to vector<32x512xf32>
    %44 = arith.mulf %5, %43 : vector<32x512xf32>
    %45 = vector.broadcast %42 : vector<1x512xf32> to vector<32x512xf32>
    %46 = arith.addf %44, %45 : vector<32x512xf32>
    %cst_15 = arith.constant 0.000000e+00 : f32
    %47 = vector.broadcast %cst_15 : f32 to vector<32x512xf32>
    %48 = arith.maximumf %46, %47 : vector<32x512xf32>
    %c0_16 = arith.constant 0 : index
    %c0_17 = arith.constant 0 : index
    %49 = vector.load %arg6[%c0_16, %c0_17] : memref<32x512xf32, #tpu.memory_space<vmem>>, vector<32x512xf32>
    tpu.vector_store %arg6[%c0_16, %c0_17], %48 {strides = array<i32>} : memref<32x512xf32, #tpu.memory_space<vmem>>, vector<32x512xf32>,
    return
  }
  func.func @transform_0(%arg0: i32) -> (i32, i32) {
    %c0_i32 = arith.constant 0 : i32
    %c0_i32_0 = arith.constant 0 : i32
    %c0_i32_1 = arith.constant 0 : i32
    return %c0_i32, %c0_i32_0 : i32, i32
  }
  func.func @transform_1(%arg0: i32) -> (i32, i32) {
    %c0_i32 = arith.constant 0 : i32
    %c0_i32_0 = arith.constant 0 : i32
    %c0_i32_1 = arith.constant 0 : i32
    return %c0_i32, %c0_i32_0 : i32, i32
  }
  func.func @transform_2(%arg0: i32) -> (i32, i32) {
    %c0_i32 = arith.constant 0 : i32
    %c0_i32_0 = arith.constant 0 : i32
    %c0_i32_1 = arith.constant 0 : i32
    return %c0_i32, %c0_i32_0 : i32, i32
  }
  func.func @transform_3(%arg0: i32) -> (i32, i32) {
    %c0_i32 = arith.constant 0 : i32
    %c0_i32_0 = arith.constant 0 : i32
    %c0_i32_1 = arith.constant 0 : i32
    return %c0_i32, %c0_i32_0 : i32, i32
  }
  func.func @transform_4(%arg0: i32) -> (i32, i32) {
    %c0_i32 = arith.constant 0 : i32
    %c0_i32_0 = arith.constant 0 : i32
    %c0_i32_1 = arith.constant 0 : i32
    return %c0_i32, %c0_i32_0 : i32, i32
  }
  func.func @transform_5(%arg0: i32) -> (i32, i32) {
    %c0_i32 = arith.constant 0 : i32
    %c0_i32_0 = arith.constant 0 : i32
    %c0_i32_1 = arith.constant 0 : i32
    return %c0_i32, %c0_i32_0 : i32, i32
  }
}

module attributes {stable_mosaic.version = 11 : i64} {
  func.func @_gemm_bn_relu_kernel(%arg0: i32, %arg1: memref<128x288xbf16, #tpu.memory_space<vmem>>, %arg2: memref<288x512xbf16, #tpu.memory_space<vmem>>, %arg3: memref<1x512xf32, #tpu.memory_space<vmem>>, %arg4: memref<1x128xf32, #tpu.memory_space<vmem>>, %arg5: memref<1x128xf32, #tpu.memory_space<vmem>>, %arg6: memref<128x512xf32, #tpu.memory_space<vmem>>) attributes {dimension_semantics = [#tpu.dimension_semantics<arbitrary>], iteration_bounds = array<i64: 1>, scalar_prefetch = 0 : i64, scratch_operands = 0 : i64, tpu.core_type = #tpu.core_type<tc>, window_params = [{pipeline_mode = #tpu.pipeline_mode<synchronous>, transform_indices = @transform_0, window_bounds = array<i64: 128, 288>}, {pipeline_mode = #tpu.pipeline_mode<synchronous>, transform_indices = @transform_1, window_bounds = array<i64: 288, 512>}, {pipeline_mode = #tpu.pipeline_mode<synchronous>, transform_indices = @transform_2, window_bounds = array<i64: 1, 512>}, {pipeline_mode = #tpu.pipeline_mode<synchronous>, transform_indices = @transform_3, window_bounds = array<i64: 1, 128>}, {pipeline_mode = #tpu.pipeline_mode<synchronous>, transform_indices = @transform_4, window_bounds = array<i64: 1, 128>}, {pipeline_mode = #tpu.pipeline_mode<synchronous>, transform_indices = @transform_5, window_bounds = array<i64: 128, 512>}]} {
    %c0 = arith.constant 0 : index
    %c0_0 = arith.constant 0 : index
    %0 = vector.load %arg1[%c0, %c0_0] : memref<128x288xbf16, #tpu.memory_space<vmem>>, vector<128x288xbf16>
    %c0_1 = arith.constant 0 : index
    %c0_2 = arith.constant 0 : index
    %1 = vector.load %arg2[%c0_1, %c0_2] : memref<288x512xbf16, #tpu.memory_space<vmem>>, vector<288x512xbf16>
    %cst = arith.constant dense<0.000000e+00> : vector<128x512xf32>
    %2 = tpu.matmul %0, %1, %cst {dimension_numbers = #tpu.dot_dimension_numbers<[1], [0], [0], [1], [0, 0, 1, 1], [], []>} : vector<128x288xbf16>, vector<288x512xbf16>, vector<128x512xf32> -> vector<128x512xf32>
    %c0_3 = arith.constant 0 : index
    %c0_4 = arith.constant 0 : index
    %3 = vector.load %arg3[%c0_3, %c0_4] : memref<1x512xf32, #tpu.memory_space<vmem>>, vector<1x512xf32>
    %4 = vector.broadcast %3 : vector<1x512xf32> to vector<128x512xf32>
    %5 = arith.addf %2, %4 : vector<128x512xf32>
    %cst_5 = arith.constant dense<0.000000e+00> : vector<512xf32>
    %6 = vector.multi_reduction <add>, %5, %cst_5 [0] : vector<128x512xf32> to vector<512xf32>
    %7 = vector.shape_cast %6 : vector<512xf32> to vector<1x512xf32>
    %8 = arith.mulf %5, %5 : vector<128x512xf32>
    %cst_6 = arith.constant dense<0.000000e+00> : vector<512xf32>
    %9 = vector.multi_reduction <add>, %8, %cst_6 [0] : vector<128x512xf32> to vector<512xf32>
    %10 = vector.shape_cast %9 : vector<512xf32> to vector<1x512xf32>
    %11 = vector.extract_strided_slice %7 {offsets = [0, 0], sizes = [1, 128], strides = [1, 1]} : vector<1x512xf32> to vector<1x128xf32>
    %12 = vector.extract_strided_slice %10 {offsets = [0, 0], sizes = [1, 128], strides = [1, 1]} : vector<1x512xf32> to vector<1x128xf32>
    %13 = vector.extract_strided_slice %7 {offsets = [0, 128], sizes = [1, 128], strides = [1, 1]} : vector<1x512xf32> to vector<1x128xf32>
    %14 = arith.addf %11, %13 : vector<1x128xf32>
    %15 = vector.extract_strided_slice %10 {offsets = [0, 128], sizes = [1, 128], strides = [1, 1]} : vector<1x512xf32> to vector<1x128xf32>
    %16 = arith.addf %12, %15 : vector<1x128xf32>
    %17 = vector.extract_strided_slice %7 {offsets = [0, 256], sizes = [1, 128], strides = [1, 1]} : vector<1x512xf32> to vector<1x128xf32>
    %18 = arith.addf %14, %17 : vector<1x128xf32>
    %19 = vector.extract_strided_slice %10 {offsets = [0, 256], sizes = [1, 128], strides = [1, 1]} : vector<1x512xf32> to vector<1x128xf32>
    %20 = arith.addf %16, %19 : vector<1x128xf32>
    %21 = vector.extract_strided_slice %7 {offsets = [0, 384], sizes = [1, 128], strides = [1, 1]} : vector<1x512xf32> to vector<1x128xf32>
    %22 = arith.addf %18, %21 : vector<1x128xf32>
    %23 = vector.extract_strided_slice %10 {offsets = [0, 384], sizes = [1, 128], strides = [1, 1]} : vector<1x512xf32> to vector<1x128xf32>
    %24 = arith.addf %20, %23 : vector<1x128xf32>
    %cst_7 = arith.constant 0.001953125 : f32
    %25 = vector.broadcast %cst_7 : f32 to vector<1x128xf32>
    %26 = arith.mulf %22, %25 : vector<1x128xf32>
    %cst_8 = arith.constant 0.001953125 : f32
    %27 = vector.broadcast %cst_8 : f32 to vector<1x128xf32>
    %28 = arith.mulf %24, %27 : vector<1x128xf32>
    %29 = arith.mulf %26, %26 : vector<1x128xf32>
    %30 = arith.subf %28, %29 : vector<1x128xf32>
    %cst_9 = arith.constant 0.000000e+00 : f32
    %31 = vector.broadcast %cst_9 : f32 to vector<1x128xf32>
    %32 = arith.maximumf %30, %31 : vector<1x128xf32>
    %cst_10 = arith.constant 9.99999974E-6 : f32
    %33 = vector.broadcast %cst_10 : f32 to vector<1x128xf32>
    %34 = arith.addf %32, %33 : vector<1x128xf32>
    %35 = math.rsqrt %34 : vector<1x128xf32>
    %c0_11 = arith.constant 0 : index
    %c0_12 = arith.constant 0 : index
    %36 = vector.load %arg4[%c0_11, %c0_12] : memref<1x128xf32, #tpu.memory_space<vmem>>, vector<1x128xf32>
    %37 = arith.mulf %36, %35 : vector<1x128xf32>
    %c0_13 = arith.constant 0 : index
    %c0_14 = arith.constant 0 : index
    %38 = vector.load %arg5[%c0_13, %c0_14] : memref<1x128xf32, #tpu.memory_space<vmem>>, vector<1x128xf32>
    %39 = arith.mulf %26, %37 : vector<1x128xf32>
    %40 = arith.subf %38, %39 : vector<1x128xf32>
    %41 = tpu.concatenate %37, %37, %37, %37 in 1 : vector<1x128xf32>, vector<1x128xf32>, vector<1x128xf32>, vector<1x128xf32> -> vector<1x512xf32>
    %42 = tpu.concatenate %40, %40, %40, %40 in 1 : vector<1x128xf32>, vector<1x128xf32>, vector<1x128xf32>, vector<1x128xf32> -> vector<1x512xf32>
    %43 = vector.broadcast %41 : vector<1x512xf32> to vector<128x512xf32>
    %44 = arith.mulf %5, %43 : vector<128x512xf32>
    %45 = vector.broadcast %42 : vector<1x512xf32> to vector<128x512xf32>
    %46 = arith.addf %44, %45 : vector<128x512xf32>
    %cst_15 = arith.constant 0.000000e+00 : f32
    %47 = vector.broadcast %cst_15 : f32 to vector<128x512xf32>
    %48 = arith.maximumf %46, %47 : vector<128x512xf32>
    %c0_16 = arith.constant 0 : index
    %c0_17 = arith.constant 0 : index
    %49 = vector.load %arg6[%c0_16, %c0_17] : memref<128x512xf32, #tpu.memory_space<vmem>>, vector<128x512xf32>
    tpu.vector_store %arg6[%c0_16, %c0_17], %48 {strides = array<i32>} : memref<128x512xf32, #tpu.memory_space<vmem>>, vector<128x512xf32>,
    return
  }
  func.func @transform_0(%arg0: i32) -> (i32, i32) {
    %c0_i32 = arith.constant 0 : i32
    %c0_i32_0 = arith.constant 0 : i32
    %c0_i32_1 = arith.constant 0 : i32
    return %c0_i32, %c0_i32_0 : i32, i32
  }
  func.func @transform_1(%arg0: i32) -> (i32, i32) {
    %c0_i32 = arith.constant 0 : i32
    %c0_i32_0 = arith.constant 0 : i32
    %c0_i32_1 = arith.constant 0 : i32
    return %c0_i32, %c0_i32_0 : i32, i32
  }
  func.func @transform_2(%arg0: i32) -> (i32, i32) {
    %c0_i32 = arith.constant 0 : i32
    %c0_i32_0 = arith.constant 0 : i32
    %c0_i32_1 = arith.constant 0 : i32
    return %c0_i32, %c0_i32_0 : i32, i32
  }
  func.func @transform_3(%arg0: i32) -> (i32, i32) {
    %c0_i32 = arith.constant 0 : i32
    %c0_i32_0 = arith.constant 0 : i32
    %c0_i32_1 = arith.constant 0 : i32
    return %c0_i32, %c0_i32_0 : i32, i32
  }
  func.func @transform_4(%arg0: i32) -> (i32, i32) {
    %c0_i32 = arith.constant 0 : i32
    %c0_i32_0 = arith.constant 0 : i32
    %c0_i32_1 = arith.constant 0 : i32
    return %c0_i32, %c0_i32_0 : i32, i32
  }
  func.func @transform_5(%arg0: i32) -> (i32, i32) {
    %c0_i32 = arith.constant 0 : i32
    %c0_i32_0 = arith.constant 0 : i32
    %c0_i32_1 = arith.constant 0 : i32
    return %c0_i32, %c0_i32_0 : i32, i32
  }
}

module attributes {stable_mosaic.version = 11 : i64} {
  func.func @_gemm_bias_tanh_kernel(%arg0: i32, %arg1: memref<256x144xbf16, #tpu.memory_space<vmem>>, %arg2: memref<144x512xbf16, #tpu.memory_space<vmem>>, %arg3: memref<1x512xf32, #tpu.memory_space<vmem>>, %arg4: memref<256x512xf32, #tpu.memory_space<vmem>>) attributes {dimension_semantics = [#tpu.dimension_semantics<parallel>], iteration_bounds = array<i64: 2>, scalar_prefetch = 0 : i64, scratch_operands = 0 : i64, tpu.core_type = #tpu.core_type<tc>, window_params = [{transform_indices = @transform_0, window_bounds = array<i64: 256, 144>}, {pipeline_mode = #tpu.pipeline_mode<synchronous>, transform_indices = @transform_1, window_bounds = array<i64: 144, 512>}, {pipeline_mode = #tpu.pipeline_mode<synchronous>, transform_indices = @transform_2, window_bounds = array<i64: 1, 512>}, {transform_indices = @transform_3, window_bounds = array<i64: 256, 512>}]} {
    %c0 = arith.constant 0 : index
    %c0_0 = arith.constant 0 : index
    %0 = vector.load %arg1[%c0, %c0_0] : memref<256x144xbf16, #tpu.memory_space<vmem>>, vector<256x144xbf16>
    %c0_1 = arith.constant 0 : index
    %c0_2 = arith.constant 0 : index
    %1 = vector.load %arg2[%c0_1, %c0_2] : memref<144x512xbf16, #tpu.memory_space<vmem>>, vector<144x512xbf16>
    %cst = arith.constant dense<0.000000e+00> : vector<256x512xf32>
    %2 = tpu.matmul %0, %1, %cst {dimension_numbers = #tpu.dot_dimension_numbers<[1], [0], [0], [1], [0, 0, 1, 1], [], []>} : vector<256x144xbf16>, vector<144x512xbf16>, vector<256x512xf32> -> vector<256x512xf32>
    %c0_3 = arith.constant 0 : index
    %c0_4 = arith.constant 0 : index
    %3 = vector.load %arg3[%c0_3, %c0_4] : memref<1x512xf32, #tpu.memory_space<vmem>>, vector<1x512xf32>
    %4 = vector.broadcast %3 : vector<1x512xf32> to vector<256x512xf32>
    %5 = arith.addf %2, %4 : vector<256x512xf32>
    %6 = math.tanh %5 : vector<256x512xf32>
    %c0_5 = arith.constant 0 : index
    %c0_6 = arith.constant 0 : index
    %7 = vector.load %arg4[%c0_5, %c0_6] : memref<256x512xf32, #tpu.memory_space<vmem>>, vector<256x512xf32>
    tpu.vector_store %arg4[%c0_5, %c0_6], %6 {strides = array<i32>} : memref<256x512xf32, #tpu.memory_space<vmem>>, vector<256x512xf32>,
    return
  }
  func.func @transform_0(%arg0: i32) -> (i32, i32) {
    %c0_i32 = arith.constant 0 : i32
    %c0_i32_0 = arith.constant 0 : i32
    return %arg0, %c0_i32 : i32, i32
  }
  func.func @transform_1(%arg0: i32) -> (i32, i32) {
    %c0_i32 = arith.constant 0 : i32
    %c0_i32_0 = arith.constant 0 : i32
    %c0_i32_1 = arith.constant 0 : i32
    return %c0_i32, %c0_i32_0 : i32, i32
  }
  func.func @transform_2(%arg0: i32) -> (i32, i32) {
    %c0_i32 = arith.constant 0 : i32
    %c0_i32_0 = arith.constant 0 : i32
    %c0_i32_1 = arith.constant 0 : i32
    return %c0_i32, %c0_i32_0 : i32, i32
  }
  func.func @transform_3(%arg0: i32) -> (i32, i32) {
    %c0_i32 = arith.constant 0 : i32
    %c0_i32_0 = arith.constant 0 : i32
    return %arg0, %c0_i32 : i32, i32
  }
}

</mosaic_0001>

<llo_original>
// kernel: tile.23
$region0: #{tile.23}
  #allocation2 [shape = 's32[1]{0}', space=sflag, size = 0x4, scoped, tag = 'scoped memory for tile.23']
  %s0 = inlined_call_operand.hbm [shape: f32[128], index: 0, kind: input, shape index: {}]
  %s1 = inlined_call_operand.vmem [shape: f32[16,128], index: 1, kind: output, shape index: {}]
  $region1: #{tile.23} parent=0
    #allocation0 [shape = 'u8[512]{0}', space=vmem, size = 0x400, scoped, tag = 'operand span for operand 0']
    #allocation1 [shape = 's32[1]{0}', space=sflag, size = 0x4, scoped, tag = 'scoped memory for tile.23']
    %2 = vsyncpa [#allocation1], 0
    // Predicated region
    $region2: #{tile.23} parent=1 // pred_check
      _
    $region3: #{tile.23} parent=1 // pred_check_branch
      %4 = sbr.rel (0) target = $region5
    $region4: #{tile.23} parent=1 // pred_region
      %s6 = ssub.s32 16, 16
      %7 = vsyncadd [#allocation1], %s6
      %s9 = sshll.u32 [#allocation0], 4
      %s10 = int_to_ptr.vmem [resolvable:$true] %s9
      %12 = dma.hbm_to_vmem [thread:$0]  %s0, 16, %s10, [#allocation1]
    $region5: #{tile.23} parent=1 // pred_fallthru
      _
    // Predicated region
    $region6: #{tile.23} parent=1 // pred_check
      _
    $region7: #{tile.23} parent=1 // pred_check_branch
      %14 = sbr.rel (0) target = $region9
    $region8: #{tile.23} parent=1 // pred_region
      %15 = dma.done [#allocation1], 16
    $region9: #{tile.23} parent=1 // pred_fallthru
      _
    %v16 = vld [vmem:[#allocation0] ss:$0 sm:$0xff]
    %17 = vst [vmem:[%s1] sm:$0xff] %v16
    %s18 = scalar_lea.vmem %s1, 8
    %19 = vst [vmem:[%s18] sm:$0xff] %v16
    %20 = vsyncpa [#allocation1], 1

// kernel: tile.28
$region0: #{tile.28}
  #allocation0 [shape = 's32[1]{0}', space=sflag, size = 0x4, scoped, tag = 'scoped memory for tile.28']
  %s0 = inlined_call_operand.vmem [shape: f32[128], index: 0, kind: input, shape index: {}]
  %s1 = inlined_call_operand.vmem [shape: f32[4,128], index: 1, kind: output, shape index: {}]
  // Predicated region
  $region2: #{tile.28} parent=0 // pred_check
    _
  $region3: #{tile.28} parent=0 // pred_check_branch
    %3 = sbr.rel (0) target = $region5
  $region4: #{tile.28} parent=0 // pred_region
    _
  $region5: #{tile.28} parent=0 // pred_fallthru
    _
  %v4 = vld [vmem:[%s0] ss:$0 sm:$0xff]
  %5 = vst [vmem:[%s1] sm:$0xf] %v4

// kernel: _lambda_.4
$region0: #{_lambda_.4}
  #allocation0 [shape = 'u32[]', space=smem, size = 0x4, offset = 0x4, fixed_abs, tag = 'smem constant byte address 0x4 - core index']
  #allocation1 [shape = 'u32[144,128]{1,0:T(1,128)}', space=vmem, size = 0x12000, scoped, tag = 'internal scratch']
  %s0 = inlined_call_operand.vmem [shape: bf16[2,32], index: 0, kind: input, shape index: {}]
  %s1 = inlined_call_operand.vmem [shape: bf16[32,2048], index: 1, kind: input, shape index: {}]
  %s2 = inlined_call_operand.vmem [shape: f32[1,2048], index: 2, kind: input, shape index: {}]
  %s3 = inlined_call_operand.vmem [shape: f32[1,128], index: 3, kind: input, shape index: {}]
  %s4 = inlined_call_operand.vmem [shape: f32[1,128], index: 4, kind: input, shape index: {}]
  %s5 = inlined_call_operand.vmem [shape: f32[2,2048], index: 5, kind: output, shape index: {}]
  %s6 = sld [smem:[#allocation0]]
  $region30: #{_lambda_.4} parent=0
    _
  %s8 = ssub.s32 1, %s6
  %s9 = scalar_select 0, %s8, %s6
  // Predicated region
  $region2: #{_lambda_.4} parent=0 // pred_check
    _
  $region3: #{_lambda_.4} parent=0 // pred_check_branch
    %11 = sbr.rel (0) target = $region5
  $region4: #{_lambda_.4} parent=0 // pred_region
    _
  $region5: #{_lambda_.4} parent=0 // pred_fallthru
    _
  // Predicated region
  $region6: #{_lambda_.4} parent=0 // pred_check
    _
  $region7: #{_lambda_.4} parent=0 // pred_check_branch
    %13 = sbr.rel (0) target = $region9
  $region8: #{_lambda_.4} parent=0 // pred_region
    _
  $region9: #{_lambda_.4} parent=0 // pred_fallthru
    _
  // Predicated region
  $region10: #{_lambda_.4} parent=0 // pred_check
    _
  $region11: #{_lambda_.4} parent=0 // pred_check_branch
    %15 = sbr.rel (0) target = $region13
  $region12: #{_lambda_.4} parent=0 // pred_region
    _
  $region13: #{_lambda_.4} parent=0 // pred_fallthru
    _
  // Predicated region
  $region14: #{_lambda_.4} parent=0 // pred_check
    _
  $region15: #{_lambda_.4} parent=0 // pred_check_branch
    %17 = sbr.rel (0) target = $region17
  $region16: #{_lambda_.4} parent=0 // pred_region
    _
  $region17: #{_lambda_.4} parent=0 // pred_fallthru
    _
  // Predicated region
  $region18: #{_lambda_.4} parent=0 // pred_check
    _
  $region19: #{_lambda_.4} parent=0 // pred_check_branch
    %19 = sbr.rel (0) target = $region21
  $region20: #{_lambda_.4} parent=0 // pred_region
    _
  $region21: #{_lambda_.4} parent=0 // pred_fallthru
    _
  %v21 = vld [vmem:[%s0] sm:$0x1]
  %v22 = vld [vmem:[%s1] sm:$0xff]
  %v23 = vld [vmem:[%s1 + $0x8] sm:$0xff]
  %v24 = vld [vmem:[%s1 + $0x10] sm:$0xff]
  %v25 = vld [vmem:[%s1 + $0x18] sm:$0xff]
  %v26 = vld [vmem:[%s1 + $0x20] sm:$0xff]
  %v27 = vld [vmem:[%s1 + $0x28] sm:$0xff]
  %v28 = vld [vmem:[%s1 + $0x30] sm:$0xff]
  %v29 = vld [vmem:[%s1 + $0x38] sm:$0xff]
  %v30 = vld [vmem:[%s1 + $0x40] sm:$0xff]
  %v31 = vld [vmem:[%s1 + $0x48] sm:$0xff]
  %v32 = vld [vmem:[%s1 + $0x50] sm:$0xff]
  %v33 = vld [vmem:[%s1 + $0x58] sm:$0xff]
  %v34 = vld [vmem:[%s1 + $0x60] sm:$0xff]
  %v35 = vld [vmem:[%s1 + $0x68] sm:$0xff]
  %v36 = vld [vmem:[%s1 + $0x70] sm:$0xff]
  %v37 = vld [vmem:[%s1 + $0x78] sm:$0xff]
  %v38 = vld [vmem:[%s1 + $0x80] sm:$0xff]
  %v39 = vld [vmem:[%s1 + $0x88] sm:$0xff]
  %v40 = vld [vmem:[%s1 + $0x90] sm:$0xff]
  %v41 = vld [vmem:[%s1 + $0x98] sm:$0xff]
  %v42 = vld [vmem:[%s1 + $0xa0] sm:$0xff]
  %v43 = vld [vmem:[%s1 + $0xa8] sm:$0xff]
  %v44 = vld [vmem:[%s1 + $0xb0] sm:$0xff]
  %v45 = vld [vmem:[%s1 + $0xb8] sm:$0xff]
  %v46 = vld [vmem:[%s1 + $0xc0] sm:$0xff]
  %v47 = vld [vmem:[%s1 + $0xc8] sm:$0xff]
  %v48 = vld [vmem:[%s1 + $0xd0] sm:$0xff]
  %v49 = vld [vmem:[%s1 + $0xd8] sm:$0xff]
  %v50 = vld [vmem:[%s1 + $0xe0] sm:$0xff]
  %v51 = vld [vmem:[%s1 + $0xe8] sm:$0xff]
  %v52 = vld [vmem:[%s1 + $0xf0] sm:$0xff]
  %v53 = vld [vmem:[%s1 + $0xf8] sm:$0xff]
  %v54 = vld [vmem:[%s2] sm:$0xff]
  %v55 = vld [vmem:[%s2 + $0x8] sm:$0xff]
  %v58 = vlaneseq
  %v59 = vshrl.u32 %v58, 7
  %v60 = vsub.s32 0, %v59
  %v61 = vrot.slane %v54, %v60
  %v62 = vlaneseq
  %v63 = vshrl.u32 %v62, 7
  %v64 = vsub.s32 1, %v63
  %v65 = vrot.slane %v54, %v64
  %v66 = vlaneseq
  %v67 = vshrl.u32 %v66, 7
  %v68 = vsub.s32 2, %v67
  %v69 = vrot.slane %v54, %v68
  %v70 = vlaneseq
  %v71 = vshrl.u32 %v70, 7
  %v72 = vsub.s32 3, %v71
  %v73 = vrot.slane %v54, %v72
  %v74 = vlaneseq
  %v75 = vshrl.u32 %v74, 7
  %v76 = vsub.s32 4, %v75
  %v77 = vrot.slane %v54, %v76
  %v78 = vlaneseq
  %v79 = vshrl.u32 %v78, 7
  %v80 = vsub.s32 5, %v79
  %v81 = vrot.slane %v54, %v80
  %v82 = vlaneseq
  %v83 = vshrl.u32 %v82, 7
  %v84 = vsub.s32 6, %v83
  %v85 = vrot.slane %v54, %v84
  %v86 = vlaneseq
  %v87 = vshrl.u32 %v86, 7
  %v88 = vsub.s32 7, %v87
  %v89 = vrot.slane %v54, %v88
  %v90 = vlaneseq
  %v91 = vshrl.u32 %v90, 7
  %v92 = vsub.s32 0, %v91
  %v93 = vrot.slane %v55, %v92
  %v94 = vlaneseq
  %v95 = vshrl.u32 %v94, 7
  %v96 = vsub.s32 1, %v95
  %v97 = vrot.slane %v55, %v96
  %v98 = vlaneseq
  %v99 = vshrl.u32 %v98, 7
  %v100 = vsub.s32 2, %v99
  %v101 = vrot.slane %v55, %v100
  %v102 = vlaneseq
  %v103 = vshrl.u32 %v102, 7
  %v104 = vsub.s32 3, %v103
  %v105 = vrot.slane %v55, %v104
  %v106 = vlaneseq
  %v107 = vshrl.u32 %v106, 7
  %v108 = vsub.s32 4, %v107
  %v109 = vrot.slane %v55, %v108
  %v110 = vlaneseq
  %v111 = vshrl.u32 %v110, 7
  %v112 = vsub.s32 5, %v111
  %v113 = vrot.slane %v55, %v112
  %v114 = vlaneseq
  %v115 = vshrl.u32 %v114, 7
  %v116 = vsub.s32 6, %v115
  %v117 = vrot.slane %v55, %v116
  %v118 = vlaneseq
  %v119 = vshrl.u32 %v118, 7
  %v120 = vsub.s32 7, %v119
  %v121 = vrot.slane %v55, %v120
  %v170 = vunpack.c.l.b16 %v22
  %v171 = vunpack.c.h.b16 %v22
  %v172 = vunpack.c.l.b16 %v23
  %v173 = vunpack.c.h.b16 %v23
  %v174 = vunpack.c.l.b16 %v24
  %v175 = vunpack.c.h.b16 %v24
  %v176 = vunpack.c.l.b16 %v25
  %v177 = vunpack.c.h.b16 %v25
  %v178 = vunpack.c.l.b16 %v26
  %v179 = vunpack.c.h.b16 %v26
  %v180 = vunpack.c.l.b16 %v27
  %v181 = vunpack.c.h.b16 %v27
  %v182 = vunpack.c.l.b16 %v28
  %v183 = vunpack.c.h.b16 %v28
  %v184 = vunpack.c.l.b16 %v29
  %v185 = vunpack.c.h.b16 %v29
  %v186 = vunpack.c.l.b16 %v30
  %v187 = vunpack.c.h.b16 %v30
  %v188 = vunpack.c.l.b16 %v31
  %v189 = vunpack.c.h.b16 %v31
  %v190 = vunpack.c.l.b16 %v32
  %v191 = vunpack.c.h.b16 %v32
  %v192 = vunpack.c.l.b16 %v33
  %v193 = vunpack.c.h.b16 %v33
  %v194 = vunpack.c.l.b16 %v34
  %v195 = vunpack.c.h.b16 %v34
  %v196 = vunpack.c.l.b16 %v35
  %v197 = vunpack.c.h.b16 %v35
  %v198 = vunpack.c.l.b16 %v36
  %v199 = vunpack.c.h.b16 %v36
  %v200 = vunpack.c.l.b16 %v37
  %v201 = vunpack.c.h.b16 %v37
  %v202 = vunpack.c.l.b16 %v38
  %v203 = vunpack.c.h.b16 %v38
  %v204 = vunpack.c.l.b16 %v39
  %v205 = vunpack.c.h.b16 %v39
  %v206 = vunpack.c.l.b16 %v40
  %v207 = vunpack.c.h.b16 %v40
  %v208 = vunpack.c.l.b16 %v41
  %v209 = vunpack.c.h.b16 %v41
  %v210 = vunpack.c.l.b16 %v42
  %v211 = vunpack.c.h.b16 %v42
  %v212 = vunpack.c.l.b16 %v43
  %v213 = vunpack.c.h.b16 %v43
  %v214 = vunpack.c.l.b16 %v44
  %v215 = vunpack.c.h.b16 %v44
  %v216 = vunpack.c.l.b16 %v45
  %v217 = vunpack.c.h.b16 %v45
  %v218 = vunpack.c.l.b16 %v46
  %v219 = vunpack.c.h.b16 %v46
  %v220 = vunpack.c.l.b16 %v47
  %v221 = vunpack.c.h.b16 %v47
  %v222 = vunpack.c.l.b16 %v48
  %v223 = vunpack.c.h.b16 %v48
  %v224 = vunpack.c.l.b16 %v49
  %v225 = vunpack.c.h.b16 %v49
  %v226 = vunpack.c.l.b16 %v50
  %v227 = vunpack.c.h.b16 %v50
  %v228 = vunpack.c.l.b16 %v51
  %v229 = vunpack.c.h.b16 %v51
  %v230 = vunpack.c.l.b16 %v52
  %v231 = vunpack.c.h.b16 %v52
  %v232 = vunpack.c.l.b16 %v53
  %v233 = vunpack.c.h.b16 %v53
  %v234 = vpack.c.b16 %v186, %v170
  %v235 = vpack.c.b16 %v187, %v171
  %v236 = vpack.c.b16 %v188, %v172
  %v237 = vpack.c.b16 %v189, %v173
  %v238 = vpack.c.b16 %v190, %v174
  %v239 = vpack.c.b16 %v191, %v175
  %v240 = vpack.c.b16 %v192, %v176
  %v241 = vpack.c.b16 %v193, %v177
  %v242 = vpack.c.b16 %v194, %v178
  %v243 = vpack.c.b16 %v195, %v179
  %v244 = vpack.c.b16 %v196, %v180
  %v245 = vpack.c.b16 %v197, %v181
  %v246 = vpack.c.b16 %v198, %v182
  %v247 = vpack.c.b16 %v199, %v183
  %v248 = vpack.c.b16 %v200, %v184
  %v249 = vpack.c.b16 %v201, %v185
  %v250 = vpack.c.b16 %v218, %v202
  %v251 = vpack.c.b16 %v219, %v203
  %v252 = vpack.c.b16 %v220, %v204
  %v253 = vpack.c.b16 %v221, %v205
  %v254 = vpack.c.b16 %v222, %v206
  %v255 = vpack.c.b16 %v223, %v207
  %v256 = vpack.c.b16 %v224, %v208
  %v257 = vpack.c.b16 %v225, %v209
  %v258 = vpack.c.b16 %v226, %v210
  %v259 = vpack.c.b16 %v227, %v211
  %v260 = vpack.c.b16 %v228, %v212
  %v261 = vpack.c.b16 %v229, %v213
  %v262 = vpack.c.b16 %v230, %v214
  %v263 = vpack.c.b16 %v231, %v215
  %v264 = vpack.c.b16 %v232, %v216
  %v265 = vpack.c.b16 %v233, %v217
  %vm298 = vcmask 261120
  %v300 = vsel %vm298, %v21, 0
  %302 = vmatprep.subr.bf16.mxu0 %v235
  %303 = vmatpush1.bf16.msra.mxu0 %v234
  %304 = vmatprep.subr.bf16.mxu0 %v251
  %305 = vmatpush1.bf16.msra.mxu0 %v250
  %306 = vmatprep.subr.bf16.mxu0 0
  %307 = vmatpush1.bf16.msra.mxu0 0
  %308 = vmatprep.subr.bf16.mxu0 0
  %309 = vmatpush1.bf16.msra.mxu0 0
  %310 = vmatprep.subr.bf16.mxu0 0
  %311 = vmatpush1.bf16.msra.mxu0 0
  %312 = vmatprep.subr.bf16.mxu0 0
  %313 = vmatpush1.bf16.msra.mxu0 0
  %314 = vmatprep.subr.bf16.mxu0 0
  %315 = vmatpush1.bf16.msra.mxu0 0
  %316 = vmatprep.subr.bf16.mxu0 0
  %317 = vmatpush1.bf16.msra.mxu0 0
  %318 = vmatprep.subr.bf16.mxu0 0
  %319 = vmatpush1.bf16.msra.mxu0 0
  %320 = vmatprep.subr.bf16.mxu0 0
  %321 = vmatpush1.bf16.msra.mxu0 0
  %322 = vmatprep.subr.bf16.mxu0 0
  %323 = vmatpush1.bf16.msra.mxu0 0
  %324 = vmatprep.subr.bf16.mxu0 0
  %325 = vmatpush1.bf16.msra.mxu0 0
  %326 = vmatprep.subr.bf16.mxu0 0
  %327 = vmatpush1.bf16.msra.mxu0 0
  %328 = vmatprep.subr.bf16.mxu0 0
  %329 = vmatpush1.bf16.msra.mxu0 0
  %330 = vmatprep.subr.bf16.mxu0 0
  %331 = vmatpush1.bf16.msra.mxu0 0
  %332 = vmatprep.subr.bf16.mxu0 0
  %333 = vmatpush1.bf16.msra.mxu0 0
  %334 = vmatprep.mubr.bf16.mxu0 0
  %335 = vmatmul.mubr.bf16.gmra.mrb[0].mxu0 %v300
  %v336 = vpop.f32.mrb[0].mxu0
  %v337 = vadd.f32 %v61, %v336
  %v338 = vpop.f32.mrb[0].mxu0
  %v339 = vadd.f32 %v65, %v338
  %v340 = vpop.f32.mrb[0].mxu0
  %v341 = vpop.f32.mrb[0].mxu0
  %342 = vdwg.mxu0
  %343 = vmatprep.subr.bf16.mxu0 %v237
  %344 = vmatpush1.bf16.msra.mxu0 %v236
  %345 = vmatprep.subr.bf16.mxu0 %v253
  %346 = vmatpush1.bf16.msra.mxu0 %v252
  %347 = vmatprep.subr.bf16.mxu0 0
  %348 = vmatpush1.bf16.msra.mxu0 0
  %349 = vmatprep.subr.bf16.mxu0 0
  %350 = vmatpush1.bf16.msra.mxu0 0
  %351 = vmatprep.subr.bf16.mxu0 0
  %352 = vmatpush1.bf16.msra.mxu0 0
  %353 = vmatprep.subr.bf16.mxu0 0
  %354 = vmatpush1.bf16.msra.mxu0 0
  %355 = vmatprep.subr.bf16.mxu0 0
  %356 = vmatpush1.bf16.msra.mxu0 0
  %357 = vmatprep.subr.bf16.mxu0 0
  %358 = vmatpush1.bf16.msra.mxu0 0
  %359 = vmatprep.subr.bf16.mxu0 0
  %360 = vmatpush1.bf16.msra.mxu0 0
  %361 = vmatprep.subr.bf16.mxu0 0
  %362 = vmatpush1.bf16.msra.mxu0 0
  %363 = vmatprep.subr.bf16.mxu0 0
  %364 = vmatpush1.bf16.msra.mxu0 0
  %365 = vmatprep.subr.bf16.mxu0 0
  %366 = vmatpush1.bf16.msra.mxu0 0
  %367 = vmatprep.subr.bf16.mxu0 0
  %368 = vmatpush1.bf16.msra.mxu0 0
  %369 = vmatprep.subr.bf16.mxu0 0
  %370 = vmatpush1.bf16.msra.mxu0 0
  %371 = vmatprep.subr.bf16.mxu0 0
  %372 = vmatpush1.bf16.msra.mxu0 0
  %373 = vmatprep.subr.bf16.mxu0 0
  %374 = vmatpush1.bf16.msra.mxu0 0
  %375 = vmatprep.mubr.bf16.mxu0 0
  %376 = vmatmul.mubr.bf16.gmra.mrb[0].mxu0 %v300
  %v377 = vpop.f32.mrb[0].mxu0
  %v378 = vadd.f32 %v69, %v377
  %v379 = vpop.f32.mrb[0].mxu0
  %v380 = vadd.f32 %v73, %v379
  %v381 = vpop.f32.mrb[0].mxu0
  %v382 = vpop.f32.mrb[0].mxu0
  %383 = vdwg.mxu0
  %384 = vmatprep.subr.bf16.mxu0 %v239
  %385 = vmatpush1.bf16.msra.mxu0 %v238
  %386 = vmatprep.subr.bf16.mxu0 %v255
  %387 = vmatpush1.bf16.msra.mxu0 %v254
  %388 = vmatprep.subr.bf16.mxu0 0
  %389 = vmatpush1.bf16.msra.mxu0 0
  %390 = vmatprep.subr.bf16.mxu0 0
  %391 = vmatpush1.bf16.msra.mxu0 0
  %392 = vmatprep.subr.bf16.mxu0 0
  %393 = vmatpush1.bf16.msra.mxu0 0
  %394 = vmatprep.subr.bf16.mxu0 0
  %395 = vmatpush1.bf16.msra.mxu0 0
  %396 = vmatprep.subr.bf16.mxu0 0
  %397 = vmatpush1.bf16.msra.mxu0 0
  %398 = vmatprep.subr.bf16.mxu0 0
  %399 = vmatpush1.bf16.msra.mxu0 0
  %400 = vmatprep.subr.bf16.mxu0 0
  %401 = vmatpush1.bf16.msra.mxu0 0
  %402 = vmatprep.subr.bf16.mxu0 0
  %403 = vmatpush1.bf16.msra.mxu0 0
  %404 = vmatprep.subr.bf16.mxu0 0
  %405 = vmatpush1.bf16.msra.mxu0 0
  %406 = vmatprep.subr.bf16.mxu0 0
  %407 = vmatpush1.bf16.msra.mxu0 0
  %408 = vmatprep.subr.bf16.mxu0 0
  %409 = vmatpush1.bf16.msra.mxu0 0
  %410 = vmatprep.subr.bf16.mxu0 0
  %411 = vmatpush1.bf16.msra.mxu0 0
  %412 = vmatprep.subr.bf16.mxu0 0
  %413 = vmatpush1.bf16.msra.mxu0 0
  %414 = vmatprep.subr.bf16.mxu0 0
  %415 = vmatpush1.bf16.msra.mxu0 0
  %416 = vmatprep.mubr.bf16.mxu0 0
  %417 = vmatmul.mubr.bf16.gmra.mrb[0].mxu0 %v300
  %v418 = vpop.f32.mrb[0].mxu0
  %v419 = vadd.f32 %v77, %v418
  %v420 = vpop.f32.mrb[0].mxu0
  %v421 = vadd.f32 %v81, %v420
  %v422 = vpop.f32.mrb[0].mxu0
  %v423 = vpop.f32.mrb[0].mxu0
  %424 = vdwg.mxu0
  %425 = vmatprep.subr.bf16.mxu0 %v241
  %426 = vmatpush1.bf16.msra.mxu0 %v240
  %427 = vmatprep.subr.bf16.mxu0 %v257
  %428 = vmatpush1.bf16.msra.mxu0 %v256
  %429 = vmatprep.subr.bf16.mxu0 0
  %430 = vmatpush1.bf16.msra.mxu0 0
  %431 = vmatprep.subr.bf16.mxu0 0
  %432 = vmatpush1.bf16.msra.mxu0 0
  %433 = vmatprep.subr.bf16.mxu0 0
  %434 = vmatpush1.bf16.msra.mxu0 0
  %435 = vmatprep.subr.bf16.mxu0 0
  %436 = vmatpush1.bf16.msra.mxu0 0
  %437 = vmatprep.subr.bf16.mxu0 0
  %438 = vmatpush1.bf16.msra.mxu0 0
  %439 = vmatprep.subr.bf16.mxu0 0
  %440 = vmatpush1.bf16.msra.mxu0 0
  %441 = vmatprep.subr.bf16.mxu0 0
  %442 = vmatpush1.bf16.msra.mxu0 0
  %443 = vmatprep.subr.bf16.mxu0 0
  %444 = vmatpush1.bf16.msra.mxu0 0
  %445 = vmatprep.subr.bf16.mxu0 0
  %446 = vmatpush1.bf16.msra.mxu0 0
  %447 = vmatprep.subr.bf16.mxu0 0
  %448 = vmatpush1.bf16.msra.mxu0 0
  %449 = vmatprep.subr.bf16.mxu0 0
  %450 = vmatpush1.bf16.msra.mxu0 0
  %451 = vmatprep.subr.bf16.mxu0 0
  %452 = vmatpush1.bf16.msra.mxu0 0
  %453 = vmatprep.subr.bf16.mxu0 0
  %454 = vmatpush1.bf16.msra.mxu0 0
  %455 = vmatprep.subr.bf16.mxu0 0
  %456 = vmatpush1.bf16.msra.mxu0 0
  %457 = vmatprep.mubr.bf16.mxu0 0
  %458 = vmatmul.mubr.bf16.gmra.mrb[0].mxu0 %v300
  %v459 = vpop.f32.mrb[0].mxu0
  %v460 = vadd.f32 %v85, %v459
  %v461 = vpop.f32.mrb[0].mxu0
  %v462 = vadd.f32 %v89, %v461
  %v463 = vpop.f32.mrb[0].mxu0
  %v464 = vpop.f32.mrb[0].mxu0
  %465 = vdwg.mxu0
  %466 = vmatprep.subr.bf16.mxu0 %v243
  %467 = vmatpush1.bf16.msra.mxu0 %v242
  %468 = vmatprep.subr.bf16.mxu0 %v259
  %469 = vmatpush1.bf16.msra.mxu0 %v258
  %470 = vmatprep.subr.bf16.mxu0 0
  %471 = vmatpush1.bf16.msra.mxu0 0
  %472 = vmatprep.subr.bf16.mxu0 0
  %473 = vmatpush1.bf16.msra.mxu0 0
  %474 = vmatprep.subr.bf16.mxu0 0
  %475 = vmatpush1.bf16.msra.mxu0 0
  %476 = vmatprep.subr.bf16.mxu0 0
  %477 = vmatpush1.bf16.msra.mxu0 0
  %478 = vmatprep.subr.bf16.mxu0 0
  %479 = vmatpush1.bf16.msra.mxu0 0
  %480 = vmatprep.subr.bf16.mxu0 0
  %481 = vmatpush1.bf16.msra.mxu0 0
  %482 = vmatprep.subr.bf16.mxu0 0
  %483 = vmatpush1.bf16.msra.mxu0 0
  %484 = vmatprep.subr.bf16.mxu0 0
  %485 = vmatpush1.bf16.msra.mxu0 0
  %486 = vmatprep.subr.bf16.mxu0 0
  %487 = vmatpush1.bf16.msra.mxu0 0
  %488 = vmatprep.subr.bf16.mxu0 0
  %489 = vmatpush1.bf16.msra.mxu0 0
  %490 = vmatprep.subr.bf16.mxu0 0
  %491 = vmatpush1.bf16.msra.mxu0 0
  %492 = vmatprep.subr.bf16.mxu0 0
  %493 = vmatpush1.bf16.msra.mxu0 0
  %494 = vmatprep.subr.bf16.mxu0 0
  %495 = vmatpush1.bf16.msra.mxu0 0
  %496 = vmatprep.subr.bf16.mxu0 0
  %497 = vmatpush1.bf16.msra.mxu0 0
  %498 = vmatprep.mubr.bf16.mxu0 0
  %499 = vmatmul.mubr.bf16.gmra.mrb[0].mxu0 %v300
  %v500 = vpop.f32.mrb[0].mxu0
  %v501 = vadd.f32 %v93, %v500
  %v502 = vpop.f32.mrb[0].mxu0
  %v503 = vadd.f32 %v97, %v502
  %v504 = vpop.f32.mrb[0].mxu0
  %v505 = vpop.f32.mrb[0].mxu0
  %506 = vdwg.mxu0
  %507 = vmatprep.subr.bf16.mxu0 %v245
  %508 = vmatpush1.bf16.msra.mxu0 %v244
  %509 = vmatprep.subr.bf16.mxu0 %v261
  %510 = vmatpush1.bf16.msra.mxu0 %v260
  %511 = vmatprep.subr.bf16.mxu0 0
  %512 = vmatpush1.bf16.msra.mxu0 0
  %513 = vmatprep.subr.bf16.mxu0 0
  %514 = vmatpush1.bf16.msra.mxu0 0
  %515 = vmatprep.subr.bf16.mxu0 0
  %516 = vmatpush1.bf16.msra.mxu0 0
  %517 = vmatprep.subr.bf16.mxu0 0
  %518 = vmatpush1.bf16.msra.mxu0 0
  %519 = vmatprep.subr.bf16.mxu0 0
  %520 = vmatpush1.bf16.msra.mxu0 0
  %521 = vmatprep.subr.bf16.mxu0 0
  %522 = vmatpush1.bf16.msra.mxu0 0
  %523 = vmatprep.subr.bf16.mxu0 0
  %524 = vmatpush1.bf16.msra.mxu0 0
  %525 = vmatprep.subr.bf16.mxu0 0
  %526 = vmatpush1.bf16.msra.mxu0 0
  %527 = vmatprep.subr.bf16.mxu0 0
  %528 = vmatpush1.bf16.msra.mxu0 0
  %529 = vmatprep.subr.bf16.mxu0 0
  %530 = vmatpush1.bf16.msra.mxu0 0
  %531 = vmatprep.subr.bf16.mxu0 0
  %532 = vmatpush1.bf16.msra.mxu0 0
  %533 = vmatprep.subr.bf16.mxu0 0
  %534 = vmatpush1.bf16.msra.mxu0 0
  %535 = vmatprep.subr.bf16.mxu0 0
  %536 = vmatpush1.bf16.msra.mxu0 0
  %537 = vmatprep.subr.bf16.mxu0 0
  %538 = vmatpush1.bf16.msra.mxu0 0
  %539 = vmatprep.mubr.bf16.mxu0 0
  %540 = vmatmul.mubr.bf16.gmra.mrb[0].mxu0 %v300
  %v541 = vpop.f32.mrb[0].mxu0
  %v542 = vadd.f32 %v101, %v541
  %v543 = vpop.f32.mrb[0].mxu0
  %v544 = vadd.f32 %v105, %v543
  %v545 = vpop.f32.mrb[0].mxu0
  %v546 = vpop.f32.mrb[0].mxu0
  %547 = vdwg.mxu0
  %548 = vmatprep.subr.bf16.mxu0 %v247
  %549 = vmatpush1.bf16.msra.mxu0 %v246
  %550 = vmatprep.subr.bf16.mxu0 %v263
  %551 = vmatpush1.bf16.msra.mxu0 %v262
  %552 = vmatprep.subr.bf16.mxu0 0
  %553 = vmatpush1.bf16.msra.mxu0 0
  %554 = vmatprep.subr.bf16.mxu0 0
  %555 = vmatpush1.bf16.msra.mxu0 0
  %556 = vmatprep.subr.bf16.mxu0 0
  %557 = vmatpush1.bf16.msra.mxu0 0
  %558 = vmatprep.subr.bf16.mxu0 0
  %559 = vmatpush1.bf16.msra.mxu0 0
  %560 = vmatprep.subr.bf16.mxu0 0
  %561 = vmatpush1.bf16.msra.mxu0 0
  %562 = vmatprep.subr.bf16.mxu0 0
  %563 = vmatpush1.bf16.msra.mxu0 0
  %564 = vmatprep.subr.bf16.mxu0 0
  %565 = vmatpush1.bf16.msra.mxu0 0
  %566 = vmatprep.subr.bf16.mxu0 0
  %567 = vmatpush1.bf16.msra.mxu0 0
  %568 = vmatprep.subr.bf16.mxu0 0
  %569 = vmatpush1.bf16.msra.mxu0 0
  %570 = vmatprep.subr.bf16.mxu0 0
  %571 = vmatpush1.bf16.msra.mxu0 0
  %572 = vmatprep.subr.bf16.mxu0 0
  %573 = vmatpush1.bf16.msra.mxu0 0
  %574 = vmatprep.subr.bf16.mxu0 0
  %575 = vmatpush1.bf16.msra.mxu0 0
  %576 = vmatprep.subr.bf16.mxu0 0
  %577 = vmatpush1.bf16.msra.mxu0 0
  %578 = vmatprep.subr.bf16.mxu0 0
  %579 = vmatpush1.bf16.msra.mxu0 0
  %580 = vmatprep.mubr.bf16.mxu0 0
  %581 = vmatmul.mubr.bf16.gmra.mrb[0].mxu0 %v300
  %v582 = vpop.f32.mrb[0].mxu0
  %v583 = vadd.f32 %v109, %v582
  %v584 = vpop.f32.mrb[0].mxu0
  %v585 = vadd.f32 %v113, %v584
  %v586 = vpop.f32.mrb[0].mxu0
  %v587 = vpop.f32.mrb[0].mxu0
  %588 = vdwg.mxu0
  %589 = vmatprep.subr.bf16.mxu0 %v249
  %590 = vmatpush1.bf16.msra.mxu0 %v248
  %591 = vmatprep.subr.bf16.mxu0 %v265
  %592 = vmatpush1.bf16.msra.mxu0 %v264
  %593 = vmatprep.subr.bf16.mxu0 0
  %594 = vmatpush1.bf16.msra.mxu0 0
  %595 = vmatprep.subr.bf16.mxu0 0
  %596 = vmatpush1.bf16.msra.mxu0 0
  %597 = vmatprep.subr.bf16.mxu0 0
  %598 = vmatpush1.bf16.msra.mxu0 0
  %599 = vmatprep.subr.bf16.mxu0 0
  %600 = vmatpush1.bf16.msra.mxu0 0
  %601 = vmatprep.subr.bf16.mxu0 0
  %602 = vmatpush1.bf16.msra.mxu0 0
  %603 = vmatprep.subr.bf16.mxu0 0
  %604 = vmatpush1.bf16.msra.mxu0 0
  %605 = vmatprep.subr.bf16.mxu0 0
  %606 = vmatpush1.bf16.msra.mxu0 0
  %607 = vmatprep.subr.bf16.mxu0 0
  %608 = vmatpush1.bf16.msra.mxu0 0
  %609 = vmatprep.subr.bf16.mxu0 0
  %610 = vmatpush1.bf16.msra.mxu0 0
  %611 = vmatprep.subr.bf16.mxu0 0
  %612 = vmatpush1.bf16.msra.mxu0 0
  %613 = vmatprep.subr.bf16.mxu0 0
  %614 = vmatpush1.bf16.msra.mxu0 0
  %615 = vmatprep.subr.bf16.mxu0 0
  %616 = vmatpush1.bf16.msra.mxu0 0
  %617 = vmatprep.subr.bf16.mxu0 0
  %618 = vmatpush1.bf16.msra.mxu0 0
  %619 = vmatprep.subr.bf16.mxu0 0
  %620 = vmatpush1.bf16.msra.mxu0 0
  %621 = vmatprep.mubr.bf16.mxu0 0
  %622 = vmatmul.mubr.bf16.gmra.mrb[0].mxu0 %v300
  %v623 = vpop.f32.mrb[0].mxu0
  %v624 = vadd.f32 %v117, %v623
  %v625 = vpop.f32.mrb[0].mxu0
  %v626 = vadd.f32 %v121, %v625
  %v627 = vpop.f32.mrb[0].mxu0
  %v628 = vpop.f32.mrb[0].mxu0
  %629 = vdwg.mxu0
  %vm630 = vcmask 1041408
  %v631 = vsel %vm630, %v337, 0.0
  %v632 = vrot.slane %v631, 4
  %v633 = vadd.f32 %v631, %v632
  %v634 = vrot.slane %v633, 2
  %v635 = vadd.f32 %v633, %v634
  %v636 = vrot.slane %v635, 1
  %v637 = vadd.f32 %v635, %v636
  %v638 = vsel %vm630, %v339, 0.0
  %v639 = vrot.slane %v638, 4
  %v640 = vadd.f32 %v638, %v639
  %v641 = vrot.slane %v640, 2
  %v642 = vadd.f32 %v640, %v641
  %v643 = vrot.slane %v642, 1
  %v644 = vadd.f32 %v642, %v643
  %v645 = vsel %vm630, %v378, 0.0
  %v646 = vrot.slane %v645, 4
  %v647 = vadd.f32 %v645, %v646
  %v648 = vrot.slane %v647, 2
  %v649 = vadd.f32 %v647, %v648
  %v650 = vrot.slane %v649, 1
  %v651 = vadd.f32 %v649, %v650
  %v652 = vsel %vm630, %v380, 0.0
  %v653 = vrot.slane %v652, 4
  %v654 = vadd.f32 %v652, %v653
  %v655 = vrot.slane %v654, 2
  %v656 = vadd.f32 %v654, %v655
  %v657 = vrot.slane %v656, 1
  %v658 = vadd.f32 %v656, %v657
  %v659 = vsel %vm630, %v419, 0.0
  %v660 = vrot.slane %v659, 4
  %v661 = vadd.f32 %v659, %v660
  %v662 = vrot.slane %v661, 2
  %v663 = vadd.f32 %v661, %v662
  %v664 = vrot.slane %v663, 1
  %v665 = vadd.f32 %v663, %v664
  %v666 = vsel %vm630, %v421, 0.0
  %v667 = vrot.slane %v666, 4
  %v668 = vadd.f32 %v666, %v667
  %v669 = vrot.slane %v668, 2
  %v670 = vadd.f32 %v668, %v669
  %v671 = vrot.slane %v670, 1
  %v672 = vadd.f32 %v670, %v671
  %v673 = vsel %vm630, %v460, 0.0
  %v674 = vrot.slane %v673, 4
  %v675 = vadd.f32 %v673, %v674
  %v676 = vrot.slane %v675, 2
  %v677 = vadd.f32 %v675, %v676
  %v678 = vrot.slane %v677, 1
  %v679 = vadd.f32 %v677, %v678
  %v680 = vsel %vm630, %v462, 0.0
  %v681 = vrot.slane %v680, 4
  %v682 = vadd.f32 %v680, %v681
  %v683 = vrot.slane %v682, 2
  %v684 = vadd.f32 %v682, %v683
  %v685 = vrot.slane %v684, 1
  %v686 = vadd.f32 %v684, %v685
  %v687 = vsel %vm630, %v501, 0.0
  %v688 = vrot.slane %v687, 4
  %v689 = vadd.f32 %v687, %v688
  %v690 = vrot.slane %v689, 2
  %v691 = vadd.f32 %v689, %v690
  %v692 = vrot.slane %v691, 1
  %v693 = vadd.f32 %v691, %v692
  %v694 = vsel %vm630, %v503, 0.0
  %v695 = vrot.slane %v694, 4
  %v696 = vadd.f32 %v694, %v695
  %v697 = vrot.slane %v696, 2
  %v698 = vadd.f32 %v696, %v697
  %v699 = vrot.slane %v698, 1
  %v700 = vadd.f32 %v698, %v699
  %v701 = vsel %vm630, %v542, 0.0
  %v702 = vrot.slane %v701, 4
  %v703 = vadd.f32 %v701, %v702
  %v704 = vrot.slane %v703, 2
  %v705 = vadd.f32 %v703, %v704
  %v706 = vrot.slane %v705, 1
  %v707 = vadd.f32 %v705, %v706
  %v708 = vsel %vm630, %v544, 0.0
  %v709 = vrot.slane %v708, 4
  %v710 = vadd.f32 %v708, %v709
  %v711 = vrot.slane %v710, 2
  %v712 = vadd.f32 %v710, %v711
  %v713 = vrot.slane %v712, 1
  %v714 = vadd.f32 %v712, %v713
  %v715 = vsel %vm630, %v583, 0.0
  %v716 = vrot.slane %v715, 4
  %v717 = vadd.f32 %v715, %v716
  %v718 = vrot.slane %v717, 2
  %v719 = vadd.f32 %v717, %v718
  %v720 = vrot.slane %v719, 1
  %v721 = vadd.f32 %v719, %v720
  %v722 = vsel %vm630, %v585, 0.0
  %v723 = vrot.slane %v722, 4
  %v724 = vadd.f32 %v722, %v723
  %v725 = vrot.slane %v724, 2
  %v726 = vadd.f32 %v724, %v725
  %v727 = vrot.slane %v726, 1
  %v728 = vadd.f32 %v726, %v727
  %v729 = vsel %vm630, %v624, 0.0
  %v730 = vrot.slane %v729, 4
  %v731 = vadd.f32 %v729, %v730
  %v732 = vrot.slane %v731, 2
  %v733 = vadd.f32 %v731, %v732
  %v734 = vrot.slane %v733, 1
  %v735 = vadd.f32 %v733, %v734
  %v736 = vsel %vm630, %v626, 0.0
  %v737 = vrot.slane %v736, 4
  %v738 = vadd.f32 %v736, %v737
  %v739 = vrot.slane %v738, 2
  %v740 = vadd.f32 %v738, %v739
  %v741 = vrot.slane %v740, 1
  %v742 = vadd.f32 %v740, %v741
  %v743 = vmul.f32 %v337, %v337
  %v744 = vmul.f32 %v339, %v339
  %v745 = vmul.f32 %v378, %v378
  %v746 = vmul.f32 %v380, %v380
  %v747 = vmul.f32 %v419, %v419
  %v748 = vmul.f32 %v421, %v421
  %v749 = vmul.f32 %v460, %v460
  %v750 = vmul.f32 %v462, %v462
  %v751 = vmul.f32 %v501, %v501
  %v752 = vmul.f32 %v503, %v503
  %v753 = vmul.f32 %v542, %v542
  %v754 = vmul.f32 %v544, %v544
  %v755 = vmul.f32 %v583, %v583
  %v756 = vmul.f32 %v585, %v585
  %v757 = vmul.f32 %v624, %v624
  %v758 = vmul.f32 %v626, %v626
  %v759 = vsel %vm630, %v743, 0.0
  %v760 = vrot.slane %v759, 4
  %v761 = vadd.f32 %v759, %v760
  %v762 = vrot.slane %v761, 2
  %v763 = vadd.f32 %v761, %v762
  %v764 = vrot.slane %v763, 1
  %v765 = vadd.f32 %v763, %v764
  %v766 = vsel %vm630, %v744, 0.0
  %v767 = vrot.slane %v766, 4
  %v768 = vadd.f32 %v766, %v767
  %v769 = vrot.slane %v768, 2
  %v770 = vadd.f32 %v768, %v769
  %v771 = vrot.slane %v770, 1
  %v772 = vadd.f32 %v770, %v771
  %v773 = vsel %vm630, %v745, 0.0
  %v774 = vrot.slane %v773, 4
  %v775 = vadd.f32 %v773, %v774
  %v776 = vrot.slane %v775, 2
  %v777 = vadd.f32 %v775, %v776
  %v778 = vrot.slane %v777, 1
  %v779 = vadd.f32 %v777, %v778
  %v780 = vsel %vm630, %v746, 0.0
  %v781 = vrot.slane %v780, 4
  %v782 = vadd.f32 %v780, %v781
  %v783 = vrot.slane %v782, 2
  %v784 = vadd.f32 %v782, %v783
  %v785 = vrot.slane %v784, 1
  %v786 = vadd.f32 %v784, %v785
  %v787 = vsel %vm630, %v747, 0.0
  %v788 = vrot.slane %v787, 4
  %v789 = vadd.f32 %v787, %v788
  %v790 = vrot.slane %v789, 2
  %v791 = vadd.f32 %v789, %v790
  %v792 = vrot.slane %v791, 1
  %v793 = vadd.f32 %v791, %v792
  %v794 = vsel %vm630, %v748, 0.0
  %v795 = vrot.slane %v794, 4
  %v796 = vadd.f32 %v794, %v795
  %v797 = vrot.slane %v796, 2
  %v798 = vadd.f32 %v796, %v797
  %v799 = vrot.slane %v798, 1
  %v800 = vadd.f32 %v798, %v799
  %v801 = vsel %vm630, %v749, 0.0
  %v802 = vrot.slane %v801, 4
  %v803 = vadd.f32 %v801, %v802
  %v804 = vrot.slane %v803, 2
  %v805 = vadd.f32 %v803, %v804
  %v806 = vrot.slane %v805, 1
  %v807 = vadd.f32 %v805, %v806
  %v808 = vsel %vm630, %v750, 0.0
  %v809 = vrot.slane %v808, 4
  %v810 = vadd.f32 %v808, %v809
  %v811 = vrot.slane %v810, 2
  %v812 = vadd.f32 %v810, %v811
  %v813 = vrot.slane %v812, 1
  %v814 = vadd.f32 %v812, %v813
  %v815 = vsel %vm630, %v751, 0.0
  %v816 = vrot.slane %v815, 4
  %v817 = vadd.f32 %v815, %v816
  %v818 = vrot.slane %v817, 2
  %v819 = vadd.f32 %v817, %v818
  %v820 = vrot.slane %v819, 1
  %v821 = vadd.f32 %v819, %v820
  %v822 = vsel %vm630, %v752, 0.0
  %v823 = vrot.slane %v822, 4
  %v824 = vadd.f32 %v822, %v823
  %v825 = vrot.slane %v824, 2
  %v826 = vadd.f32 %v824, %v825
  %v827 = vrot.slane %v826, 1
  %v828 = vadd.f32 %v826, %v827
  %v829 = vsel %vm630, %v753, 0.0
  %v830 = vrot.slane %v829, 4
  %v831 = vadd.f32 %v829, %v830
  %v832 = vrot.slane %v831, 2
  %v833 = vadd.f32 %v831, %v832
  %v834 = vrot.slane %v833, 1
  %v835 = vadd.f32 %v833, %v834
  %v836 = vsel %vm630, %v754, 0.0
  %v837 = vrot.slane %v836, 4
  %v838 = vadd.f32 %v836, %v837
  %v839 = vrot.slane %v838, 2
  %v840 = vadd.f32 %v838, %v839
  %v841 = vrot.slane %v840, 1
  %v842 = vadd.f32 %v840, %v841
  %v843 = vsel %vm630, %v755, 0.0
  %v844 = vrot.slane %v843, 4
  %v845 = vadd.f32 %v843, %v844
  %v846 = vrot.slane %v845, 2
  %v847 = vadd.f32 %v845, %v846
  %v848 = vrot.slane %v847, 1
  %v849 = vadd.f32 %v847, %v848
  %v850 = vsel %vm630, %v756, 0.0
  %v851 = vrot.slane %v850, 4
  %v852 = vadd.f32 %v850, %v851
  %v853 = vrot.slane %v852, 2
  %v854 = vadd.f32 %v852, %v853
  %v855 = vrot.slane %v854, 1
  %v856 = vadd.f32 %v854, %v855
  %v857 = vsel %vm630, %v757, 0.0
  %v858 = vrot.slane %v857, 4
  %v859 = vadd.f32 %v857, %v858
  %v860 = vrot.slane %v859, 2
  %v861 = vadd.f32 %v859, %v860
  %v862 = vrot.slane %v861, 1
  %v863 = vadd.f32 %v861, %v862
  %v864 = vsel %vm630, %v758, 0.0
  %v865 = vrot.slane %v864, 4
  %v866 = vadd.f32 %v864, %v865
  %v867 = vrot.slane %v866, 2
  %v868 = vadd.f32 %v866, %v867
  %v869 = vrot.slane %v868, 1
  %v870 = vadd.f32 %v868, %v869
  %v871 = vadd.f32 %v637, %v644
  %v872 = vadd.f32 %v765, %v772
  %v873 = vadd.f32 %v871, %v651
  %v874 = vadd.f32 %v872, %v779
  %v875 = vadd.f32 %v873, %v658
  %v876 = vadd.f32 %v874, %v786
  %v877 = vadd.f32 %v875, %v665
  %v878 = vadd.f32 %v876, %v793
  %v879 = vadd.f32 %v877, %v672
  %v880 = vadd.f32 %v878, %v800
  %v881 = vadd.f32 %v879, %v679
  %v882 = vadd.f32 %v880, %v807
  %v883 = vadd.f32 %v881, %v686
  %v884 = vadd.f32 %v882, %v814
  %v885 = vadd.f32 %v883, %v693
  %v886 = vadd.f32 %v884, %v821
  %v887 = vadd.f32 %v885, %v700
  %v888 = vadd.f32 %v886, %v828
  %v889 = vadd.f32 %v887, %v707
  %v890 = vadd.f32 %v888, %v835
  %v891 = vadd.f32 %v889, %v714
  %v892 = vadd.f32 %v890, %v842
  %v893 = vadd.f32 %v891, %v721
  %v894 = vadd.f32 %v892, %v849
  %v895 = vadd.f32 %v893, %v728
  %v896 = vadd.f32 %v894, %v856
  %v897 = vadd.f32 %v895, %v735
  %v898 = vadd.f32 %v896, %v863
  %v899 = vadd.f32 %v897, %v742
  %v900 = vadd.f32 %v898, %v870
  %v901 = vmul.f32 %v899, 0.03125
  %v902 = vmul.f32 %v900, 0.03125
  %v903 = vmul.f32 %v901, %v901
  %v904 = vsub.f32 %v902, %v903
  %v905 = vmax.f32 %v904, 0.0
  %v906 = vadd.f32 %v905, 1e-05
  %v907 = vrsqrt.pop %v906
  %v908 = vld [vmem:[%s3] sm:$0x1]
  %v909 = vmul.f32 %v908, %v907
  %v910 = vld [vmem:[%s4] sm:$0x1]
  %v911 = vmul.f32 %v901, %v909
  %v912 = vsub.f32 %v910, %v911
  %v913 = vlaneseq
  %v914 = vshrl.u32 %v913, 7
  %v915 = vsub.s32 0, %v914
  %v916 = vrot.slane %v909, %v915
  %v917 = vmul.f32 %v337, %v916
  %v918 = vmul.f32 %v339, %v916
  %v919 = vmul.f32 %v378, %v916
  %v920 = vmul.f32 %v380, %v916
  %v921 = vmul.f32 %v419, %v916
  %v922 = vmul.f32 %v421, %v916
  %v923 = vmul.f32 %v460, %v916
  %v924 = vmul.f32 %v462, %v916
  %v925 = vmul.f32 %v501, %v916
  %v926 = vmul.f32 %v503, %v916
  %v927 = vmul.f32 %v542, %v916
  %v928 = vmul.f32 %v544, %v916
  %v929 = vmul.f32 %v583, %v916
  %v930 = vmul.f32 %v585, %v916
  %v931 = vmul.f32 %v624, %v916
  %v932 = vmul.f32 %v626, %v916
  %v933 = vlaneseq
  %v934 = vshrl.u32 %v933, 7
  %v935 = vsub.s32 0, %v934
  %v936 = vrot.slane %v912, %v935
  %v937 = vadd.f32 %v917, %v936
  %v938 = vadd.f32 %v918, %v936
  %v939 = vadd.f32 %v919, %v936
  %v940 = vadd.f32 %v920, %v936
  %v941 = vadd.f32 %v921, %v936
  %v942 = vadd.f32 %v922, %v936
  %v943 = vadd.f32 %v923, %v936
  %v944 = vadd.f32 %v924, %v936
  %v945 = vadd.f32 %v925, %v936
  %v946 = vadd.f32 %v926, %v936
  %v947 = vadd.f32 %v927, %v936
  %v948 = vadd.f32 %v928, %v936
  %v949 = vadd.f32 %v929, %v936
  %v950 = vadd.f32 %v930, %v936
  %v951 = vadd.f32 %v931, %v936
  %v952 = vadd.f32 %v932, %v936
  %v953 = vmax.f32 %v937, 0.0
  %v954 = vmax.f32 %v938, 0.0
  %v955 = vmax.f32 %v939, 0.0
  %v956 = vmax.f32 %v940, 0.0
  %v957 = vmax.f32 %v941, 0.0
  %v958 = vmax.f32 %v942, 0.0
  %v959 = vmax.f32 %v943, 0.0
  %v960 = vmax.f32 %v944, 0.0
  %v961 = vmax.f32 %v945, 0.0
  %v962 = vmax.f32 %v946, 0.0
  %v963 = vmax.f32 %v947, 0.0
  %v964 = vmax.f32 %v948, 0.0
  %v965 = vmax.f32 %v949, 0.0
  %v966 = vmax.f32 %v950, 0.0
  %v967 = vmax.f32 %v951, 0.0
  %v968 = vmax.f32 %v952, 0.0
  %v985 = vcombine.low %v953, %v954
  %v986 = vcombine.low %v955, %v956
  %v988 = vunpack.c.l.s4 1983009808
  %v989 = vunpack.c.0.s8 %v988
  %v990 = vlaneseq
  %v991 = vshrl.u32 %v990, 7
  %v992 = vsub.s32 %v989, %v991
  %v993 = vrot.slane %v985, %v992
  %v995 = vunpack.c.l.s4 1983009808
  %v996 = vunpack.c.0.s8 %v995
  %v997 = vlaneseq
  %v998 = vshrl.u32 %v997, 7
  %v999 = vsub.s32 %v996, %v998
  %v1000 = vrot.slane %v986, %v999
  %v1001 = vcombine.low %v993, %v1000
  %v1002 = vcombine.low %v957, %v958
  %v1003 = vcombine.low %v959, %v960
  %v1005 = vunpack.c.l.s4 1983009808
  %v1006 = vunpack.c.0.s8 %v1005
  %v1007 = vlaneseq
  %v1008 = vshrl.u32 %v1007, 7
  %v1009 = vsub.s32 %v1006, %v1008
  %v1010 = vrot.slane %v1002, %v1009
  %v1012 = vunpack.c.l.s4 1983009808
  %v1013 = vunpack.c.0.s8 %v1012
  %v1014 = vlaneseq
  %v1015 = vshrl.u32 %v1014, 7
  %v1016 = vsub.s32 %v1013, %v1015
  %v1017 = vrot.slane %v1003, %v1016
  %v1018 = vcombine.low %v1010, %v1017
  %v1019 = vcombine.low %v961, %v962
  %v1020 = vcombine.low %v963, %v964
  %v1022 = vunpack.c.l.s4 1983009808
  %v1023 = vunpack.c.0.s8 %v1022
  %v1024 = vlaneseq
  %v1025 = vshrl.u32 %v1024, 7
  %v1026 = vsub.s32 %v1023, %v1025
  %v1027 = vrot.slane %v1019, %v1026
  %v1029 = vunpack.c.l.s4 1983009808
  %v1030 = vunpack.c.0.s8 %v1029
  %v1031 = vlaneseq
  %v1032 = vshrl.u32 %v1031, 7
  %v1033 = vsub.s32 %v1030, %v1032
  %v1034 = vrot.slane %v1020, %v1033
  %v1035 = vcombine.low %v1027, %v1034
  %v1036 = vcombine.low %v965, %v966
  %v1037 = vcombine.low %v967, %v968
  %v1039 = vunpack.c.l.s4 1983009808
  %v1040 = vunpack.c.0.s8 %v1039
  %v1041 = vlaneseq
  %v1042 = vshrl.u32 %v1041, 7
  %v1043 = vsub.s32 %v1040, %v1042
  %v1044 = vrot.slane %v1036, %v1043
  %v1046 = vunpack.c.l.s4 1983009808
  %v1047 = vunpack.c.0.s8 %v1046
  %v1048 = vlaneseq
  %v1049 = vshrl.u32 %v1048, 7
  %v1050 = vsub.s32 %v1047, %v1049
  %v1051 = vrot.slane %v1037, %v1050
  %v1052 = vcombine.low %v1044, %v1051
  %1057 = vst [vmem:[%s5] sm:$0xff] %v1001
  %1058 = vst [vmem:[%s5 + $0x8] sm:$0xff] %v1018
  %1059 = vst [vmem:[%s5 + $0x10] sm:$0xff] %v1035
  %1060 = vst [vmem:[%s5 + $0x18] sm:$0xff] %v1052
  // Predicated region
  $region22: #{_lambda_.4} parent=0 // pred_check
    _
  $region23: #{_lambda_.4} parent=0 // pred_check_branch
    %1062 = sbr.rel (0) target = $region25
  $region24: #{_lambda_.4} parent=0 // pred_region
    _
  $region25: #{_lambda_.4} parent=0 // pred_fallthru
    _
  // Predicated region
  $region26: #{_lambda_.4} parent=0 // pred_check
    _
  $region27: #{_lambda_.4} parent=0 // pred_check_branch
    %1064 = sbr.rel (0) target = $region29
  $region28: #{_lambda_.4} parent=0 // pred_region
    _
  $region29: #{_lambda_.4} parent=0 // pred_fallthru
    _

// kernel: _lambda_.5
$region0: #{_lambda_.5}
  #allocation0 [shape = 'u32[]', space=smem, size = 0x4, offset = 0x4, fixed_abs, tag = 'smem constant byte address 0x4 - core index']
  #allocation1 [shape = 'u32[144,128]{1,0:T(1,128)}', space=vmem, size = 0x12000, scoped, tag = 'internal scratch']
  %s0 = inlined_call_operand.vmem [shape: bf16[32,576], index: 0, kind: input, shape index: {}]
  %s1 = inlined_call_operand.vmem [shape: bf16[576,512], index: 1, kind: input, shape index: {}]
  %s2 = inlined_call_operand.vmem [shape: f32[1,512], index: 2, kind: input, shape index: {}]
  %s3 = inlined_call_operand.vmem [shape: f32[1,128], index: 3, kind: input, shape index: {}]
  %s4 = inlined_call_operand.vmem [shape: f32[1,128], index: 4, kind: input, shape index: {}]
  %s5 = inlined_call_operand.vmem [shape: f32[32,512], index: 5, kind: output, shape index: {}]
  %s6 = sld [smem:[#allocation0]]
  $region30: #{_lambda_.5} parent=0
    _
  %s8 = ssub.s32 1, %s6
  %s9 = scalar_select 0, %s8, %s6
  // Predicated region
  $region2: #{_lambda_.5} parent=0 // pred_check
    _
  $region3: #{_lambda_.5} parent=0 // pred_check_branch
    %11 = sbr.rel (0) target = $region5
  $region4: #{_lambda_.5} parent=0 // pred_region
    _
  $region5: #{_lambda_.5} parent=0 // pred_fallthru
    _
  // Predicated region
  $region6: #{_lambda_.5} parent=0 // pred_check
    _
  $region7: #{_lambda_.5} parent=0 // pred_check_branch
    %13 = sbr.rel (0) target = $region9
  $region8: #{_lambda_.5} parent=0 // pred_region
    _
  $region9: #{_lambda_.5} parent=0 // pred_fallthru
    _
  // Predicated region
  $region10: #{_lambda_.5} parent=0 // pred_check
    _
  $region11: #{_lambda_.5} parent=0 // pred_check_branch
    %15 = sbr.rel (0) target = $region13
  $region12: #{_lambda_.5} parent=0 // pred_region
    _
  $region13: #{_lambda_.5} parent=0 // pred_fallthru
    _
  // Predicated region
  $region14: #{_lambda_.5} parent=0 // pred_check
    _
  $region15: #{_lambda_.5} parent=0 // pred_check_branch
    %17 = sbr.rel (0) target = $region17
  $region16: #{_lambda_.5} parent=0 // pred_region
    _
  $region17: #{_lambda_.5} parent=0 // pred_fallthru
    _
  // Predicated region
  $region18: #{_lambda_.5} parent=0 // pred_check
    _
  $region19: #{_lambda_.5} parent=0 // pred_check_branch
    %19 = sbr.rel (0) target = $region21
  $region20: #{_lambda_.5} parent=0 // pred_region
    _
  $region21: #{_lambda_.5} parent=0 // pred_fallthru
    _
  %v21 = vld [vmem:[%s0] sm:$0xff]
  %v22 = vld [vmem:[%s0 + $0x8] sm:$0xff]
  %v23 = vld [vmem:[%s0 + $0x10] sm:$0xf]
  %v24 = vld [vmem:[%s0 + $0x14] sm:$0xff]
  %v25 = vld [vmem:[%s0 + $0x1c] sm:$0xff]
  %v26 = vld [vmem:[%s0 + $0x24] sm:$0xf]
  %v27 = vld [vmem:[%s0 + $0x28] sm:$0xff]
  %v28 = vld [vmem:[%s0 + $0x30] sm:$0xff]
  %v29 = vld [vmem:[%s0 + $0x38] sm:$0xf]
  %v30 = vld [vmem:[%s0 + $0x3c] sm:$0xff]
  %v31 = vld [vmem:[%s0 + $0x44] sm:$0xff]
  %v32 = vld [vmem:[%s0 + $0x4c] sm:$0xf]
  %v33 = vld [vmem:[%s1] sm:$0xff]
  %v34 = vld [vmem:[%s1 + $0x8] sm:$0xff]
  %v35 = vld [vmem:[%s1 + $0x10] sm:$0xff]
  %v36 = vld [vmem:[%s1 + $0x18] sm:$0xff]
  %v37 = vld [vmem:[%s1 + $0x20] sm:$0xff]
  %v38 = vld [vmem:[%s1 + $0x28] sm:$0xff]
  %v39 = vld [vmem:[%s1 + $0x30] sm:$0xff]
  %v40 = vld [vmem:[%s1 + $0x38] sm:$0xff]
  %v41 = vld [vmem:[%s1 + $0x40] sm:$0xff]
  %v42 = vld [vmem:[%s1 + $0x48] sm:$0xff]
  %v43 = vld [vmem:[%s1 + $0x50] sm:$0xff]
  %v44 = vld [vmem:[%s1 + $0x58] sm:$0xff]
  %v45 = vld [vmem:[%s1 + $0x60] sm:$0xff]
  %v46 = vld [vmem:[%s1 + $0x68] sm:$0xff]
  %v47 = vld [vmem:[%s1 + $0x70] sm:$0xff]
  %v48 = vld [vmem:[%s1 + $0x78] sm:$0xff]
  %v49 = vld [vmem:[%s1 + $0x80] sm:$0xff]
  %v50 = vld [vmem:[%s1 + $0x88] sm:$0xff]
  %v51 = vld [vmem:[%s1 + $0x90] sm:$0xff]
  %v52 = vld [vmem:[%s1 + $0x98] sm:$0xff]
  %v53 = vld [vmem:[%s1 + $0xa0] sm:$0xff]
  %v54 = vld [vmem:[%s1 + $0xa8] sm:$0xff]
  %v55 = vld [vmem:[%s1 + $0xb0] sm:$0xff]
  %v56 = vld [vmem:[%s1 + $0xb8] sm:$0xff]
  %v57 = vld [vmem:[%s1 + $0xc0] sm:$0xff]
  %v58 = vld [vmem:[%s1 + $0xc8] sm:$0xff]
  %v59 = vld [vmem:[%s1 + $0xd0] sm:$0xff]
  %v60 = vld [vmem:[%s1 + $0xd8] sm:$0xff]
  %v61 = vld [vmem:[%s1 + $0xe0] sm:$0xff]
  %v62 = vld [vmem:[%s1 + $0xe8] sm:$0xff]
  %v63 = vld [vmem:[%s1 + $0xf0] sm:$0xff]
  %v64 = vld [vmem:[%s1 + $0xf8] sm:$0xff]
  %v65 = vld [vmem:[%s1 + $0x100] sm:$0xff]
  %v66 = vld [vmem:[%s1 + $0x108] sm:$0xff]
  %v67 = vld [vmem:[%s1 + $0x110] sm:$0xff]
  %v68 = vld [vmem:[%s1 + $0x118] sm:$0xff]
  %v69 = vld [vmem:[%s1 + $0x120] sm:$0xff]
  %v70 = vld [vmem:[%s1 + $0x128] sm:$0xff]
  %v71 = vld [vmem:[%s1 + $0x130] sm:$0xff]
  %v72 = vld [vmem:[%s1 + $0x138] sm:$0xff]
  %v73 = vld [vmem:[%s1 + $0x140] sm:$0xff]
  %v74 = vld [vmem:[%s1 + $0x148] sm:$0xff]
  %v75 = vld [vmem:[%s1 + $0x150] sm:$0xff]
  %v76 = vld [vmem:[%s1 + $0x158] sm:$0xff]
  %v77 = vld [vmem:[%s1 + $0x160] sm:$0xff]
  %v78 = vld [vmem:[%s1 + $0x168] sm:$0xff]
  %v79 = vld [vmem:[%s1 + $0x170] sm:$0xff]
  %v80 = vld [vmem:[%s1 + $0x178] sm:$0xff]
  %v81 = vld [vmem:[%s1 + $0x180] sm:$0xff]
  %v82 = vld [vmem:[%s1 + $0x188] sm:$0xff]
  %v83 = vld [vmem:[%s1 + $0x190] sm:$0xff]
  %v84 = vld [vmem:[%s1 + $0x198] sm:$0xff]
  %v85 = vld [vmem:[%s1 + $0x1a0] sm:$0xff]
  %v86 = vld [vmem:[%s1 + $0x1a8] sm:$0xff]
  %v87 = vld [vmem:[%s1 + $0x1b0] sm:$0xff]
  %v88 = vld [vmem:[%s1 + $0x1b8] sm:$0xff]
  %v89 = vld [vmem:[%s1 + $0x1c0] sm:$0xff]
  %v90 = vld [vmem:[%s1 + $0x1c8] sm:$0xff]
  %v91 = vld [vmem:[%s1 + $0x1d0] sm:$0xff]
  %v92 = vld [vmem:[%s1 + $0x1d8] sm:$0xff]
  %v93 = vld [vmem:[%s1 + $0x1e0] sm:$0xff]
  %v94 = vld [vmem:[%s1 + $0x1e8] sm:$0xff]
  %v95 = vld [vmem:[%s1 + $0x1f0] sm:$0xff]
  %v96 = vld [vmem:[%s1 + $0x1f8] sm:$0xff]
  %v97 = vld [vmem:[%s1 + $0x200] sm:$0xff]
  %v98 = vld [vmem:[%s1 + $0x208] sm:$0xff]
  %v99 = vld [vmem:[%s1 + $0x210] sm:$0xff]
  %v100 = vld [vmem:[%s1 + $0x218] sm:$0xff]
  %v101 = vld [vmem:[%s1 + $0x220] sm:$0xff]
  %v102 = vld [vmem:[%s1 + $0x228] sm:$0xff]
  %v103 = vld [vmem:[%s1 + $0x230] sm:$0xff]
  %v104 = vld [vmem:[%s1 + $0x238] sm:$0xff]
  %v105 = vld [vmem:[%s1 + $0x240] sm:$0xff]
  %v106 = vld [vmem:[%s1 + $0x248] sm:$0xff]
  %v107 = vld [vmem:[%s1 + $0x250] sm:$0xff]
  %v108 = vld [vmem:[%s1 + $0x258] sm:$0xff]
  %v109 = vld [vmem:[%s1 + $0x260] sm:$0xff]
  %v110 = vld [vmem:[%s1 + $0x268] sm:$0xff]
  %v111 = vld [vmem:[%s1 + $0x270] sm:$0xff]
  %v112 = vld [vmem:[%s1 + $0x278] sm:$0xff]
  %v113 = vld [vmem:[%s1 + $0x280] sm:$0xff]
  %v114 = vld [vmem:[%s1 + $0x288] sm:$0xff]
  %v115 = vld [vmem:[%s1 + $0x290] sm:$0xff]
  %v116 = vld [vmem:[%s1 + $0x298] sm:$0xff]
  %v117 = vld [vmem:[%s1 + $0x2a0] sm:$0xff]
  %v118 = vld [vmem:[%s1 + $0x2a8] sm:$0xff]
  %v119 = vld [vmem:[%s1 + $0x2b0] sm:$0xff]
  %v120 = vld [vmem:[%s1 + $0x2b8] sm:$0xff]
  %v121 = vld [vmem:[%s1 + $0x2c0] sm:$0xff]
  %v122 = vld [vmem:[%s1 + $0x2c8] sm:$0xff]
  %v123 = vld [vmem:[%s1 + $0x2d0] sm:$0xff]
  %v124 = vld [vmem:[%s1 + $0x2d8] sm:$0xff]
  %v125 = vld [vmem:[%s1 + $0x2e0] sm:$0xff]
  %v126 = vld [vmem:[%s1 + $0x2e8] sm:$0xff]
  %v127 = vld [vmem:[%s1 + $0x2f0] sm:$0xff]
  %v128 = vld [vmem:[%s1 + $0x2f8] sm:$0xff]
  %v129 = vld [vmem:[%s1 + $0x300] sm:$0xff]
  %v130 = vld [vmem:[%s1 + $0x308] sm:$0xff]
  %v131 = vld [vmem:[%s1 + $0x310] sm:$0xff]
  %v132 = vld [vmem:[%s1 + $0x318] sm:$0xff]
  %v133 = vld [vmem:[%s1 + $0x320] sm:$0xff]
  %v134 = vld [vmem:[%s1 + $0x328] sm:$0xff]
  %v135 = vld [vmem:[%s1 + $0x330] sm:$0xff]
  %v136 = vld [vmem:[%s1 + $0x338] sm:$0xff]
  %v137 = vld [vmem:[%s1 + $0x340] sm:$0xff]
  %v138 = vld [vmem:[%s1 + $0x348] sm:$0xff]
  %v139 = vld [vmem:[%s1 + $0x350] sm:$0xff]
  %v140 = vld [vmem:[%s1 + $0x358] sm:$0xff]
  %v141 = vld [vmem:[%s1 + $0x360] sm:$0xff]
  %v142 = vld [vmem:[%s1 + $0x368] sm:$0xff]
  %v143 = vld [vmem:[%s1 + $0x370] sm:$0xff]
  %v144 = vld [vmem:[%s1 + $0x378] sm:$0xff]
  %v145 = vld [vmem:[%s1 + $0x380] sm:$0xff]
  %v146 = vld [vmem:[%s1 + $0x388] sm:$0xff]
  %v147 = vld [vmem:[%s1 + $0x390] sm:$0xff]
  %v148 = vld [vmem:[%s1 + $0x398] sm:$0xff]
  %v149 = vld [vmem:[%s1 + $0x3a0] sm:$0xff]
  %v150 = vld [vmem:[%s1 + $0x3a8] sm:$0xff]
  %v151 = vld [vmem:[%s1 + $0x3b0] sm:$0xff]
  %v152 = vld [vmem:[%s1 + $0x3b8] sm:$0xff]
  %v153 = vld [vmem:[%s1 + $0x3c0] sm:$0xff]
  %v154 = vld [vmem:[%s1 + $0x3c8] sm:$0xff]
  %v155 = vld [vmem:[%s1 + $0x3d0] sm:$0xff]
  %v156 = vld [vmem:[%s1 + $0x3d8] sm:$0xff]
  %v157 = vld [vmem:[%s1 + $0x3e0] sm:$0xff]
  %v158 = vld [vmem:[%s1 + $0x3e8] sm:$0xff]
  %v159 = vld [vmem:[%s1 + $0x3f0] sm:$0xff]
  %v160 = vld [vmem:[%s1 + $0x3f8] sm:$0xff]
  %v161 = vld [vmem:[%s1 + $0x400] sm:$0xff]
  %v162 = vld [vmem:[%s1 + $0x408] sm:$0xff]
  %v163 = vld [vmem:[%s1 + $0x410] sm:$0xff]
  %v164 = vld [vmem:[%s1 + $0x418] sm:$0xff]
  %v165 = vld [vmem:[%s1 + $0x420] sm:$0xff]
  %v166 = vld [vmem:[%s1 + $0x428] sm:$0xff]
  %v167 = vld [vmem:[%s1 + $0x430] sm:$0xff]
  %v168 = vld [vmem:[%s1 + $0x438] sm:$0xff]
  %v169 = vld [vmem:[%s1 + $0x440] sm:$0xff]
  %v170 = vld [vmem:[%s1 + $0x448] sm:$0xff]
  %v171 = vld [vmem:[%s1 + $0x450] sm:$0xff]
  %v172 = vld [vmem:[%s1 + $0x458] sm:$0xff]
  %v173 = vld [vmem:[%s1 + $0x460] sm:$0xff]
  %v174 = vld [vmem:[%s1 + $0x468] sm:$0xff]
  %v175 = vld [vmem:[%s1 + $0x470] sm:$0xff]
  %v176 = vld [vmem:[%s1 + $0x478] sm:$0xff]
  %v177 = vld [vmem:[%s2] sm:$0xf]
  %v179 = vlaneseq
  %v180 = vshrl.u32 %v179, 7
  %v181 = vsub.s32 0, %v180
  %v182 = vrot.slane %v177, %v181
  %v183 = vlaneseq
  %v184 = vshrl.u32 %v183, 7
  %v185 = vsub.s32 1, %v184
  %v186 = vrot.slane %v177, %v185
  %v187 = vlaneseq
  %v188 = vshrl.u32 %v187, 7
  %v189 = vsub.s32 2, %v188
  %v190 = vrot.slane %v177, %v189
  %v191 = vlaneseq
  %v192 = vshrl.u32 %v191, 7
  %v193 = vsub.s32 3, %v192
  %v194 = vrot.slane %v177, %v193
  %v211 = vunpack.c.l.b16 %v21
  %v212 = vunpack.c.h.b16 %v21
  %v213 = vunpack.c.l.b16 %v22
  %v214 = vunpack.c.h.b16 %v22
  %v215 = vunpack.c.l.b16 %v23
  %v216 = vunpack.c.l.b16 %v24
  %v217 = vunpack.c.h.b16 %v24
  %v218 = vunpack.c.l.b16 %v25
  %v219 = vunpack.c.h.b16 %v25
  %v220 = vunpack.c.l.b16 %v26
  %v221 = vunpack.c.l.b16 %v27
  %v222 = vunpack.c.h.b16 %v27
  %v223 = vunpack.c.l.b16 %v28
  %v224 = vunpack.c.h.b16 %v28
  %v225 = vunpack.c.l.b16 %v29
  %v226 = vunpack.c.l.b16 %v30
  %v227 = vunpack.c.h.b16 %v30
  %v228 = vunpack.c.l.b16 %v31
  %v229 = vunpack.c.h.b16 %v31
  %v230 = vunpack.c.l.b16 %v32
  %v231 = vpack.c.b16 %v216, %v211
  %v232 = vpack.c.b16 %v217, %v212
  %v233 = vpack.c.b16 %v218, %v213
  %v234 = vpack.c.b16 %v219, %v214
  %v235 = vpack.c.b16 %v220, %v215
  %v236 = vpack.c.b16 %v226, %v221
  %v237 = vpack.c.b16 %v227, %v222
  %v238 = vpack.c.b16 %v228, %v223
  %v239 = vpack.c.b16 %v229, %v224
  %v240 = vpack.c.b16 %v230, %v225
  %v393 = vunpack.c.l.b16 %v33
  %v394 = vunpack.c.h.b16 %v33
  %v395 = vunpack.c.l.b16 %v34
  %v396 = vunpack.c.h.b16 %v34
  %v397 = vunpack.c.l.b16 %v35
  %v398 = vunpack.c.h.b16 %v35
  %v399 = vunpack.c.l.b16 %v36
  %v400 = vunpack.c.h.b16 %v36
  %v401 = vunpack.c.l.b16 %v37
  %v402 = vunpack.c.h.b16 %v37
  %v403 = vunpack.c.l.b16 %v38
  %v404 = vunpack.c.h.b16 %v38
  %v405 = vunpack.c.l.b16 %v39
  %v406 = vunpack.c.h.b16 %v39
  %v407 = vunpack.c.l.b16 %v40
  %v408 = vunpack.c.h.b16 %v40
  %v409 = vunpack.c.l.b16 %v41
  %v410 = vunpack.c.h.b16 %v41
  %v411 = vunpack.c.l.b16 %v42
  %v412 = vunpack.c.h.b16 %v42
  %v413 = vunpack.c.l.b16 %v43
  %v414 = vunpack.c.h.b16 %v43
  %v415 = vunpack.c.l.b16 %v44
  %v416 = vunpack.c.h.b16 %v44
  %v417 = vunpack.c.l.b16 %v45
  %v418 = vunpack.c.h.b16 %v45
  %v419 = vunpack.c.l.b16 %v46
  %v420 = vunpack.c.h.b16 %v46
  %v421 = vunpack.c.l.b16 %v47
  %v422 = vunpack.c.h.b16 %v47
  %v423 = vunpack.c.l.b16 %v48
  %v424 = vunpack.c.h.b16 %v48
  %v425 = vunpack.c.l.b16 %v49
  %v426 = vunpack.c.h.b16 %v49
  %v427 = vunpack.c.l.b16 %v50
  %v428 = vunpack.c.h.b16 %v50
  %v429 = vunpack.c.l.b16 %v51
  %v430 = vunpack.c.h.b16 %v51
  %v431 = vunpack.c.l.b16 %v52
  %v432 = vunpack.c.h.b16 %v52
  %v433 = vunpack.c.l.b16 %v53
  %v434 = vunpack.c.h.b16 %v53
  %v435 = vunpack.c.l.b16 %v54
  %v436 = vunpack.c.h.b16 %v54
  %v437 = vunpack.c.l.b16 %v55
  %v438 = vunpack.c.h.b16 %v55
  %v439 = vunpack.c.l.b16 %v56
  %v440 = vunpack.c.h.b16 %v56
  %v441 = vunpack.c.l.b16 %v57
  %v442 = vunpack.c.h.b16 %v57
  %v443 = vunpack.c.l.b16 %v58
  %v444 = vunpack.c.h.b16 %v58
  %v445 = vunpack.c.l.b16 %v59
  %v446 = vunpack.c.h.b16 %v59
  %v447 = vunpack.c.l.b16 %v60
  %v448 = vunpack.c.h.b16 %v60
  %v449 = vunpack.c.l.b16 %v61
  %v450 = vunpack.c.h.b16 %v61
  %v451 = vunpack.c.l.b16 %v62
  %v452 = vunpack.c.h.b16 %v62
  %v453 = vunpack.c.l.b16 %v63
  %v454 = vunpack.c.h.b16 %v63
  %v455 = vunpack.c.l.b16 %v64
  %v456 = vunpack.c.h.b16 %v64
  %v457 = vunpack.c.l.b16 %v65
  %v458 = vunpack.c.h.b16 %v65
  %v459 = vunpack.c.l.b16 %v66
  %v460 = vunpack.c.h.b16 %v66
  %v461 = vunpack.c.l.b16 %v67
  %v462 = vunpack.c.h.b16 %v67
  %v463 = vunpack.c.l.b16 %v68
  %v464 = vunpack.c.h.b16 %v68
  %v465 = vunpack.c.l.b16 %v69
  %v466 = vunpack.c.h.b16 %v69
  %v467 = vunpack.c.l.b16 %v70
  %v468 = vunpack.c.h.b16 %v70
  %v469 = vunpack.c.l.b16 %v71
  %v470 = vunpack.c.h.b16 %v71
  %v471 = vunpack.c.l.b16 %v72
  %v472 = vunpack.c.h.b16 %v72
  %v473 = vunpack.c.l.b16 %v73
  %v474 = vunpack.c.h.b16 %v73
  %v475 = vunpack.c.l.b16 %v74
  %v476 = vunpack.c.h.b16 %v74
  %v477 = vunpack.c.l.b16 %v75
  %v478 = vunpack.c.h.b16 %v75
  %v479 = vunpack.c.l.b16 %v76
  %v480 = vunpack.c.h.b16 %v76
  %v481 = vunpack.c.l.b16 %v77
  %v482 = vunpack.c.h.b16 %v77
  %v483 = vunpack.c.l.b16 %v78
  %v484 = vunpack.c.h.b16 %v78
  %v485 = vunpack.c.l.b16 %v79
  %v486 = vunpack.c.h.b16 %v79
  %v487 = vunpack.c.l.b16 %v80
  %v488 = vunpack.c.h.b16 %v80
  %v489 = vunpack.c.l.b16 %v81
  %v490 = vunpack.c.h.b16 %v81
  %v491 = vunpack.c.l.b16 %v82
  %v492 = vunpack.c.h.b16 %v82
  %v493 = vunpack.c.l.b16 %v83
  %v494 = vunpack.c.h.b16 %v83
  %v495 = vunpack.c.l.b16 %v84
  %v496 = vunpack.c.h.b16 %v84
  %v497 = vunpack.c.l.b16 %v85
  %v498 = vunpack.c.h.b16 %v85
  %v499 = vunpack.c.l.b16 %v86
  %v500 = vunpack.c.h.b16 %v86
  %v501 = vunpack.c.l.b16 %v87
  %v502 = vunpack.c.h.b16 %v87
  %v503 = vunpack.c.l.b16 %v88
  %v504 = vunpack.c.h.b16 %v88
  %v505 = vunpack.c.l.b16 %v89
  %v506 = vunpack.c.h.b16 %v89
  %v507 = vunpack.c.l.b16 %v90
  %v508 = vunpack.c.h.b16 %v90
  %v509 = vunpack.c.l.b16 %v91
  %v510 = vunpack.c.h.b16 %v91
  %v511 = vunpack.c.l.b16 %v92
  %v512 = vunpack.c.h.b16 %v92
  %v513 = vunpack.c.l.b16 %v93
  %v514 = vunpack.c.h.b16 %v93
  %v515 = vunpack.c.l.b16 %v94
  %v516 = vunpack.c.h.b16 %v94
  %v517 = vunpack.c.l.b16 %v95
  %v518 = vunpack.c.h.b16 %v95
  %v519 = vunpack.c.l.b16 %v96
  %v520 = vunpack.c.h.b16 %v96
  %v521 = vunpack.c.l.b16 %v97
  %v522 = vunpack.c.h.b16 %v97
  %v523 = vunpack.c.l.b16 %v98
  %v524 = vunpack.c.h.b16 %v98
  %v525 = vunpack.c.l.b16 %v99
  %v526 = vunpack.c.h.b16 %v99
  %v527 = vunpack.c.l.b16 %v100
  %v528 = vunpack.c.h.b16 %v100
  %v529 = vunpack.c.l.b16 %v101
  %v530 = vunpack.c.h.b16 %v101
  %v531 = vunpack.c.l.b16 %v102
  %v532 = vunpack.c.h.b16 %v102
  %v533 = vunpack.c.l.b16 %v103
  %v534 = vunpack.c.h.b16 %v103
  %v535 = vunpack.c.l.b16 %v104
  %v536 = vunpack.c.h.b16 %v104
  %v537 = vunpack.c.l.b16 %v105
  %v538 = vunpack.c.h.b16 %v105
  %v539 = vunpack.c.l.b16 %v106
  %v540 = vunpack.c.h.b16 %v106
  %v541 = vunpack.c.l.b16 %v107
  %v542 = vunpack.c.h.b16 %v107
  %v543 = vunpack.c.l.b16 %v108
  %v544 = vunpack.c.h.b16 %v108
  %v545 = vunpack.c.l.b16 %v109
  %v546 = vunpack.c.h.b16 %v109
  %v547 = vunpack.c.l.b16 %v110
  %v548 = vunpack.c.h.b16 %v110
  %v549 = vunpack.c.l.b16 %v111
  %v550 = vunpack.c.h.b16 %v111
  %v551 = vunpack.c.l.b16 %v112
  %v552 = vunpack.c.h.b16 %v112
  %v553 = vunpack.c.l.b16 %v113
  %v554 = vunpack.c.h.b16 %v113
  %v555 = vunpack.c.l.b16 %v114
  %v556 = vunpack.c.h.b16 %v114
  %v557 = vunpack.c.l.b16 %v115
  %v558 = vunpack.c.h.b16 %v115
  %v559 = vunpack.c.l.b16 %v116
  %v560 = vunpack.c.h.b16 %v116
  %v561 = vunpack.c.l.b16 %v117
  %v562 = vunpack.c.h.b16 %v117
  %v563 = vunpack.c.l.b16 %v118
  %v564 = vunpack.c.h.b16 %v118
  %v565 = vunpack.c.l.b16 %v119
  %v566 = vunpack.c.h.b16 %v119
  %v567 = vunpack.c.l.b16 %v120
  %v568 = vunpack.c.h.b16 %v120
  %v569 = vunpack.c.l.b16 %v121
  %v570 = vunpack.c.h.b16 %v121
  %v571 = vunpack.c.l.b16 %v122
  %v572 = vunpack.c.h.b16 %v122
  %v573 = vunpack.c.l.b16 %v123
  %v574 = vunpack.c.h.b16 %v123
  %v575 = vunpack.c.l.b16 %v124
  %v576 = vunpack.c.h.b16 %v124
  %v577 = vunpack.c.l.b16 %v125
  %v578 = vunpack.c.h.b16 %v125
  %v579 = vunpack.c.l.b16 %v126
  %v580 = vunpack.c.h.b16 %v126
  %v581 = vunpack.c.l.b16 %v127
  %v582 = vunpack.c.h.b16 %v127
  %v583 = vunpack.c.l.b16 %v128
  %v584 = vunpack.c.h.b16 %v128
  %v585 = vunpack.c.l.b16 %v129
  %v586 = vunpack.c.h.b16 %v129
  %v587 = vunpack.c.l.b16 %v130
  %v588 = vunpack.c.h.b16 %v130
  %v589 = vunpack.c.l.b16 %v131
  %v590 = vunpack.c.h.b16 %v131
  %v591 = vunpack.c.l.b16 %v132
  %v592 = vunpack.c.h.b16 %v132
  %v593 = vunpack.c.l.b16 %v133
  %v594 = vunpack.c.h.b16 %v133
  %v595 = vunpack.c.l.b16 %v134
  %v596 = vunpack.c.h.b16 %v134
  %v597 = vunpack.c.l.b16 %v135
  %v598 = vunpack.c.h.b16 %v135
  %v599 = vunpack.c.l.b16 %v136
  %v600 = vunpack.c.h.b16 %v136
  %v601 = vunpack.c.l.b16 %v137
  %v602 = vunpack.c.h.b16 %v137
  %v603 = vunpack.c.l.b16 %v138
  %v604 = vunpack.c.h.b16 %v138
  %v605 = vunpack.c.l.b16 %v139
  %v606 = vunpack.c.h.b16 %v139
  %v607 = vunpack.c.l.b16 %v140
  %v608 = vunpack.c.h.b16 %v140
  %v609 = vunpack.c.l.b16 %v141
  %v610 = vunpack.c.h.b16 %v141
  %v611 = vunpack.c.l.b16 %v142
  %v612 = vunpack.c.h.b16 %v142
  %v613 = vunpack.c.l.b16 %v143
  %v614 = vunpack.c.h.b16 %v143
  %v615 = vunpack.c.l.b16 %v144
  %v616 = vunpack.c.h.b16 %v144
  %v617 = vunpack.c.l.b16 %v145
  %v618 = vunpack.c.h.b16 %v145
  %v619 = vunpack.c.l.b16 %v146
  %v620 = vunpack.c.h.b16 %v146
  %v621 = vunpack.c.l.b16 %v147
  %v622 = vunpack.c.h.b16 %v147
  %v623 = vunpack.c.l.b16 %v148
  %v624 = vunpack.c.h.b16 %v148
  %v625 = vunpack.c.l.b16 %v149
  %v626 = vunpack.c.h.b16 %v149
  %v627 = vunpack.c.l.b16 %v150
  %v628 = vunpack.c.h.b16 %v150
  %v629 = vunpack.c.l.b16 %v151
  %v630 = vunpack.c.h.b16 %v151
  %v631 = vunpack.c.l.b16 %v152
  %v632 = vunpack.c.h.b16 %v152
  %v633 = vunpack.c.l.b16 %v153
  %v634 = vunpack.c.h.b16 %v153
  %v635 = vunpack.c.l.b16 %v154
  %v636 = vunpack.c.h.b16 %v154
  %v637 = vunpack.c.l.b16 %v155
  %v638 = vunpack.c.h.b16 %v155
  %v639 = vunpack.c.l.b16 %v156
  %v640 = vunpack.c.h.b16 %v156
  %v641 = vunpack.c.l.b16 %v157
  %v642 = vunpack.c.h.b16 %v157
  %v643 = vunpack.c.l.b16 %v158
  %v644 = vunpack.c.h.b16 %v158
  %v645 = vunpack.c.l.b16 %v159
  %v646 = vunpack.c.h.b16 %v159
  %v647 = vunpack.c.l.b16 %v160
  %v648 = vunpack.c.h.b16 %v160
  %v649 = vunpack.c.l.b16 %v161
  %v650 = vunpack.c.h.b16 %v161
  %v651 = vunpack.c.l.b16 %v162
  %v652 = vunpack.c.h.b16 %v162
  %v653 = vunpack.c.l.b16 %v163
  %v654 = vunpack.c.h.b16 %v163
  %v655 = vunpack.c.l.b16 %v164
  %v656 = vunpack.c.h.b16 %v164
  %v657 = vunpack.c.l.b16 %v165
  %v658 = vunpack.c.h.b16 %v165
  %v659 = vunpack.c.l.b16 %v166
  %v660 = vunpack.c.h.b16 %v166
  %v661 = vunpack.c.l.b16 %v167
  %v662 = vunpack.c.h.b16 %v167
  %v663 = vunpack.c.l.b16 %v168
  %v664 = vunpack.c.h.b16 %v168
  %v665 = vunpack.c.l.b16 %v169
  %v666 = vunpack.c.h.b16 %v169
  %v667 = vunpack.c.l.b16 %v170
  %v668 = vunpack.c.h.b16 %v170
  %v669 = vunpack.c.l.b16 %v171
  %v670 = vunpack.c.h.b16 %v171
  %v671 = vunpack.c.l.b16 %v172
  %v672 = vunpack.c.h.b16 %v172
  %v673 = vunpack.c.l.b16 %v173
  %v674 = vunpack.c.h.b16 %v173
  %v675 = vunpack.c.l.b16 %v174
  %v676 = vunpack.c.h.b16 %v174
  %v677 = vunpack.c.l.b16 %v175
  %v678 = vunpack.c.h.b16 %v175
  %v679 = vunpack.c.l.b16 %v176
  %v680 = vunpack.c.h.b16 %v176
  %v681 = vpack.c.b16 %v397, %v393
  %v682 = vpack.c.b16 %v398, %v394
  %v683 = vpack.c.b16 %v399, %v395
  %v684 = vpack.c.b16 %v400, %v396
  %v685 = vpack.c.b16 %v405, %v401
  %v686 = vpack.c.b16 %v406, %v402
  %v687 = vpack.c.b16 %v407, %v403
  %v688 = vpack.c.b16 %v408, %v404
  %v689 = vpack.c.b16 %v413, %v409
  %v690 = vpack.c.b16 %v414, %v410
  %v691 = vpack.c.b16 %v415, %v411
  %v692 = vpack.c.b16 %v416, %v412
  %v693 = vpack.c.b16 %v421, %v417
  %v694 = vpack.c.b16 %v422, %v418
  %v695 = vpack.c.b16 %v423, %v419
  %v696 = vpack.c.b16 %v424, %v420
  %v697 = vpack.c.b16 %v429, %v425
  %v698 = vpack.c.b16 %v430, %v426
  %v699 = vpack.c.b16 %v431, %v427
  %v700 = vpack.c.b16 %v432, %v428
  %v701 = vpack.c.b16 %v437, %v433
  %v702 = vpack.c.b16 %v438, %v434
  %v703 = vpack.c.b16 %v439, %v435
  %v704 = vpack.c.b16 %v440, %v436
  %v705 = vpack.c.b16 %v445, %v441
  %v706 = vpack.c.b16 %v446, %v442
  %v707 = vpack.c.b16 %v447, %v443
  %v708 = vpack.c.b16 %v448, %v444
  %v709 = vpack.c.b16 %v453, %v449
  %v710 = vpack.c.b16 %v454, %v450
  %v711 = vpack.c.b16 %v455, %v451
  %v712 = vpack.c.b16 %v456, %v452
  %v713 = vpack.c.b16 %v461, %v457
  %v714 = vpack.c.b16 %v462, %v458
  %v715 = vpack.c.b16 %v463, %v459
  %v716 = vpack.c.b16 %v464, %v460
  %v717 = vpack.c.b16 %v469, %v465
  %v718 = vpack.c.b16 %v470, %v466
  %v719 = vpack.c.b16 %v471, %v467
  %v720 = vpack.c.b16 %v472, %v468
  %v721 = vpack.c.b16 %v477, %v473
  %v722 = vpack.c.b16 %v478, %v474
  %v723 = vpack.c.b16 %v479, %v475
  %v724 = vpack.c.b16 %v480, %v476
  %v725 = vpack.c.b16 %v485, %v481
  %v726 = vpack.c.b16 %v486, %v482
  %v727 = vpack.c.b16 %v487, %v483
  %v728 = vpack.c.b16 %v488, %v484
  %v729 = vpack.c.b16 %v493, %v489
  %v730 = vpack.c.b16 %v494, %v490
  %v731 = vpack.c.b16 %v495, %v491
  %v732 = vpack.c.b16 %v496, %v492
  %v733 = vpack.c.b16 %v501, %v497
  %v734 = vpack.c.b16 %v502, %v498
  %v735 = vpack.c.b16 %v503, %v499
  %v736 = vpack.c.b16 %v504, %v500
  %v737 = vpack.c.b16 %v509, %v505
  %v738 = vpack.c.b16 %v510, %v506
  %v739 = vpack.c.b16 %v511, %v507
  %v740 = vpack.c.b16 %v512, %v508
  %v741 = vpack.c.b16 %v517, %v513
  %v742 = vpack.c.b16 %v518, %v514
  %v743 = vpack.c.b16 %v519, %v515
  %v744 = vpack.c.b16 %v520, %v516
  %v745 = vpack.c.b16 %v525, %v521
  %v746 = vpack.c.b16 %v526, %v522
  %v747 = vpack.c.b16 %v527, %v523
  %v748 = vpack.c.b16 %v528, %v524
  %v749 = vpack.c.b16 %v533, %v529
  %v750 = vpack.c.b16 %v534, %v530
  %v751 = vpack.c.b16 %v535, %v531
  %v752 = vpack.c.b16 %v536, %v532
  %v753 = vpack.c.b16 %v541, %v537
  %v754 = vpack.c.b16 %v542, %v538
  %v755 = vpack.c.b16 %v543, %v539
  %v756 = vpack.c.b16 %v544, %v540
  %v757 = vpack.c.b16 %v549, %v545
  %v758 = vpack.c.b16 %v550, %v546
  %v759 = vpack.c.b16 %v551, %v547
  %v760 = vpack.c.b16 %v552, %v548
  %v761 = vpack.c.b16 %v557, %v553
  %v762 = vpack.c.b16 %v558, %v554
  %v763 = vpack.c.b16 %v559, %v555
  %v764 = vpack.c.b16 %v560, %v556
  %v765 = vpack.c.b16 %v565, %v561
  %v766 = vpack.c.b16 %v566, %v562
  %v767 = vpack.c.b16 %v567, %v563
  %v768 = vpack.c.b16 %v568, %v564
  %v769 = vpack.c.b16 %v573, %v569
  %v770 = vpack.c.b16 %v574, %v570
  %v771 = vpack.c.b16 %v575, %v571
  %v772 = vpack.c.b16 %v576, %v572
  %v773 = vpack.c.b16 %v581, %v577
  %v774 = vpack.c.b16 %v582, %v578
  %v775 = vpack.c.b16 %v583, %v579
  %v776 = vpack.c.b16 %v584, %v580
  %v777 = vpack.c.b16 %v589, %v585
  %v778 = vpack.c.b16 %v590, %v586
  %v779 = vpack.c.b16 %v591, %v587
  %v780 = vpack.c.b16 %v592, %v588
  %v781 = vpack.c.b16 %v597, %v593
  %v782 = vpack.c.b16 %v598, %v594
  %v783 = vpack.c.b16 %v599, %v595
  %v784 = vpack.c.b16 %v600, %v596
  %v785 = vpack.c.b16 %v605, %v601
  %v786 = vpack.c.b16 %v606, %v602
  %v787 = vpack.c.b16 %v607, %v603
  %v788 = vpack.c.b16 %v608, %v604
  %v789 = vpack.c.b16 %v613, %v609
  %v790 = vpack.c.b16 %v614, %v610
  %v791 = vpack.c.b16 %v615, %v611
  %v792 = vpack.c.b16 %v616, %v612
  %v793 = vpack.c.b16 %v621, %v617
  %v794 = vpack.c.b16 %v622, %v618
  %v795 = vpack.c.b16 %v623, %v619
  %v796 = vpack.c.b16 %v624, %v620
  %v797 = vpack.c.b16 %v629, %v625
  %v798 = vpack.c.b16 %v630, %v626
  %v799 = vpack.c.b16 %v631, %v627
  %v800 = vpack.c.b16 %v632, %v628
  %v801 = vpack.c.b16 %v637, %v633
  %v802 = vpack.c.b16 %v638, %v634
  %v803 = vpack.c.b16 %v639, %v635
  %v804 = vpack.c.b16 %v640, %v636
  %v805 = vpack.c.b16 %v645, %v641
  %v806 = vpack.c.b16 %v646, %v642
  %v807 = vpack.c.b16 %v647, %v643
  %v808 = vpack.c.b16 %v648, %v644
  %v809 = vpack.c.b16 %v653, %v649
  %v810 = vpack.c.b16 %v654, %v650
  %v811 = vpack.c.b16 %v655, %v651
  %v812 = vpack.c.b16 %v656, %v652
  %v813 = vpack.c.b16 %v661, %v657
  %v814 = vpack.c.b16 %v662, %v658
  %v815 = vpack.c.b16 %v663, %v659
  %v816 = vpack.c.b16 %v664, %v660
  %v817 = vpack.c.b16 %v669, %v665
  %v818 = vpack.c.b16 %v670, %v666
  %v819 = vpack.c.b16 %v671, %v667
  %v820 = vpack.c.b16 %v672, %v668
  %v821 = vpack.c.b16 %v677, %v673
  %v822 = vpack.c.b16 %v678, %v674
  %v823 = vpack.c.b16 %v679, %v675
  %v824 = vpack.c.b16 %v680, %v676
  %vm969 = vcmask 523264
  %v971 = vsel %vm969, %v235, 0
  %v974 = vsel %vm969, %v240, 0
  %976 = vmatprep.subr.bf16.mxu0 %v682
  %977 = vmatpush1.bf16.msra.mxu0 %v681
  %978 = vmatprep.subr.bf16.mxu0 %v686
  %979 = vmatpush1.bf16.msra.mxu0 %v685
  %980 = vmatprep.subr.bf16.mxu0 %v690
  %981 = vmatpush1.bf16.msra.mxu0 %v689
  %982 = vmatprep.subr.bf16.mxu0 %v694
  %983 = vmatpush1.bf16.msra.mxu0 %v693
  %984 = vmatprep.subr.bf16.mxu0 %v698
  %985 = vmatpush1.bf16.msra.mxu0 %v697
  %986 = vmatprep.subr.bf16.mxu0 %v702
  %987 = vmatpush1.bf16.msra.mxu0 %v701
  %988 = vmatprep.subr.bf16.mxu0 %v706
  %989 = vmatpush1.bf16.msra.mxu0 %v705
  %990 = vmatprep.subr.bf16.mxu0 %v710
  %991 = vmatpush1.bf16.msra.mxu0 %v709
  %992 = vmatprep.subr.bf16.mxu0 %v714
  %993 = vmatpush1.bf16.msra.mxu0 %v713
  %994 = vmatprep.subr.bf16.mxu0 %v718
  %995 = vmatpush1.bf16.msra.mxu0 %v717
  %996 = vmatprep.subr.bf16.mxu0 %v722
  %997 = vmatpush1.bf16.msra.mxu0 %v721
  %998 = vmatprep.subr.bf16.mxu0 %v726
  %999 = vmatpush1.bf16.msra.mxu0 %v725
  %1000 = vmatprep.subr.bf16.mxu0 %v730
  %1001 = vmatpush1.bf16.msra.mxu0 %v729
  %1002 = vmatprep.subr.bf16.mxu0 %v734
  %1003 = vmatpush1.bf16.msra.mxu0 %v733
  %1004 = vmatprep.subr.bf16.mxu0 %v738
  %1005 = vmatpush1.bf16.msra.mxu0 %v737
  %1006 = vmatprep.subr.bf16.mxu0 %v742
  %1007 = vmatpush1.bf16.msra.mxu0 %v741
  %1008 = vmatprep.mubr.bf16.mxu0 %v232
  %1009 = vmatmul.mubr.bf16.gmra.mrb[0].mxu0 %v231
  %v1010 = vpop.f32.mrb[0].mxu0
  %v1011 = vadd.f32 %v182, %v1010
  %v1012 = vpop.f32.mrb[0].mxu0
  %v1013 = vadd.f32 %v186, %v1012
  %v1014 = vpop.f32.mrb[0].mxu0
  %v1015 = vadd.f32 %v182, %v1014
  %v1016 = vpop.f32.mrb[0].mxu0
  %v1017 = vadd.f32 %v186, %v1016
  %1018 = vmatprep.mubr.bf16.mxu0 %v237
  %1019 = vmatmul.mubr.bf16.gmra.mrb[0].mxu0 %v236
  %v1020 = vpop.f32.mrb[0].mxu0
  %v1021 = vadd.f32 %v182, %v1020
  %v1022 = vpop.f32.mrb[0].mxu0
  %v1023 = vadd.f32 %v186, %v1022
  %v1024 = vpop.f32.mrb[0].mxu0
  %v1025 = vadd.f32 %v182, %v1024
  %v1026 = vpop.f32.mrb[0].mxu0
  %v1027 = vadd.f32 %v186, %v1026
  %1028 = vdwg.mxu0
  %1029 = vmatprep.subr.bf16.mxu0 %v746
  %1030 = vmatpush1.bf16.msra.mxu0 %v745
  %1031 = vmatprep.subr.bf16.mxu0 %v750
  %1032 = vmatpush1.bf16.msra.mxu0 %v749
  %1033 = vmatprep.subr.bf16.mxu0 %v754
  %1034 = vmatpush1.bf16.msra.mxu0 %v753
  %1035 = vmatprep.subr.bf16.mxu0 %v758
  %1036 = vmatpush1.bf16.msra.mxu0 %v757
  %1037 = vmatprep.subr.bf16.mxu0 %v762
  %1038 = vmatpush1.bf16.msra.mxu0 %v761
  %1039 = vmatprep.subr.bf16.mxu0 %v766
  %1040 = vmatpush1.bf16.msra.mxu0 %v765
  %1041 = vmatprep.subr.bf16.mxu0 %v770
  %1042 = vmatpush1.bf16.msra.mxu0 %v769
  %1043 = vmatprep.subr.bf16.mxu0 %v774
  %1044 = vmatpush1.bf16.msra.mxu0 %v773
  %1045 = vmatprep.subr.bf16.mxu0 %v778
  %1046 = vmatpush1.bf16.msra.mxu0 %v777
  %1047 = vmatprep.subr.bf16.mxu0 %v782
  %1048 = vmatpush1.bf16.msra.mxu0 %v781
  %1049 = vmatprep.subr.bf16.mxu0 %v786
  %1050 = vmatpush1.bf16.msra.mxu0 %v785
  %1051 = vmatprep.subr.bf16.mxu0 %v790
  %1052 = vmatpush1.bf16.msra.mxu0 %v789
  %1053 = vmatprep.subr.bf16.mxu0 %v794
  %1054 = vmatpush1.bf16.msra.mxu0 %v793
  %1055 = vmatprep.subr.bf16.mxu0 %v798
  %1056 = vmatpush1.bf16.msra.mxu0 %v797
  %1057 = vmatprep.subr.bf16.mxu0 %v802
  %1058 = vmatpush1.bf16.msra.mxu0 %v801
  %1059 = vmatprep.subr.bf16.mxu0 %v806
  %1060 = vmatpush1.bf16.msra.mxu0 %v805
  %1061 = vmatprep.mubr.bf16.mxu0 %v234
  %1062 = vmatmul.mubr.bf16.gmra.mrb[0].mxu0 %v233
  %v1063 = vpop.f32.mrb[0].mxu0
  %v1064 = vadd.f32 %v1011, %v1063
  %v1065 = vpop.f32.mrb[0].mxu0
  %v1066 = vadd.f32 %v1013, %v1065
  %v1067 = vpop.f32.mrb[0].mxu0
  %v1068 = vadd.f32 %v1015, %v1067
  %v1069 = vpop.f32.mrb[0].mxu0
  %v1070 = vadd.f32 %v1017, %v1069
  %1071 = vmatprep.mubr.bf16.mxu0 %v239
  %1072 = vmatmul.mubr.bf16.gmra.mrb[0].mxu0 %v238
  %v1073 = vpop.f32.mrb[0].mxu0
  %v1074 = vadd.f32 %v1021, %v1073
  %v1075 = vpop.f32.mrb[0].mxu0
  %v1076 = vadd.f32 %v1023, %v1075
  %v1077 = vpop.f32.mrb[0].mxu0
  %v1078 = vadd.f32 %v1025, %v1077
  %v1079 = vpop.f32.mrb[0].mxu0
  %v1080 = vadd.f32 %v1027, %v1079
  %1081 = vdwg.mxu0
  %1082 = vmatprep.subr.bf16.mxu0 %v810
  %1083 = vmatpush1.bf16.msra.mxu0 %v809
  %1084 = vmatprep.subr.bf16.mxu0 %v814
  %1085 = vmatpush1.bf16.msra.mxu0 %v813
  %1086 = vmatprep.subr.bf16.mxu0 %v818
  %1087 = vmatpush1.bf16.msra.mxu0 %v817
  %1088 = vmatprep.subr.bf16.mxu0 %v822
  %1089 = vmatpush1.bf16.msra.mxu0 %v821
  %1090 = vmatprep.subr.bf16.mxu0 0
  %1091 = vmatpush1.bf16.msra.mxu0 0
  %1092 = vmatprep.subr.bf16.mxu0 0
  %1093 = vmatpush1.bf16.msra.mxu0 0
  %1094 = vmatprep.subr.bf16.mxu0 0
  %1095 = vmatpush1.bf16.msra.mxu0 0
  %1096 = vmatprep.subr.bf16.mxu0 0
  %1097 = vmatpush1.bf16.msra.mxu0 0
  %1098 = vmatprep.subr.bf16.mxu0 0
  %1099 = vmatpush1.bf16.msra.mxu0 0
  %1100 = vmatprep.subr.bf16.mxu0 0
  %1101 = vmatpush1.bf16.msra.mxu0 0
  %1102 = vmatprep.subr.bf16.mxu0 0
  %1103 = vmatpush1.bf16.msra.mxu0 0
  %1104 = vmatprep.subr.bf16.mxu0 0
  %1105 = vmatpush1.bf16.msra.mxu0 0
  %1106 = vmatprep.subr.bf16.mxu0 0
  %1107 = vmatpush1.bf16.msra.mxu0 0
  %1108 = vmatprep.subr.bf16.mxu0 0
  %1109 = vmatpush1.bf16.msra.mxu0 0
  %1110 = vmatprep.subr.bf16.mxu0 0
  %1111 = vmatpush1.bf16.msra.mxu0 0
  %1112 = vmatprep.subr.bf16.mxu0 0
  %1113 = vmatpush1.bf16.msra.mxu0 0
  %1114 = vmatprep.mubr.bf16.mxu0 0
  %1115 = vmatmul.mubr.bf16.gmra.mrb[0].mxu0 %v971
  %v1116 = vpop.f32.mrb[0].mxu0
  %v1117 = vadd.f32 %v1064, %v1116
  %v1118 = vpop.f32.mrb[0].mxu0
  %v1119 = vadd.f32 %v1066, %v1118
  %v1120 = vpop.f32.mrb[0].mxu0
  %v1121 = vadd.f32 %v1068, %v1120
  %v1122 = vpop.f32.mrb[0].mxu0
  %v1123 = vadd.f32 %v1070, %v1122
  %1124 = vmatprep.mubr.bf16.mxu0 0
  %1125 = vmatmul.mubr.bf16.gmra.mrb[0].mxu0 %v974
  %v1126 = vpop.f32.mrb[0].mxu0
  %v1127 = vadd.f32 %v1074, %v1126
  %v1128 = vpop.f32.mrb[0].mxu0
  %v1129 = vadd.f32 %v1076, %v1128
  %v1130 = vpop.f32.mrb[0].mxu0
  %v1131 = vadd.f32 %v1078, %v1130
  %v1132 = vpop.f32.mrb[0].mxu0
  %v1133 = vadd.f32 %v1080, %v1132
  %1134 = vdwg.mxu0
  %1135 = vmatprep.subr.bf16.mxu0 %v684
  %1136 = vmatpush1.bf16.msra.mxu0 %v683
  %1137 = vmatprep.subr.bf16.mxu0 %v688
  %1138 = vmatpush1.bf16.msra.mxu0 %v687
  %1139 = vmatprep.subr.bf16.mxu0 %v692
  %1140 = vmatpush1.bf16.msra.mxu0 %v691
  %1141 = vmatprep.subr.bf16.mxu0 %v696
  %1142 = vmatpush1.bf16.msra.mxu0 %v695
  %1143 = vmatprep.subr.bf16.mxu0 %v700
  %1144 = vmatpush1.bf16.msra.mxu0 %v699
  %1145 = vmatprep.subr.bf16.mxu0 %v704
  %1146 = vmatpush1.bf16.msra.mxu0 %v703
  %1147 = vmatprep.subr.bf16.mxu0 %v708
  %1148 = vmatpush1.bf16.msra.mxu0 %v707
  %1149 = vmatprep.subr.bf16.mxu0 %v712
  %1150 = vmatpush1.bf16.msra.mxu0 %v711
  %1151 = vmatprep.subr.bf16.mxu0 %v716
  %1152 = vmatpush1.bf16.msra.mxu0 %v715
  %1153 = vmatprep.subr.bf16.mxu0 %v720
  %1154 = vmatpush1.bf16.msra.mxu0 %v719
  %1155 = vmatprep.subr.bf16.mxu0 %v724
  %1156 = vmatpush1.bf16.msra.mxu0 %v723
  %1157 = vmatprep.subr.bf16.mxu0 %v728
  %1158 = vmatpush1.bf16.msra.mxu0 %v727
  %1159 = vmatprep.subr.bf16.mxu0 %v732
  %1160 = vmatpush1.bf16.msra.mxu0 %v731
  %1161 = vmatprep.subr.bf16.mxu0 %v736
  %1162 = vmatpush1.bf16.msra.mxu0 %v735
  %1163 = vmatprep.subr.bf16.mxu0 %v740
  %1164 = vmatpush1.bf16.msra.mxu0 %v739
  %1165 = vmatprep.subr.bf16.mxu0 %v744
  %1166 = vmatpush1.bf16.msra.mxu0 %v743
  %1167 = vmatprep.mubr.bf16.mxu0 %v232
  %1168 = vmatmul.mubr.bf16.gmra.mrb[0].mxu0 %v231
  %v1169 = vpop.f32.mrb[0].mxu0
  %v1170 = vadd.f32 %v190, %v1169
  %v1171 = vpop.f32.mrb[0].mxu0
  %v1172 = vadd.f32 %v194, %v1171
  %v1173 = vpop.f32.mrb[0].mxu0
  %v1174 = vadd.f32 %v190, %v1173
  %v1175 = vpop.f32.mrb[0].mxu0
  %v1176 = vadd.f32 %v194, %v1175
  %1177 = vmatprep.mubr.bf16.mxu0 %v237
  %1178 = vmatmul.mubr.bf16.gmra.mrb[0].mxu0 %v236
  %v1179 = vpop.f32.mrb[0].mxu0
  %v1180 = vadd.f32 %v190, %v1179
  %v1181 = vpop.f32.mrb[0].mxu0
  %v1182 = vadd.f32 %v194, %v1181
  %v1183 = vpop.f32.mrb[0].mxu0
  %v1184 = vadd.f32 %v190, %v1183
  %v1185 = vpop.f32.mrb[0].mxu0
  %v1186 = vadd.f32 %v194, %v1185
  %1187 = vdwg.mxu0
  %1188 = vmatprep.subr.bf16.mxu0 %v748
  %1189 = vmatpush1.bf16.msra.mxu0 %v747
  %1190 = vmatprep.subr.bf16.mxu0 %v752
  %1191 = vmatpush1.bf16.msra.mxu0 %v751
  %1192 = vmatprep.subr.bf16.mxu0 %v756
  %1193 = vmatpush1.bf16.msra.mxu0 %v755
  %1194 = vmatprep.subr.bf16.mxu0 %v760
  %1195 = vmatpush1.bf16.msra.mxu0 %v759
  %1196 = vmatprep.subr.bf16.mxu0 %v764
  %1197 = vmatpush1.bf16.msra.mxu0 %v763
  %1198 = vmatprep.subr.bf16.mxu0 %v768
  %1199 = vmatpush1.bf16.msra.mxu0 %v767
  %1200 = vmatprep.subr.bf16.mxu0 %v772
  %1201 = vmatpush1.bf16.msra.mxu0 %v771
  %1202 = vmatprep.subr.bf16.mxu0 %v776
  %1203 = vmatpush1.bf16.msra.mxu0 %v775
  %1204 = vmatprep.subr.bf16.mxu0 %v780
  %1205 = vmatpush1.bf16.msra.mxu0 %v779
  %1206 = vmatprep.subr.bf16.mxu0 %v784
  %1207 = vmatpush1.bf16.msra.mxu0 %v783
  %1208 = vmatprep.subr.bf16.mxu0 %v788
  %1209 = vmatpush1.bf16.msra.mxu0 %v787
  %1210 = vmatprep.subr.bf16.mxu0 %v792
  %1211 = vmatpush1.bf16.msra.mxu0 %v791
  %1212 = vmatprep.subr.bf16.mxu0 %v796
  %1213 = vmatpush1.bf16.msra.mxu0 %v795
  %1214 = vmatprep.subr.bf16.mxu0 %v800
  %1215 = vmatpush1.bf16.msra.mxu0 %v799
  %1216 = vmatprep.subr.bf16.mxu0 %v804
  %1217 = vmatpush1.bf16.msra.mxu0 %v803
  %1218 = vmatprep.subr.bf16.mxu0 %v808
  %1219 = vmatpush1.bf16.msra.mxu0 %v807
  %1220 = vmatprep.mubr.bf16.mxu0 %v234
  %1221 = vmatmul.mubr.bf16.gmra.mrb[0].mxu0 %v233
  %v1222 = vpop.f32.mrb[0].mxu0
  %v1223 = vadd.f32 %v1170, %v1222
  %v1224 = vpop.f32.mrb[0].mxu0
  %v1225 = vadd.f32 %v1172, %v1224
  %v1226 = vpop.f32.mrb[0].mxu0
  %v1227 = vadd.f32 %v1174, %v1226
  %v1228 = vpop.f32.mrb[0].mxu0
  %v1229 = vadd.f32 %v1176, %v1228
  %1230 = vmatprep.mubr.bf16.mxu0 %v239
  %1231 = vmatmul.mubr.bf16.gmra.mrb[0].mxu0 %v238
  %v1232 = vpop.f32.mrb[0].mxu0
  %v1233 = vadd.f32 %v1180, %v1232
  %v1234 = vpop.f32.mrb[0].mxu0
  %v1235 = vadd.f32 %v1182, %v1234
  %v1236 = vpop.f32.mrb[0].mxu0
  %v1237 = vadd.f32 %v1184, %v1236
  %v1238 = vpop.f32.mrb[0].mxu0
  %v1239 = vadd.f32 %v1186, %v1238
  %1240 = vdwg.mxu0
  %1241 = vmatprep.subr.bf16.mxu0 %v812
  %1242 = vmatpush1.bf16.msra.mxu0 %v811
  %1243 = vmatprep.subr.bf16.mxu0 %v816
  %1244 = vmatpush1.bf16.msra.mxu0 %v815
  %1245 = vmatprep.subr.bf16.mxu0 %v820
  %1246 = vmatpush1.bf16.msra.mxu0 %v819
  %1247 = vmatprep.subr.bf16.mxu0 %v824
  %1248 = vmatpush1.bf16.msra.mxu0 %v823
  %1249 = vmatprep.subr.bf16.mxu0 0
  %1250 = vmatpush1.bf16.msra.mxu0 0
  %1251 = vmatprep.subr.bf16.mxu0 0
  %1252 = vmatpush1.bf16.msra.mxu0 0
  %1253 = vmatprep.subr.bf16.mxu0 0
  %1254 = vmatpush1.bf16.msra.mxu0 0
  %1255 = vmatprep.subr.bf16.mxu0 0
  %1256 = vmatpush1.bf16.msra.mxu0 0
  %1257 = vmatprep.subr.bf16.mxu0 0
  %1258 = vmatpush1.bf16.msra.mxu0 0
  %1259 = vmatprep.subr.bf16.mxu0 0
  %1260 = vmatpush1.bf16.msra.mxu0 0
  %1261 = vmatprep.subr.bf16.mxu0 0
  %1262 = vmatpush1.bf16.msra.mxu0 0
  %1263 = vmatprep.subr.bf16.mxu0 0
  %1264 = vmatpush1.bf16.msra.mxu0 0
  %1265 = vmatprep.subr.bf16.mxu0 0
  %1266 = vmatpush1.bf16.msra.mxu0 0
  %1267 = vmatprep.subr.bf16.mxu0 0
  %1268 = vmatpush1.bf16.msra.mxu0 0
  %1269 = vmatprep.subr.bf16.mxu0 0
  %1270 = vmatpush1.bf16.msra.mxu0 0
  %1271 = vmatprep.subr.bf16.mxu0 0
  %1272 = vmatpush1.bf16.msra.mxu0 0
  %1273 = vmatprep.mubr.bf16.mxu0 0
  %1274 = vmatmul.mubr.bf16.gmra.mrb[0].mxu0 %v971
  %v1275 = vpop.f32.mrb[0].mxu0
  %v1276 = vadd.f32 %v1223, %v1275
  %v1277 = vpop.f32.mrb[0].mxu0
  %v1278 = vadd.f32 %v1225, %v1277
  %v1279 = vpop.f32.mrb[0].mxu0
  %v1280 = vadd.f32 %v1227, %v1279
  %v1281 = vpop.f32.mrb[0].mxu0
  %v1282 = vadd.f32 %v1229, %v1281
  %1283 = vmatprep.mubr.bf16.mxu0 0
  %1284 = vmatmul.mubr.bf16.gmra.mrb[0].mxu0 %v974
  %v1285 = vpop.f32.mrb[0].mxu0
  %v1286 = vadd.f32 %v1233, %v1285
  %v1287 = vpop.f32.mrb[0].mxu0
  %v1288 = vadd.f32 %v1235, %v1287
  %v1289 = vpop.f32.mrb[0].mxu0
  %v1290 = vadd.f32 %v1237, %v1289
  %v1291 = vpop.f32.mrb[0].mxu0
  %v1292 = vadd.f32 %v1239, %v1291
  %1293 = vdwg.mxu0
  %v1294 = vadd.f32 %v1117, %v1121
  %v1295 = vadd.f32 %v1294, %v1127
  %v1296 = vadd.f32 %v1295, %v1131
  %v1297 = vrot.slane %v1296, 4
  %v1298 = vadd.f32 %v1296, %v1297
  %v1299 = vrot.slane %v1298, 2
  %v1300 = vadd.f32 %v1298, %v1299
  %v1301 = vrot.slane %v1300, 1
  %v1302 = vadd.f32 %v1300, %v1301
  %v1303 = vadd.f32 %v1119, %v1123
  %v1304 = vadd.f32 %v1303, %v1129
  %v1305 = vadd.f32 %v1304, %v1133
  %v1306 = vrot.slane %v1305, 4
  %v1307 = vadd.f32 %v1305, %v1306
  %v1308 = vrot.slane %v1307, 2
  %v1309 = vadd.f32 %v1307, %v1308
  %v1310 = vrot.slane %v1309, 1
  %v1311 = vadd.f32 %v1309, %v1310
  %v1312 = vadd.f32 %v1276, %v1280
  %v1313 = vadd.f32 %v1312, %v1286
  %v1314 = vadd.f32 %v1313, %v1290
  %v1315 = vrot.slane %v1314, 4
  %v1316 = vadd.f32 %v1314, %v1315
  %v1317 = vrot.slane %v1316, 2
  %v1318 = vadd.f32 %v1316, %v1317
  %v1319 = vrot.slane %v1318, 1
  %v1320 = vadd.f32 %v1318, %v1319
  %v1321 = vadd.f32 %v1278, %v1282
  %v1322 = vadd.f32 %v1321, %v1288
  %v1323 = vadd.f32 %v1322, %v1292
  %v1324 = vrot.slane %v1323, 4
  %v1325 = vadd.f32 %v1323, %v1324
  %v1326 = vrot.slane %v1325, 2
  %v1327 = vadd.f32 %v1325, %v1326
  %v1328 = vrot.slane %v1327, 1
  %v1329 = vadd.f32 %v1327, %v1328
  %v1330 = vmul.f32 %v1117, %v1117
  %v1331 = vmul.f32 %v1119, %v1119
  %v1332 = vmul.f32 %v1276, %v1276
  %v1333 = vmul.f32 %v1278, %v1278
  %v1334 = vmul.f32 %v1121, %v1121
  %v1335 = vmul.f32 %v1123, %v1123
  %v1336 = vmul.f32 %v1280, %v1280
  %v1337 = vmul.f32 %v1282, %v1282
  %v1338 = vmul.f32 %v1127, %v1127
  %v1339 = vmul.f32 %v1129, %v1129
  %v1340 = vmul.f32 %v1286, %v1286
  %v1341 = vmul.f32 %v1288, %v1288
  %v1342 = vmul.f32 %v1131, %v1131
  %v1343 = vmul.f32 %v1133, %v1133
  %v1344 = vmul.f32 %v1290, %v1290
  %v1345 = vmul.f32 %v1292, %v1292
  %v1346 = vadd.f32 %v1330, %v1334
  %v1347 = vadd.f32 %v1346, %v1338
  %v1348 = vadd.f32 %v1347, %v1342
  %v1349 = vrot.slane %v1348, 4
  %v1350 = vadd.f32 %v1348, %v1349
  %v1351 = vrot.slane %v1350, 2
  %v1352 = vadd.f32 %v1350, %v1351
  %v1353 = vrot.slane %v1352, 1
  %v1354 = vadd.f32 %v1352, %v1353
  %v1355 = vadd.f32 %v1331, %v1335
  %v1356 = vadd.f32 %v1355, %v1339
  %v1357 = vadd.f32 %v1356, %v1343
  %v1358 = vrot.slane %v1357, 4
  %v1359 = vadd.f32 %v1357, %v1358
  %v1360 = vrot.slane %v1359, 2
  %v1361 = vadd.f32 %v1359, %v1360
  %v1362 = vrot.slane %v1361, 1
  %v1363 = vadd.f32 %v1361, %v1362
  %v1364 = vadd.f32 %v1332, %v1336
  %v1365 = vadd.f32 %v1364, %v1340
  %v1366 = vadd.f32 %v1365, %v1344
  %v1367 = vrot.slane %v1366, 4
  %v1368 = vadd.f32 %v1366, %v1367
  %v1369 = vrot.slane %v1368, 2
  %v1370 = vadd.f32 %v1368, %v1369
  %v1371 = vrot.slane %v1370, 1
  %v1372 = vadd.f32 %v1370, %v1371
  %v1373 = vadd.f32 %v1333, %v1337
  %v1374 = vadd.f32 %v1373, %v1341
  %v1375 = vadd.f32 %v1374, %v1345
  %v1376 = vrot.slane %v1375, 4
  %v1377 = vadd.f32 %v1375, %v1376
  %v1378 = vrot.slane %v1377, 2
  %v1379 = vadd.f32 %v1377, %v1378
  %v1380 = vrot.slane %v1379, 1
  %v1381 = vadd.f32 %v1379, %v1380
  %v1382 = vadd.f32 %v1302, %v1311
  %v1383 = vadd.f32 %v1354, %v1363
  %v1384 = vadd.f32 %v1382, %v1320
  %v1385 = vadd.f32 %v1383, %v1372
  %v1386 = vadd.f32 %v1384, %v1329
  %v1387 = vadd.f32 %v1385, %v1381
  %v1388 = vmul.f32 %v1386, 0.0078125
  %v1389 = vmul.f32 %v1387, 0.0078125
  %v1390 = vmul.f32 %v1388, %v1388
  %v1391 = vsub.f32 %v1389, %v1390
  %v1392 = vmax.f32 %v1391, 0.0
  %v1393 = vadd.f32 %v1392, 1e-05
  %v1394 = vrsqrt.pop %v1393
  %v1395 = vld [vmem:[%s3] sm:$0x1]
  %v1396 = vmul.f32 %v1395, %v1394
  %v1397 = vld [vmem:[%s4] sm:$0x1]
  %v1398 = vmul.f32 %v1388, %v1396
  %v1399 = vsub.f32 %v1397, %v1398
  %v1400 = vlaneseq
  %v1401 = vshrl.u32 %v1400, 7
  %v1402 = vsub.s32 0, %v1401
  %v1403 = vrot.slane %v1396, %v1402
  %v1404 = vmul.f32 %v1117, %v1403
  %v1405 = vmul.f32 %v1119, %v1403
  %v1406 = vmul.f32 %v1276, %v1403
  %v1407 = vmul.f32 %v1278, %v1403
  %v1408 = vmul.f32 %v1121, %v1403
  %v1409 = vmul.f32 %v1123, %v1403
  %v1410 = vmul.f32 %v1280, %v1403
  %v1411 = vmul.f32 %v1282, %v1403
  %v1412 = vmul.f32 %v1127, %v1403
  %v1413 = vmul.f32 %v1129, %v1403
  %v1414 = vmul.f32 %v1286, %v1403
  %v1415 = vmul.f32 %v1288, %v1403
  %v1416 = vmul.f32 %v1131, %v1403
  %v1417 = vmul.f32 %v1133, %v1403
  %v1418 = vmul.f32 %v1290, %v1403
  %v1419 = vmul.f32 %v1292, %v1403
  %v1420 = vlaneseq
  %v1421 = vshrl.u32 %v1420, 7
  %v1422 = vsub.s32 0, %v1421
  %v1423 = vrot.slane %v1399, %v1422
  %v1424 = vadd.f32 %v1404, %v1423
  %v1425 = vadd.f32 %v1405, %v1423
  %v1426 = vadd.f32 %v1406, %v1423
  %v1427 = vadd.f32 %v1407, %v1423
  %v1428 = vadd.f32 %v1408, %v1423
  %v1429 = vadd.f32 %v1409, %v1423
  %v1430 = vadd.f32 %v1410, %v1423
  %v1431 = vadd.f32 %v1411, %v1423
  %v1432 = vadd.f32 %v1412, %v1423
  %v1433 = vadd.f32 %v1413, %v1423
  %v1434 = vadd.f32 %v1414, %v1423
  %v1435 = vadd.f32 %v1415, %v1423
  %v1436 = vadd.f32 %v1416, %v1423
  %v1437 = vadd.f32 %v1417, %v1423
  %v1438 = vadd.f32 %v1418, %v1423
  %v1439 = vadd.f32 %v1419, %v1423
  %v1440 = vmax.f32 %v1424, 0.0
  %v1441 = vmax.f32 %v1425, 0.0
  %v1442 = vmax.f32 %v1426, 0.0
  %v1443 = vmax.f32 %v1427, 0.0
  %v1444 = vmax.f32 %v1428, 0.0
  %v1445 = vmax.f32 %v1429, 0.0
  %v1446 = vmax.f32 %v1430, 0.0
  %v1447 = vmax.f32 %v1431, 0.0
  %v1448 = vmax.f32 %v1432, 0.0
  %v1449 = vmax.f32 %v1433, 0.0
  %v1450 = vmax.f32 %v1434, 0.0
  %v1451 = vmax.f32 %v1435, 0.0
  %v1452 = vmax.f32 %v1436, 0.0
  %v1453 = vmax.f32 %v1437, 0.0
  %v1454 = vmax.f32 %v1438, 0.0
  %v1455 = vmax.f32 %v1439, 0.0
  %1456 = vst [vmem:[%s5] sm:$0xff] %v1440
  %1457 = vst [vmem:[%s5 + $0x8] sm:$0xff] %v1441
  %1458 = vst [vmem:[%s5 + $0x10] sm:$0xff] %v1442
  %1459 = vst [vmem:[%s5 + $0x18] sm:$0xff] %v1443
  %1460 = vst [vmem:[%s5 + $0x20] sm:$0xff] %v1444
  %1461 = vst [vmem:[%s5 + $0x28] sm:$0xff] %v1445
  %1462 = vst [vmem:[%s5 + $0x30] sm:$0xff] %v1446
  %1463 = vst [vmem:[%s5 + $0x38] sm:$0xff] %v1447
  %1464 = vst [vmem:[%s5 + $0x40] sm:$0xff] %v1448
  %1465 = vst [vmem:[%s5 + $0x48] sm:$0xff] %v1449
  %1466 = vst [vmem:[%s5 + $0x50] sm:$0xff] %v1450
  %1467 = vst [vmem:[%s5 + $0x58] sm:$0xff] %v1451
  %1468 = vst [vmem:[%s5 + $0x60] sm:$0xff] %v1452
  %1469 = vst [vmem:[%s5 + $0x68] sm:$0xff] %v1453
  %1470 = vst [vmem:[%s5 + $0x70] sm:$0xff] %v1454
  %1471 = vst [vmem:[%s5 + $0x78] sm:$0xff] %v1455
  // Predicated region
  $region22: #{_lambda_.5} parent=0 // pred_check
    _
  $region23: #{_lambda_.5} parent=0 // pred_check_branch
    %1473 = sbr.rel (0) target = $region25
  $region24: #{_lambda_.5} parent=0 // pred_region
    _
  $region25: #{_lambda_.5} parent=0 // pred_fallthru
    _
  // Predicated region
  $region26: #{_lambda_.5} parent=0 // pred_check
    _
  $region27: #{_lambda_.5} parent=0 // pred_check_branch
    %1475 = sbr.rel (0) target = $region29
  $region28: #{_lambda_.5} parent=0 // pred_region
    _
  $region29: #{_lambda_.5} parent=0 // pred_fallthru
    _

// kernel: _lambda_.6
$region0: #{_lambda_.6}
  #allocation0 [shape = 'u32[]', space=smem, size = 0x4, offset = 0x4, fixed_abs, tag = 'smem constant byte address 0x4 - core index']
  #allocation1 [shape = 'u32[144,128]{1,0:T(1,128)}', space=vmem, size = 0x12000, scoped, tag = 'internal scratch']
  %s0 = inlined_call_operand.vmem [shape: bf16[128,288], index: 0, kind: input, shape index: {}]
  %s1 = inlined_call_operand.vmem [shape: bf16[288,512], index: 1, kind: input, shape index: {}]
  %s2 = inlined_call_operand.vmem [shape: f32[1,512], index: 2, kind: input, shape index: {}]
  %s3 = inlined_call_operand.vmem [shape: f32[1,128], index: 3, kind: input, shape index: {}]
  %s4 = inlined_call_operand.vmem [shape: f32[1,128], index: 4, kind: input, shape index: {}]
  %s5 = inlined_call_operand.vmem [shape: f32[128,512], index: 5, kind: output, shape index: {}]
  %s6 = sld [smem:[#allocation0]]
  $region30: #{_lambda_.6} parent=0
    _
  %s8 = ssub.s32 1, %s6
  %s9 = scalar_select 0, %s8, %s6
  // Predicated region
  $region2: #{_lambda_.6} parent=0 // pred_check
    _
  $region3: #{_lambda_.6} parent=0 // pred_check_branch
    %11 = sbr.rel (0) target = $region5
  $region4: #{_lambda_.6} parent=0 // pred_region
    _
  $region5: #{_lambda_.6} parent=0 // pred_fallthru
    _
  // Predicated region
  $region6: #{_lambda_.6} parent=0 // pred_check
    _
  $region7: #{_lambda_.6} parent=0 // pred_check_branch
    %13 = sbr.rel (0) target = $region9
  $region8: #{_lambda_.6} parent=0 // pred_region
    _
  $region9: #{_lambda_.6} parent=0 // pred_fallthru
    _
  // Predicated region
  $region10: #{_lambda_.6} parent=0 // pred_check
    _
  $region11: #{_lambda_.6} parent=0 // pred_check_branch
    %15 = sbr.rel (0) target = $region13
  $region12: #{_lambda_.6} parent=0 // pred_region
    _
  $region13: #{_lambda_.6} parent=0 // pred_fallthru
    _
  // Predicated region
  $region14: #{_lambda_.6} parent=0 // pred_check
    _
  $region15: #{_lambda_.6} parent=0 // pred_check_branch
    %17 = sbr.rel (0) target = $region17
  $region16: #{_lambda_.6} parent=0 // pred_region
    _
  $region17: #{_lambda_.6} parent=0 // pred_fallthru
    _
  // Predicated region
  $region18: #{_lambda_.6} parent=0 // pred_check
    _
  $region19: #{_lambda_.6} parent=0 // pred_check_branch
    %19 = sbr.rel (0) target = $region21
  $region20: #{_lambda_.6} parent=0 // pred_region
    _
  $region21: #{_lambda_.6} parent=0 // pred_fallthru
    _
  %v21 = vld [vmem:[%s0] sm:$0xff]
  %v22 = vld [vmem:[%s0 + $0x8] sm:$0xf]
  %v23 = vld [vmem:[%s0 + $0xc] sm:$0xff]
  %v24 = vld [vmem:[%s0 + $0x14] sm:$0xf]
  %v25 = vld [vmem:[%s0 + $0x18] sm:$0xff]
  %v26 = vld [vmem:[%s0 + $0x20] sm:$0xf]
  %v27 = vld [vmem:[%s0 + $0x24] sm:$0xff]
  %v28 = vld [vmem:[%s0 + $0x2c] sm:$0xf]
  %v29 = vld [vmem:[%s0 + $0x30] sm:$0xff]
  %v30 = vld [vmem:[%s0 + $0x38] sm:$0xf]
  %v31 = vld [vmem:[%s0 + $0x3c] sm:$0xff]
  %v32 = vld [vmem:[%s0 + $0x44] sm:$0xf]
  %v33 = vld [vmem:[%s0 + $0x48] sm:$0xff]
  %v34 = vld [vmem:[%s0 + $0x50] sm:$0xf]
  %v35 = vld [vmem:[%s0 + $0x54] sm:$0xff]
  %v36 = vld [vmem:[%s0 + $0x5c] sm:$0xf]
  %v37 = vld [vmem:[%s0 + $0x60] sm:$0xff]
  %v38 = vld [vmem:[%s0 + $0x68] sm:$0xf]
  %v39 = vld [vmem:[%s0 + $0x6c] sm:$0xff]
  %v40 = vld [vmem:[%s0 + $0x74] sm:$0xf]
  %v41 = vld [vmem:[%s0 + $0x78] sm:$0xff]
  %v42 = vld [vmem:[%s0 + $0x80] sm:$0xf]
  %v43 = vld [vmem:[%s0 + $0x84] sm:$0xff]
  %v44 = vld [vmem:[%s0 + $0x8c] sm:$0xf]
  %v45 = vld [vmem:[%s0 + $0x90] sm:$0xff]
  %v46 = vld [vmem:[%s0 + $0x98] sm:$0xf]
  %v47 = vld [vmem:[%s0 + $0x9c] sm:$0xff]
  %v48 = vld [vmem:[%s0 + $0xa4] sm:$0xf]
  %v49 = vld [vmem:[%s0 + $0xa8] sm:$0xff]
  %v50 = vld [vmem:[%s0 + $0xb0] sm:$0xf]
  %v51 = vld [vmem:[%s0 + $0xb4] sm:$0xff]
  %v52 = vld [vmem:[%s0 + $0xbc] sm:$0xf]
  %v53 = vld [vmem:[%s1] sm:$0xff]
  %v54 = vld [vmem:[%s1 + $0x8] sm:$0xff]
  %v55 = vld [vmem:[%s1 + $0x10] sm:$0xff]
  %v56 = vld [vmem:[%s1 + $0x18] sm:$0xff]
  %v57 = vld [vmem:[%s1 + $0x20] sm:$0xff]
  %v58 = vld [vmem:[%s1 + $0x28] sm:$0xff]
  %v59 = vld [vmem:[%s1 + $0x30] sm:$0xff]
  %v60 = vld [vmem:[%s1 + $0x38] sm:$0xff]
  %v61 = vld [vmem:[%s1 + $0x40] sm:$0xff]
  %v62 = vld [vmem:[%s1 + $0x48] sm:$0xff]
  %v63 = vld [vmem:[%s1 + $0x50] sm:$0xff]
  %v64 = vld [vmem:[%s1 + $0x58] sm:$0xff]
  %v65 = vld [vmem:[%s1 + $0x60] sm:$0xff]
  %v66 = vld [vmem:[%s1 + $0x68] sm:$0xff]
  %v67 = vld [vmem:[%s1 + $0x70] sm:$0xff]
  %v68 = vld [vmem:[%s1 + $0x78] sm:$0xff]
  %v69 = vld [vmem:[%s1 + $0x80] sm:$0xff]
  %v70 = vld [vmem:[%s1 + $0x88] sm:$0xff]
  %v71 = vld [vmem:[%s1 + $0x90] sm:$0xff]
  %v72 = vld [vmem:[%s1 + $0x98] sm:$0xff]
  %v73 = vld [vmem:[%s1 + $0xa0] sm:$0xff]
  %v74 = vld [vmem:[%s1 + $0xa8] sm:$0xff]
  %v75 = vld [vmem:[%s1 + $0xb0] sm:$0xff]
  %v76 = vld [vmem:[%s1 + $0xb8] sm:$0xff]
  %v77 = vld [vmem:[%s1 + $0xc0] sm:$0xff]
  %v78 = vld [vmem:[%s1 + $0xc8] sm:$0xff]
  %v79 = vld [vmem:[%s1 + $0xd0] sm:$0xff]
  %v80 = vld [vmem:[%s1 + $0xd8] sm:$0xff]
  %v81 = vld [vmem:[%s1 + $0xe0] sm:$0xff]
  %v82 = vld [vmem:[%s1 + $0xe8] sm:$0xff]
  %v83 = vld [vmem:[%s1 + $0xf0] sm:$0xff]
  %v84 = vld [vmem:[%s1 + $0xf8] sm:$0xff]
  %v85 = vld [vmem:[%s1 + $0x100] sm:$0xff]
  %v86 = vld [vmem:[%s1 + $0x108] sm:$0xff]
  %v87 = vld [vmem:[%s1 + $0x110] sm:$0xff]
  %v88 = vld [vmem:[%s1 + $0x118] sm:$0xff]
  %v89 = vld [vmem:[%s1 + $0x120] sm:$0xff]
  %v90 = vld [vmem:[%s1 + $0x128] sm:$0xff]
  %v91 = vld [vmem:[%s1 + $0x130] sm:$0xff]
  %v92 = vld [vmem:[%s1 + $0x138] sm:$0xff]
  %v93 = vld [vmem:[%s1 + $0x140] sm:$0xff]
  %v94 = vld [vmem:[%s1 + $0x148] sm:$0xff]
  %v95 = vld [vmem:[%s1 + $0x150] sm:$0xff]
  %v96 = vld [vmem:[%s1 + $0x158] sm:$0xff]
  %v97 = vld [vmem:[%s1 + $0x160] sm:$0xff]
  %v98 = vld [vmem:[%s1 + $0x168] sm:$0xff]
  %v99 = vld [vmem:[%s1 + $0x170] sm:$0xff]
  %v100 = vld [vmem:[%s1 + $0x178] sm:$0xff]
  %v101 = vld [vmem:[%s1 + $0x180] sm:$0xff]
  %v102 = vld [vmem:[%s1 + $0x188] sm:$0xff]
  %v103 = vld [vmem:[%s1 + $0x190] sm:$0xff]
  %v104 = vld [vmem:[%s1 + $0x198] sm:$0xff]
  %v105 = vld [vmem:[%s1 + $0x1a0] sm:$0xff]
  %v106 = vld [vmem:[%s1 + $0x1a8] sm:$0xff]
  %v107 = vld [vmem:[%s1 + $0x1b0] sm:$0xff]
  %v108 = vld [vmem:[%s1 + $0x1b8] sm:$0xff]
  %v109 = vld [vmem:[%s1 + $0x1c0] sm:$0xff]
  %v110 = vld [vmem:[%s1 + $0x1c8] sm:$0xff]
  %v111 = vld [vmem:[%s1 + $0x1d0] sm:$0xff]
  %v112 = vld [vmem:[%s1 + $0x1d8] sm:$0xff]
  %v113 = vld [vmem:[%s1 + $0x1e0] sm:$0xff]
  %v114 = vld [vmem:[%s1 + $0x1e8] sm:$0xff]
  %v115 = vld [vmem:[%s1 + $0x1f0] sm:$0xff]
  %v116 = vld [vmem:[%s1 + $0x1f8] sm:$0xff]
  %v117 = vld [vmem:[%s1 + $0x200] sm:$0xff]
  %v118 = vld [vmem:[%s1 + $0x208] sm:$0xff]
  %v119 = vld [vmem:[%s1 + $0x210] sm:$0xff]
  %v120 = vld [vmem:[%s1 + $0x218] sm:$0xff]
  %v121 = vld [vmem:[%s1 + $0x220] sm:$0xff]
  %v122 = vld [vmem:[%s1 + $0x228] sm:$0xff]
  %v123 = vld [vmem:[%s1 + $0x230] sm:$0xff]
  %v124 = vld [vmem:[%s1 + $0x238] sm:$0xff]
  %v125 = vld [vmem:[%s2] sm:$0xf]
  %v127 = vlaneseq
  %v128 = vshrl.u32 %v127, 7
  %v129 = vsub.s32 0, %v128
  %v130 = vrot.slane %v125, %v129
  %v131 = vlaneseq
  %v132 = vshrl.u32 %v131, 7
  %v133 = vsub.s32 1, %v132
  %v134 = vrot.slane %v125, %v133
  %v135 = vlaneseq
  %v136 = vshrl.u32 %v135, 7
  %v137 = vsub.s32 2, %v136
  %v138 = vrot.slane %v125, %v137
  %v139 = vlaneseq
  %v140 = vshrl.u32 %v139, 7
  %v141 = vsub.s32 3, %v140
  %v142 = vrot.slane %v125, %v141
  %v179 = vunpack.c.l.b16 %v21
  %v180 = vunpack.c.h.b16 %v21
  %v181 = vunpack.c.l.b16 %v22
  %v182 = vunpack.c.l.b16 %v23
  %v183 = vunpack.c.h.b16 %v23
  %v184 = vunpack.c.l.b16 %v24
  %v185 = vunpack.c.l.b16 %v25
  %v186 = vunpack.c.h.b16 %v25
  %v187 = vunpack.c.l.b16 %v26
  %v188 = vunpack.c.l.b16 %v27
  %v189 = vunpack.c.h.b16 %v27
  %v190 = vunpack.c.l.b16 %v28
  %v191 = vunpack.c.l.b16 %v29
  %v192 = vunpack.c.h.b16 %v29
  %v193 = vunpack.c.l.b16 %v30
  %v194 = vunpack.c.l.b16 %v31
  %v195 = vunpack.c.h.b16 %v31
  %v196 = vunpack.c.l.b16 %v32
  %v197 = vunpack.c.l.b16 %v33
  %v198 = vunpack.c.h.b16 %v33
  %v199 = vunpack.c.l.b16 %v34
  %v200 = vunpack.c.l.b16 %v35
  %v201 = vunpack.c.h.b16 %v35
  %v202 = vunpack.c.l.b16 %v36
  %v203 = vunpack.c.l.b16 %v37
  %v204 = vunpack.c.h.b16 %v37
  %v205 = vunpack.c.l.b16 %v38
  %v206 = vunpack.c.l.b16 %v39
  %v207 = vunpack.c.h.b16 %v39
  %v208 = vunpack.c.l.b16 %v40
  %v209 = vunpack.c.l.b16 %v41
  %v210 = vunpack.c.h.b16 %v41
  %v211 = vunpack.c.l.b16 %v42
  %v212 = vunpack.c.l.b16 %v43
  %v213 = vunpack.c.h.b16 %v43
  %v214 = vunpack.c.l.b16 %v44
  %v215 = vunpack.c.l.b16 %v45
  %v216 = vunpack.c.h.b16 %v45
  %v217 = vunpack.c.l.b16 %v46
  %v218 = vunpack.c.l.b16 %v47
  %v219 = vunpack.c.h.b16 %v47
  %v220 = vunpack.c.l.b16 %v48
  %v221 = vunpack.c.l.b16 %v49
  %v222 = vunpack.c.h.b16 %v49
  %v223 = vunpack.c.l.b16 %v50
  %v224 = vunpack.c.l.b16 %v51
  %v225 = vunpack.c.h.b16 %v51
  %v226 = vunpack.c.l.b16 %v52
  %v227 = vpack.c.b16 %v182, %v179
  %v228 = vpack.c.b16 %v183, %v180
  %v229 = vpack.c.b16 %v184, %v181
  %v230 = vpack.c.b16 %v188, %v185
  %v231 = vpack.c.b16 %v189, %v186
  %v232 = vpack.c.b16 %v190, %v187
  %v233 = vpack.c.b16 %v194, %v191
  %v234 = vpack.c.b16 %v195, %v192
  %v235 = vpack.c.b16 %v196, %v193
  %v236 = vpack.c.b16 %v200, %v197
  %v237 = vpack.c.b16 %v201, %v198
  %v238 = vpack.c.b16 %v202, %v199
  %v239 = vpack.c.b16 %v206, %v203
  %v240 = vpack.c.b16 %v207, %v204
  %v241 = vpack.c.b16 %v208, %v205
  %v242 = vpack.c.b16 %v212, %v209
  %v243 = vpack.c.b16 %v213, %v210
  %v244 = vpack.c.b16 %v214, %v211
  %v245 = vpack.c.b16 %v218, %v215
  %v246 = vpack.c.b16 %v219, %v216
  %v247 = vpack.c.b16 %v220, %v217
  %v248 = vpack.c.b16 %v224, %v221
  %v249 = vpack.c.b16 %v225, %v222
  %v250 = vpack.c.b16 %v226, %v223
  %v339 = vunpack.c.l.b16 %v53
  %v340 = vunpack.c.h.b16 %v53
  %v341 = vunpack.c.l.b16 %v54
  %v342 = vunpack.c.h.b16 %v54
  %v343 = vunpack.c.l.b16 %v55
  %v344 = vunpack.c.h.b16 %v55
  %v345 = vunpack.c.l.b16 %v56
  %v346 = vunpack.c.h.b16 %v56
  %v347 = vunpack.c.l.b16 %v57
  %v348 = vunpack.c.h.b16 %v57
  %v349 = vunpack.c.l.b16 %v58
  %v350 = vunpack.c.h.b16 %v58
  %v351 = vunpack.c.l.b16 %v59
  %v352 = vunpack.c.h.b16 %v59
  %v353 = vunpack.c.l.b16 %v60
  %v354 = vunpack.c.h.b16 %v60
  %v355 = vunpack.c.l.b16 %v61
  %v356 = vunpack.c.h.b16 %v61
  %v357 = vunpack.c.l.b16 %v62
  %v358 = vunpack.c.h.b16 %v62
  %v359 = vunpack.c.l.b16 %v63
  %v360 = vunpack.c.h.b16 %v63
  %v361 = vunpack.c.l.b16 %v64
  %v362 = vunpack.c.h.b16 %v64
  %v363 = vunpack.c.l.b16 %v65
  %v364 = vunpack.c.h.b16 %v65
  %v365 = vunpack.c.l.b16 %v66
  %v366 = vunpack.c.h.b16 %v66
  %v367 = vunpack.c.l.b16 %v67
  %v368 = vunpack.c.h.b16 %v67
  %v369 = vunpack.c.l.b16 %v68
  %v370 = vunpack.c.h.b16 %v68
  %v371 = vunpack.c.l.b16 %v69
  %v372 = vunpack.c.h.b16 %v69
  %v373 = vunpack.c.l.b16 %v70
  %v374 = vunpack.c.h.b16 %v70
  %v375 = vunpack.c.l.b16 %v71
  %v376 = vunpack.c.h.b16 %v71
  %v377 = vunpack.c.l.b16 %v72
  %v378 = vunpack.c.h.b16 %v72
  %v379 = vunpack.c.l.b16 %v73
  %v380 = vunpack.c.h.b16 %v73
  %v381 = vunpack.c.l.b16 %v74
  %v382 = vunpack.c.h.b16 %v74
  %v383 = vunpack.c.l.b16 %v75
  %v384 = vunpack.c.h.b16 %v75
  %v385 = vunpack.c.l.b16 %v76
  %v386 = vunpack.c.h.b16 %v76
  %v387 = vunpack.c.l.b16 %v77
  %v388 = vunpack.c.h.b16 %v77
  %v389 = vunpack.c.l.b16 %v78
  %v390 = vunpack.c.h.b16 %v78
  %v391 = vunpack.c.l.b16 %v79
  %v392 = vunpack.c.h.b16 %v79
  %v393 = vunpack.c.l.b16 %v80
  %v394 = vunpack.c.h.b16 %v80
  %v395 = vunpack.c.l.b16 %v81
  %v396 = vunpack.c.h.b16 %v81
  %v397 = vunpack.c.l.b16 %v82
  %v398 = vunpack.c.h.b16 %v82
  %v399 = vunpack.c.l.b16 %v83
  %v400 = vunpack.c.h.b16 %v83
  %v401 = vunpack.c.l.b16 %v84
  %v402 = vunpack.c.h.b16 %v84
  %v403 = vunpack.c.l.b16 %v85
  %v404 = vunpack.c.h.b16 %v85
  %v405 = vunpack.c.l.b16 %v86
  %v406 = vunpack.c.h.b16 %v86
  %v407 = vunpack.c.l.b16 %v87
  %v408 = vunpack.c.h.b16 %v87
  %v409 = vunpack.c.l.b16 %v88
  %v410 = vunpack.c.h.b16 %v88
  %v411 = vunpack.c.l.b16 %v89
  %v412 = vunpack.c.h.b16 %v89
  %v413 = vunpack.c.l.b16 %v90
  %v414 = vunpack.c.h.b16 %v90
  %v415 = vunpack.c.l.b16 %v91
  %v416 = vunpack.c.h.b16 %v91
  %v417 = vunpack.c.l.b16 %v92
  %v418 = vunpack.c.h.b16 %v92
  %v419 = vunpack.c.l.b16 %v93
  %v420 = vunpack.c.h.b16 %v93
  %v421 = vunpack.c.l.b16 %v94
  %v422 = vunpack.c.h.b16 %v94
  %v423 = vunpack.c.l.b16 %v95
  %v424 = vunpack.c.h.b16 %v95
  %v425 = vunpack.c.l.b16 %v96
  %v426 = vunpack.c.h.b16 %v96
  %v427 = vunpack.c.l.b16 %v97
  %v428 = vunpack.c.h.b16 %v97
  %v429 = vunpack.c.l.b16 %v98
  %v430 = vunpack.c.h.b16 %v98
  %v431 = vunpack.c.l.b16 %v99
  %v432 = vunpack.c.h.b16 %v99
  %v433 = vunpack.c.l.b16 %v100
  %v434 = vunpack.c.h.b16 %v100
  %v435 = vunpack.c.l.b16 %v101
  %v436 = vunpack.c.h.b16 %v101
  %v437 = vunpack.c.l.b16 %v102
  %v438 = vunpack.c.h.b16 %v102
  %v439 = vunpack.c.l.b16 %v103
  %v440 = vunpack.c.h.b16 %v103
  %v441 = vunpack.c.l.b16 %v104
  %v442 = vunpack.c.h.b16 %v104
  %v443 = vunpack.c.l.b16 %v105
  %v444 = vunpack.c.h.b16 %v105
  %v445 = vunpack.c.l.b16 %v106
  %v446 = vunpack.c.h.b16 %v106
  %v447 = vunpack.c.l.b16 %v107
  %v448 = vunpack.c.h.b16 %v107
  %v449 = vunpack.c.l.b16 %v108
  %v450 = vunpack.c.h.b16 %v108
  %v451 = vunpack.c.l.b16 %v109
  %v452 = vunpack.c.h.b16 %v109
  %v453 = vunpack.c.l.b16 %v110
  %v454 = vunpack.c.h.b16 %v110
  %v455 = vunpack.c.l.b16 %v111
  %v456 = vunpack.c.h.b16 %v111
  %v457 = vunpack.c.l.b16 %v112
  %v458 = vunpack.c.h.b16 %v112
  %v459 = vunpack.c.l.b16 %v113
  %v460 = vunpack.c.h.b16 %v113
  %v461 = vunpack.c.l.b16 %v114
  %v462 = vunpack.c.h.b16 %v114
  %v463 = vunpack.c.l.b16 %v115
  %v464 = vunpack.c.h.b16 %v115
  %v465 = vunpack.c.l.b16 %v116
  %v466 = vunpack.c.h.b16 %v116
  %v467 = vunpack.c.l.b16 %v117
  %v468 = vunpack.c.h.b16 %v117
  %v469 = vunpack.c.l.b16 %v118
  %v470 = vunpack.c.h.b16 %v118
  %v471 = vunpack.c.l.b16 %v119
  %v472 = vunpack.c.h.b16 %v119
  %v473 = vunpack.c.l.b16 %v120
  %v474 = vunpack.c.h.b16 %v120
  %v475 = vunpack.c.l.b16 %v121
  %v476 = vunpack.c.h.b16 %v121
  %v477 = vunpack.c.l.b16 %v122
  %v478 = vunpack.c.h.b16 %v122
  %v479 = vunpack.c.l.b16 %v123
  %v480 = vunpack.c.h.b16 %v123
  %v481 = vunpack.c.l.b16 %v124
  %v482 = vunpack.c.h.b16 %v124
  %v483 = vpack.c.b16 %v343, %v339
  %v484 = vpack.c.b16 %v344, %v340
  %v485 = vpack.c.b16 %v345, %v341
  %v486 = vpack.c.b16 %v346, %v342
  %v487 = vpack.c.b16 %v351, %v347
  %v488 = vpack.c.b16 %v352, %v348
  %v489 = vpack.c.b16 %v353, %v349
  %v490 = vpack.c.b16 %v354, %v350
  %v491 = vpack.c.b16 %v359, %v355
  %v492 = vpack.c.b16 %v360, %v356
  %v493 = vpack.c.b16 %v361, %v357
  %v494 = vpack.c.b16 %v362, %v358
  %v495 = vpack.c.b16 %v367, %v363
  %v496 = vpack.c.b16 %v368, %v364
  %v497 = vpack.c.b16 %v369, %v365
  %v498 = vpack.c.b16 %v370, %v366
  %v499 = vpack.c.b16 %v375, %v371
  %v500 = vpack.c.b16 %v376, %v372
  %v501 = vpack.c.b16 %v377, %v373
  %v502 = vpack.c.b16 %v378, %v374
  %v503 = vpack.c.b16 %v383, %v379
  %v504 = vpack.c.b16 %v384, %v380
  %v505 = vpack.c.b16 %v385, %v381
  %v506 = vpack.c.b16 %v386, %v382
  %v507 = vpack.c.b16 %v391, %v387
  %v508 = vpack.c.b16 %v392, %v388
  %v509 = vpack.c.b16 %v393, %v389
  %v510 = vpack.c.b16 %v394, %v390
  %v511 = vpack.c.b16 %v399, %v395
  %v512 = vpack.c.b16 %v400, %v396
  %v513 = vpack.c.b16 %v401, %v397
  %v514 = vpack.c.b16 %v402, %v398
  %v515 = vpack.c.b16 %v407, %v403
  %v516 = vpack.c.b16 %v408, %v404
  %v517 = vpack.c.b16 %v409, %v405
  %v518 = vpack.c.b16 %v410, %v406
  %v519 = vpack.c.b16 %v415, %v411
  %v520 = vpack.c.b16 %v416, %v412
  %v521 = vpack.c.b16 %v417, %v413
  %v522 = vpack.c.b16 %v418, %v414
  %v523 = vpack.c.b16 %v423, %v419
  %v524 = vpack.c.b16 %v424, %v420
  %v525 = vpack.c.b16 %v425, %v421
  %v526 = vpack.c.b16 %v426, %v422
  %v527 = vpack.c.b16 %v431, %v427
  %v528 = vpack.c.b16 %v432, %v428
  %v529 = vpack.c.b16 %v433, %v429
  %v530 = vpack.c.b16 %v434, %v430
  %v531 = vpack.c.b16 %v439, %v435
  %v532 = vpack.c.b16 %v440, %v436
  %v533 = vpack.c.b16 %v441, %v437
  %v534 = vpack.c.b16 %v442, %v438
  %v535 = vpack.c.b16 %v447, %v443
  %v536 = vpack.c.b16 %v448, %v444
  %v537 = vpack.c.b16 %v449, %v445
  %v538 = vpack.c.b16 %v450, %v446
  %v539 = vpack.c.b16 %v455, %v451
  %v540 = vpack.c.b16 %v456, %v452
  %v541 = vpack.c.b16 %v457, %v453
  %v542 = vpack.c.b16 %v458, %v454
  %v543 = vpack.c.b16 %v463, %v459
  %v544 = vpack.c.b16 %v464, %v460
  %v545 = vpack.c.b16 %v465, %v461
  %v546 = vpack.c.b16 %v466, %v462
  %v547 = vpack.c.b16 %v471, %v467
  %v548 = vpack.c.b16 %v472, %v468
  %v549 = vpack.c.b16 %v473, %v469
  %v550 = vpack.c.b16 %v474, %v470
  %v551 = vpack.c.b16 %v479, %v475
  %v552 = vpack.c.b16 %v480, %v476
  %v553 = vpack.c.b16 %v481, %v477
  %v554 = vpack.c.b16 %v482, %v478
  %vm627 = vcmask 261120
  %v629 = vsel %vm627, %v229, 0
  %v632 = vsel %vm627, %v232, 0
  %v635 = vsel %vm627, %v235, 0
  %v638 = vsel %vm627, %v238, 0
  %v641 = vsel %vm627, %v241, 0
  %v644 = vsel %vm627, %v244, 0
  %v647 = vsel %vm627, %v247, 0
  %v650 = vsel %vm627, %v250, 0
  %652 = vmatprep.subr.bf16.mxu0 %v484
  %653 = vmatpush1.bf16.msra.mxu0 %v483
  %654 = vmatprep.subr.bf16.mxu0 %v488
  %655 = vmatpush1.bf16.msra.mxu0 %v487
  %656 = vmatprep.subr.bf16.mxu0 %v492
  %657 = vmatpush1.bf16.msra.mxu0 %v491
  %658 = vmatprep.subr.bf16.mxu0 %v496
  %659 = vmatpush1.bf16.msra.mxu0 %v495
  %660 = vmatprep.subr.bf16.mxu0 %v500
  %661 = vmatpush1.bf16.msra.mxu0 %v499
  %662 = vmatprep.subr.bf16.mxu0 %v504
  %663 = vmatpush1.bf16.msra.mxu0 %v503
  %664 = vmatprep.subr.bf16.mxu0 %v508
  %665 = vmatpush1.bf16.msra.mxu0 %v507
  %666 = vmatprep.subr.bf16.mxu0 %v512
  %667 = vmatpush1.bf16.msra.mxu0 %v511
  %668 = vmatprep.subr.bf16.mxu0 %v516
  %669 = vmatpush1.bf16.msra.mxu0 %v515
  %670 = vmatprep.subr.bf16.mxu0 %v520
  %671 = vmatpush1.bf16.msra.mxu0 %v519
  %672 = vmatprep.subr.bf16.mxu0 %v524
  %673 = vmatpush1.bf16.msra.mxu0 %v523
  %674 = vmatprep.subr.bf16.mxu0 %v528
  %675 = vmatpush1.bf16.msra.mxu0 %v527
  %676 = vmatprep.subr.bf16.mxu0 %v532
  %677 = vmatpush1.bf16.msra.mxu0 %v531
  %678 = vmatprep.subr.bf16.mxu0 %v536
  %679 = vmatpush1.bf16.msra.mxu0 %v535
  %680 = vmatprep.subr.bf16.mxu0 %v540
  %681 = vmatpush1.bf16.msra.mxu0 %v539
  %682 = vmatprep.subr.bf16.mxu0 %v544
  %683 = vmatpush1.bf16.msra.mxu0 %v543
  %684 = vmatprep.mubr.bf16.mxu0 %v228
  %685 = vmatmul.mubr.bf16.gmra.mrb[0].mxu0 %v227
  %v686 = vpop.f32.mrb[0].mxu0
  %v687 = vadd.f32 %v130, %v686
  %v688 = vpop.f32.mrb[0].mxu0
  %v689 = vadd.f32 %v134, %v688
  %v690 = vpop.f32.mrb[0].mxu0
  %v691 = vadd.f32 %v130, %v690
  %v692 = vpop.f32.mrb[0].mxu0
  %v693 = vadd.f32 %v134, %v692
  %694 = vmatprep.mubr.bf16.mxu0 %v231
  %695 = vmatmul.mubr.bf16.gmra.mrb[0].mxu0 %v230
  %v696 = vpop.f32.mrb[0].mxu0
  %v697 = vadd.f32 %v130, %v696
  %v698 = vpop.f32.mrb[0].mxu0
  %v699 = vadd.f32 %v134, %v698
  %v700 = vpop.f32.mrb[0].mxu0
  %v701 = vadd.f32 %v130, %v700
  %v702 = vpop.f32.mrb[0].mxu0
  %v703 = vadd.f32 %v134, %v702
  %704 = vmatprep.mubr.bf16.mxu0 %v234
  %705 = vmatmul.mubr.bf16.gmra.mrb[0].mxu0 %v233
  %v706 = vpop.f32.mrb[0].mxu0
  %v707 = vadd.f32 %v130, %v706
  %v708 = vpop.f32.mrb[0].mxu0
  %v709 = vadd.f32 %v134, %v708
  %v710 = vpop.f32.mrb[0].mxu0
  %v711 = vadd.f32 %v130, %v710
  %v712 = vpop.f32.mrb[0].mxu0
  %v713 = vadd.f32 %v134, %v712
  %714 = vmatprep.mubr.bf16.mxu0 %v237
  %715 = vmatmul.mubr.bf16.gmra.mrb[0].mxu0 %v236
  %v716 = vpop.f32.mrb[0].mxu0
  %v717 = vadd.f32 %v130, %v716
  %v718 = vpop.f32.mrb[0].mxu0
  %v719 = vadd.f32 %v134, %v718
  %v720 = vpop.f32.mrb[0].mxu0
  %v721 = vadd.f32 %v130, %v720
  %v722 = vpop.f32.mrb[0].mxu0
  %v723 = vadd.f32 %v134, %v722
  %724 = vmatprep.mubr.bf16.mxu0 %v240
  %725 = vmatmul.mubr.bf16.gmra.mrb[0].mxu0 %v239
  %v726 = vpop.f32.mrb[0].mxu0
  %v727 = vadd.f32 %v130, %v726
  %v728 = vpop.f32.mrb[0].mxu0
  %v729 = vadd.f32 %v134, %v728
  %v730 = vpop.f32.mrb[0].mxu0
  %v731 = vadd.f32 %v130, %v730
  %v732 = vpop.f32.mrb[0].mxu0
  %v733 = vadd.f32 %v134, %v732
  %734 = vmatprep.mubr.bf16.mxu0 %v243
  %735 = vmatmul.mubr.bf16.gmra.mrb[0].mxu0 %v242
  %v736 = vpop.f32.mrb[0].mxu0
  %v737 = vadd.f32 %v130, %v736
  %v738 = vpop.f32.mrb[0].mxu0
  %v739 = vadd.f32 %v134, %v738
  %v740 = vpop.f32.mrb[0].mxu0
  %v741 = vadd.f32 %v130, %v740
  %v742 = vpop.f32.mrb[0].mxu0
  %v743 = vadd.f32 %v134, %v742
  %744 = vmatprep.mubr.bf16.mxu0 %v246
  %745 = vmatmul.mubr.bf16.gmra.mrb[0].mxu0 %v245
  %v746 = vpop.f32.mrb[0].mxu0
  %v747 = vadd.f32 %v130, %v746
  %v748 = vpop.f32.mrb[0].mxu0
  %v749 = vadd.f32 %v134, %v748
  %v750 = vpop.f32.mrb[0].mxu0
  %v751 = vadd.f32 %v130, %v750
  %v752 = vpop.f32.mrb[0].mxu0
  %v753 = vadd.f32 %v134, %v752
  %754 = vmatprep.mubr.bf16.mxu0 %v249
  %755 = vmatmul.mubr.bf16.gmra.mrb[0].mxu0 %v248
  %v756 = vpop.f32.mrb[0].mxu0
  %v757 = vadd.f32 %v130, %v756
  %v758 = vpop.f32.mrb[0].mxu0
  %v759 = vadd.f32 %v134, %v758
  %v760 = vpop.f32.mrb[0].mxu0
  %v761 = vadd.f32 %v130, %v760
  %v762 = vpop.f32.mrb[0].mxu0
  %v763 = vadd.f32 %v134, %v762
  %764 = vdwg.mxu0
  %765 = vmatprep.subr.bf16.mxu0 %v548
  %766 = vmatpush1.bf16.msra.mxu0 %v547
  %767 = vmatprep.subr.bf16.mxu0 %v552
  %768 = vmatpush1.bf16.msra.mxu0 %v551
  %769 = vmatprep.subr.bf16.mxu0 0
  %770 = vmatpush1.bf16.msra.mxu0 0
  %771 = vmatprep.subr.bf16.mxu0 0
  %772 = vmatpush1.bf16.msra.mxu0 0
  %773 = vmatprep.subr.bf16.mxu0 0
  %774 = vmatpush1.bf16.msra.mxu0 0
  %775 = vmatprep.subr.bf16.mxu0 0
  %776 = vmatpush1.bf16.msra.mxu0 0
  %777 = vmatprep.subr.bf16.mxu0 0
  %778 = vmatpush1.bf16.msra.mxu0 0
  %779 = vmatprep.subr.bf16.mxu0 0
  %780 = vmatpush1.bf16.msra.mxu0 0
  %781 = vmatprep.subr.bf16.mxu0 0
  %782 = vmatpush1.bf16.msra.mxu0 0
  %783 = vmatprep.subr.bf16.mxu0 0
  %784 = vmatpush1.bf16.msra.mxu0 0
  %785 = vmatprep.subr.bf16.mxu0 0
  %786 = vmatpush1.bf16.msra.mxu0 0
  %787 = vmatprep.subr.bf16.mxu0 0
  %788 = vmatpush1.bf16.msra.mxu0 0
  %789 = vmatprep.subr.bf16.mxu0 0
  %790 = vmatpush1.bf16.msra.mxu0 0
  %791 = vmatprep.subr.bf16.mxu0 0
  %792 = vmatpush1.bf16.msra.mxu0 0
  %793 = vmatprep.subr.bf16.mxu0 0
  %794 = vmatpush1.bf16.msra.mxu0 0
  %795 = vmatprep.subr.bf16.mxu0 0
  %796 = vmatpush1.bf16.msra.mxu0 0
  %797 = vmatprep.mubr.bf16.mxu0 0
  %798 = vmatmul.mubr.bf16.gmra.mrb[0].mxu0 %v629
  %v799 = vpop.f32.mrb[0].mxu0
  %v800 = vadd.f32 %v687, %v799
  %v801 = vpop.f32.mrb[0].mxu0
  %v802 = vadd.f32 %v689, %v801
  %v803 = vpop.f32.mrb[0].mxu0
  %v804 = vadd.f32 %v691, %v803
  %v805 = vpop.f32.mrb[0].mxu0
  %v806 = vadd.f32 %v693, %v805
  %807 = vmatprep.mubr.bf16.mxu0 0
  %808 = vmatmul.mubr.bf16.gmra.mrb[0].mxu0 %v632
  %v809 = vpop.f32.mrb[0].mxu0
  %v810 = vadd.f32 %v697, %v809
  %v811 = vpop.f32.mrb[0].mxu0
  %v812 = vadd.f32 %v699, %v811
  %v813 = vpop.f32.mrb[0].mxu0
  %v814 = vadd.f32 %v701, %v813
  %v815 = vpop.f32.mrb[0].mxu0
  %v816 = vadd.f32 %v703, %v815
  %817 = vmatprep.mubr.bf16.mxu0 0
  %818 = vmatmul.mubr.bf16.gmra.mrb[0].mxu0 %v635
  %v819 = vpop.f32.mrb[0].mxu0
  %v820 = vadd.f32 %v707, %v819
  %v821 = vpop.f32.mrb[0].mxu0
  %v822 = vadd.f32 %v709, %v821
  %v823 = vpop.f32.mrb[0].mxu0
  %v824 = vadd.f32 %v711, %v823
  %v825 = vpop.f32.mrb[0].mxu0
  %v826 = vadd.f32 %v713, %v825
  %827 = vmatprep.mubr.bf16.mxu0 0
  %828 = vmatmul.mubr.bf16.gmra.mrb[0].mxu0 %v638
  %v829 = vpop.f32.mrb[0].mxu0
  %v830 = vadd.f32 %v717, %v829
  %v831 = vpop.f32.mrb[0].mxu0
  %v832 = vadd.f32 %v719, %v831
  %v833 = vpop.f32.mrb[0].mxu0
  %v834 = vadd.f32 %v721, %v833
  %v835 = vpop.f32.mrb[0].mxu0
  %v836 = vadd.f32 %v723, %v835
  %837 = vmatprep.mubr.bf16.mxu0 0
  %838 = vmatmul.mubr.bf16.gmra.mrb[0].mxu0 %v641
  %v839 = vpop.f32.mrb[0].mxu0
  %v840 = vadd.f32 %v727, %v839
  %v841 = vpop.f32.mrb[0].mxu0
  %v842 = vadd.f32 %v729, %v841
  %v843 = vpop.f32.mrb[0].mxu0
  %v844 = vadd.f32 %v731, %v843
  %v845 = vpop.f32.mrb[0].mxu0
  %v846 = vadd.f32 %v733, %v845
  %847 = vmatprep.mubr.bf16.mxu0 0
  %848 = vmatmul.mubr.bf16.gmra.mrb[0].mxu0 %v644
  %v849 = vpop.f32.mrb[0].mxu0
  %v850 = vadd.f32 %v737, %v849
  %v851 = vpop.f32.mrb[0].mxu0
  %v852 = vadd.f32 %v739, %v851
  %v853 = vpop.f32.mrb[0].mxu0
  %v854 = vadd.f32 %v741, %v853
  %v855 = vpop.f32.mrb[0].mxu0
  %v856 = vadd.f32 %v743, %v855
  %857 = vmatprep.mubr.bf16.mxu0 0
  %858 = vmatmul.mubr.bf16.gmra.mrb[0].mxu0 %v647
  %v859 = vpop.f32.mrb[0].mxu0
  %v860 = vadd.f32 %v747, %v859
  %v861 = vpop.f32.mrb[0].mxu0
  %v862 = vadd.f32 %v749, %v861
  %v863 = vpop.f32.mrb[0].mxu0
  %v864 = vadd.f32 %v751, %v863
  %v865 = vpop.f32.mrb[0].mxu0
  %v866 = vadd.f32 %v753, %v865
  %867 = vmatprep.mubr.bf16.mxu0 0
  %868 = vmatmul.mubr.bf16.gmra.mrb[0].mxu0 %v650
  %v869 = vpop.f32.mrb[0].mxu0
  %v870 = vadd.f32 %v757, %v869
  %v871 = vpop.f32.mrb[0].mxu0
  %v872 = vadd.f32 %v759, %v871
  %v873 = vpop.f32.mrb[0].mxu0
  %v874 = vadd.f32 %v761, %v873
  %v875 = vpop.f32.mrb[0].mxu0
  %v876 = vadd.f32 %v763, %v875
  %877 = vdwg.mxu0
  %878 = vmatprep.subr.bf16.mxu0 %v486
  %879 = vmatpush1.bf16.msra.mxu0 %v485
  %880 = vmatprep.subr.bf16.mxu0 %v490
  %881 = vmatpush1.bf16.msra.mxu0 %v489
  %882 = vmatprep.subr.bf16.mxu0 %v494
  %883 = vmatpush1.bf16.msra.mxu0 %v493
  %884 = vmatprep.subr.bf16.mxu0 %v498
  %885 = vmatpush1.bf16.msra.mxu0 %v497
  %886 = vmatprep.subr.bf16.mxu0 %v502
  %887 = vmatpush1.bf16.msra.mxu0 %v501
  %888 = vmatprep.subr.bf16.mxu0 %v506
  %889 = vmatpush1.bf16.msra.mxu0 %v505
  %890 = vmatprep.subr.bf16.mxu0 %v510
  %891 = vmatpush1.bf16.msra.mxu0 %v509
  %892 = vmatprep.subr.bf16.mxu0 %v514
  %893 = vmatpush1.bf16.msra.mxu0 %v513
  %894 = vmatprep.subr.bf16.mxu0 %v518
  %895 = vmatpush1.bf16.msra.mxu0 %v517
  %896 = vmatprep.subr.bf16.mxu0 %v522
  %897 = vmatpush1.bf16.msra.mxu0 %v521
  %898 = vmatprep.subr.bf16.mxu0 %v526
  %899 = vmatpush1.bf16.msra.mxu0 %v525
  %900 = vmatprep.subr.bf16.mxu0 %v530
  %901 = vmatpush1.bf16.msra.mxu0 %v529
  %902 = vmatprep.subr.bf16.mxu0 %v534
  %903 = vmatpush1.bf16.msra.mxu0 %v533
  %904 = vmatprep.subr.bf16.mxu0 %v538
  %905 = vmatpush1.bf16.msra.mxu0 %v537
  %906 = vmatprep.subr.bf16.mxu0 %v542
  %907 = vmatpush1.bf16.msra.mxu0 %v541
  %908 = vmatprep.subr.bf16.mxu0 %v546
  %909 = vmatpush1.bf16.msra.mxu0 %v545
  %910 = vmatprep.mubr.bf16.mxu0 %v228
  %911 = vmatmul.mubr.bf16.gmra.mrb[0].mxu0 %v227
  %v912 = vpop.f32.mrb[0].mxu0
  %v913 = vadd.f32 %v138, %v912
  %v914 = vpop.f32.mrb[0].mxu0
  %v915 = vadd.f32 %v142, %v914
  %v916 = vpop.f32.mrb[0].mxu0
  %v917 = vadd.f32 %v138, %v916
  %v918 = vpop.f32.mrb[0].mxu0
  %v919 = vadd.f32 %v142, %v918
  %920 = vmatprep.mubr.bf16.mxu0 %v231
  %921 = vmatmul.mubr.bf16.gmra.mrb[0].mxu0 %v230
  %v922 = vpop.f32.mrb[0].mxu0
  %v923 = vadd.f32 %v138, %v922
  %v924 = vpop.f32.mrb[0].mxu0
  %v925 = vadd.f32 %v142, %v924
  %v926 = vpop.f32.mrb[0].mxu0
  %v927 = vadd.f32 %v138, %v926
  %v928 = vpop.f32.mrb[0].mxu0
  %v929 = vadd.f32 %v142, %v928
  %930 = vmatprep.mubr.bf16.mxu0 %v234
  %931 = vmatmul.mubr.bf16.gmra.mrb[0].mxu0 %v233
  %v932 = vpop.f32.mrb[0].mxu0
  %v933 = vadd.f32 %v138, %v932
  %v934 = vpop.f32.mrb[0].mxu0
  %v935 = vadd.f32 %v142, %v934
  %v936 = vpop.f32.mrb[0].mxu0
  %v937 = vadd.f32 %v138, %v936
  %v938 = vpop.f32.mrb[0].mxu0
  %v939 = vadd.f32 %v142, %v938
  %940 = vmatprep.mubr.bf16.mxu0 %v237
  %941 = vmatmul.mubr.bf16.gmra.mrb[0].mxu0 %v236
  %v942 = vpop.f32.mrb[0].mxu0
  %v943 = vadd.f32 %v138, %v942
  %v944 = vpop.f32.mrb[0].mxu0
  %v945 = vadd.f32 %v142, %v944
  %v946 = vpop.f32.mrb[0].mxu0
  %v947 = vadd.f32 %v138, %v946
  %v948 = vpop.f32.mrb[0].mxu0
  %v949 = vadd.f32 %v142, %v948
  %950 = vmatprep.mubr.bf16.mxu0 %v240
  %951 = vmatmul.mubr.bf16.gmra.mrb[0].mxu0 %v239
  %v952 = vpop.f32.mrb[0].mxu0
  %v953 = vadd.f32 %v138, %v952
  %v954 = vpop.f32.mrb[0].mxu0
  %v955 = vadd.f32 %v142, %v954
  %v956 = vpop.f32.mrb[0].mxu0
  %v957 = vadd.f32 %v138, %v956
  %v958 = vpop.f32.mrb[0].mxu0
  %v959 = vadd.f32 %v142, %v958
  %960 = vmatprep.mubr.bf16.mxu0 %v243
  %961 = vmatmul.mubr.bf16.gmra.mrb[0].mxu0 %v242
  %v962 = vpop.f32.mrb[0].mxu0
  %v963 = vadd.f32 %v138, %v962
  %v964 = vpop.f32.mrb[0].mxu0
  %v965 = vadd.f32 %v142, %v964
  %v966 = vpop.f32.mrb[0].mxu0
  %v967 = vadd.f32 %v138, %v966
  %v968 = vpop.f32.mrb[0].mxu0
  %v969 = vadd.f32 %v142, %v968
  %970 = vmatprep.mubr.bf16.mxu0 %v246
  %971 = vmatmul.mubr.bf16.gmra.mrb[0].mxu0 %v245
  %v972 = vpop.f32.mrb[0].mxu0
  %v973 = vadd.f32 %v138, %v972
  %v974 = vpop.f32.mrb[0].mxu0
  %v975 = vadd.f32 %v142, %v974
  %v976 = vpop.f32.mrb[0].mxu0
  %v977 = vadd.f32 %v138, %v976
  %v978 = vpop.f32.mrb[0].mxu0
  %v979 = vadd.f32 %v142, %v978
  %980 = vmatprep.mubr.bf16.mxu0 %v249
  %981 = vmatmul.mubr.bf16.gmra.mrb[0].mxu0 %v248
  %v982 = vpop.f32.mrb[0].mxu0
  %v983 = vadd.f32 %v138, %v982
  %v984 = vpop.f32.mrb[0].mxu0
  %v985 = vadd.f32 %v142, %v984
  %v986 = vpop.f32.mrb[0].mxu0
  %v987 = vadd.f32 %v138, %v986
  %v988 = vpop.f32.mrb[0].mxu0
  %v989 = vadd.f32 %v142, %v988
  %990 = vdwg.mxu0
  %991 = vmatprep.subr.bf16.mxu0 %v550
  %992 = vmatpush1.bf16.msra.mxu0 %v549
  %993 = vmatprep.subr.bf16.mxu0 %v554
  %994 = vmatpush1.bf16.msra.mxu0 %v553
  %995 = vmatprep.subr.bf16.mxu0 0
  %996 = vmatpush1.bf16.msra.mxu0 0
  %997 = vmatprep.subr.bf16.mxu0 0
  %998 = vmatpush1.bf16.msra.mxu0 0
  %999 = vmatprep.subr.bf16.mxu0 0
  %1000 = vmatpush1.bf16.msra.mxu0 0
  %1001 = vmatprep.subr.bf16.mxu0 0
  %1002 = vmatpush1.bf16.msra.mxu0 0
  %1003 = vmatprep.subr.bf16.mxu0 0
  %1004 = vmatpush1.bf16.msra.mxu0 0
  %1005 = vmatprep.subr.bf16.mxu0 0
  %1006 = vmatpush1.bf16.msra.mxu0 0
  %1007 = vmatprep.subr.bf16.mxu0 0
  %1008 = vmatpush1.bf16.msra.mxu0 0
  %1009 = vmatprep.subr.bf16.mxu0 0
  %1010 = vmatpush1.bf16.msra.mxu0 0
  %1011 = vmatprep.subr.bf16.mxu0 0
  %1012 = vmatpush1.bf16.msra.mxu0 0
  %1013 = vmatprep.subr.bf16.mxu0 0
  %1014 = vmatpush1.bf16.msra.mxu0 0
  %1015 = vmatprep.subr.bf16.mxu0 0
  %1016 = vmatpush1.bf16.msra.mxu0 0
  %1017 = vmatprep.subr.bf16.mxu0 0
  %1018 = vmatpush1.bf16.msra.mxu0 0
  %1019 = vmatprep.subr.bf16.mxu0 0
  %1020 = vmatpush1.bf16.msra.mxu0 0
  %1021 = vmatprep.subr.bf16.mxu0 0
  %1022 = vmatpush1.bf16.msra.mxu0 0
  %1023 = vmatprep.mubr.bf16.mxu0 0
  %1024 = vmatmul.mubr.bf16.gmra.mrb[0].mxu0 %v629
  %v1025 = vpop.f32.mrb[0].mxu0
  %v1026 = vadd.f32 %v913, %v1025
  %v1027 = vpop.f32.mrb[0].mxu0
  %v1028 = vadd.f32 %v915, %v1027
  %v1029 = vpop.f32.mrb[0].mxu0
  %v1030 = vadd.f32 %v917, %v1029
  %v1031 = vpop.f32.mrb[0].mxu0
  %v1032 = vadd.f32 %v919, %v1031
  %1033 = vmatprep.mubr.bf16.mxu0 0
  %1034 = vmatmul.mubr.bf16.gmra.mrb[0].mxu0 %v632
  %v1035 = vpop.f32.mrb[0].mxu0
  %v1036 = vadd.f32 %v923, %v1035
  %v1037 = vpop.f32.mrb[0].mxu0
  %v1038 = vadd.f32 %v925, %v1037
  %v1039 = vpop.f32.mrb[0].mxu0
  %v1040 = vadd.f32 %v927, %v1039
  %v1041 = vpop.f32.mrb[0].mxu0
  %v1042 = vadd.f32 %v929, %v1041
  %1043 = vmatprep.mubr.bf16.mxu0 0
  %1044 = vmatmul.mubr.bf16.gmra.mrb[0].mxu0 %v635
  %v1045 = vpop.f32.mrb[0].mxu0
  %v1046 = vadd.f32 %v933, %v1045
  %v1047 = vpop.f32.mrb[0].mxu0
  %v1048 = vadd.f32 %v935, %v1047
  %v1049 = vpop.f32.mrb[0].mxu0
  %v1050 = vadd.f32 %v937, %v1049
  %v1051 = vpop.f32.mrb[0].mxu0
  %v1052 = vadd.f32 %v939, %v1051
  %1053 = vmatprep.mubr.bf16.mxu0 0
  %1054 = vmatmul.mubr.bf16.gmra.mrb[0].mxu0 %v638
  %v1055 = vpop.f32.mrb[0].mxu0
  %v1056 = vadd.f32 %v943, %v1055
  %v1057 = vpop.f32.mrb[0].mxu0
  %v1058 = vadd.f32 %v945, %v1057
  %v1059 = vpop.f32.mrb[0].mxu0
  %v1060 = vadd.f32 %v947, %v1059
  %v1061 = vpop.f32.mrb[0].mxu0
  %v1062 = vadd.f32 %v949, %v1061
  %1063 = vmatprep.mubr.bf16.mxu0 0
  %1064 = vmatmul.mubr.bf16.gmra.mrb[0].mxu0 %v641
  %v1065 = vpop.f32.mrb[0].mxu0
  %v1066 = vadd.f32 %v953, %v1065
  %v1067 = vpop.f32.mrb[0].mxu0
  %v1068 = vadd.f32 %v955, %v1067
  %v1069 = vpop.f32.mrb[0].mxu0
  %v1070 = vadd.f32 %v957, %v1069
  %v1071 = vpop.f32.mrb[0].mxu0
  %v1072 = vadd.f32 %v959, %v1071
  %1073 = vmatprep.mubr.bf16.mxu0 0
  %1074 = vmatmul.mubr.bf16.gmra.mrb[0].mxu0 %v644
  %v1075 = vpop.f32.mrb[0].mxu0
  %v1076 = vadd.f32 %v963, %v1075
  %v1077 = vpop.f32.mrb[0].mxu0
  %v1078 = vadd.f32 %v965, %v1077
  %v1079 = vpop.f32.mrb[0].mxu0
  %v1080 = vadd.f32 %v967, %v1079
  %v1081 = vpop.f32.mrb[0].mxu0
  %v1082 = vadd.f32 %v969, %v1081
  %1083 = vmatprep.mubr.bf16.mxu0 0
  %1084 = vmatmul.mubr.bf16.gmra.mrb[0].mxu0 %v647
  %v1085 = vpop.f32.mrb[0].mxu0
  %v1086 = vadd.f32 %v973, %v1085
  %v1087 = vpop.f32.mrb[0].mxu0
  %v1088 = vadd.f32 %v975, %v1087
  %v1089 = vpop.f32.mrb[0].mxu0
  %v1090 = vadd.f32 %v977, %v1089
  %v1091 = vpop.f32.mrb[0].mxu0
  %v1092 = vadd.f32 %v979, %v1091
  %1093 = vmatprep.mubr.bf16.mxu0 0
  %1094 = vmatmul.mubr.bf16.gmra.mrb[0].mxu0 %v650
  %v1095 = vpop.f32.mrb[0].mxu0
  %v1096 = vadd.f32 %v983, %v1095
  %v1097 = vpop.f32.mrb[0].mxu0
  %v1098 = vadd.f32 %v985, %v1097
  %v1099 = vpop.f32.mrb[0].mxu0
  %v1100 = vadd.f32 %v987, %v1099
  %v1101 = vpop.f32.mrb[0].mxu0
  %v1102 = vadd.f32 %v989, %v1101
  %1103 = vdwg.mxu0
  %v1104 = vadd.f32 %v800, %v804
  %v1105 = vadd.f32 %v1104, %v810
  %v1106 = vadd.f32 %v1105, %v814
  %v1107 = vadd.f32 %v1106, %v820
  %v1108 = vadd.f32 %v1107, %v824
  %v1109 = vadd.f32 %v1108, %v830
  %v1110 = vadd.f32 %v1109, %v834
  %v1111 = vadd.f32 %v1110, %v840
  %v1112 = vadd.f32 %v1111, %v844
  %v1113 = vadd.f32 %v1112, %v850
  %v1114 = vadd.f32 %v1113, %v854
  %v1115 = vadd.f32 %v1114, %v860
  %v1116 = vadd.f32 %v1115, %v864
  %v1117 = vadd.f32 %v1116, %v870
  %v1118 = vadd.f32 %v1117, %v874
  %v1119 = vrot.slane %v1118, 4
  %v1120 = vadd.f32 %v1118, %v1119
  %v1121 = vrot.slane %v1120, 2
  %v1122 = vadd.f32 %v1120, %v1121
  %v1123 = vrot.slane %v1122, 1
  %v1124 = vadd.f32 %v1122, %v1123
  %v1125 = vadd.f32 %v802, %v806
  %v1126 = vadd.f32 %v1125, %v812
  %v1127 = vadd.f32 %v1126, %v816
  %v1128 = vadd.f32 %v1127, %v822
  %v1129 = vadd.f32 %v1128, %v826
  %v1130 = vadd.f32 %v1129, %v832
  %v1131 = vadd.f32 %v1130, %v836
  %v1132 = vadd.f32 %v1131, %v842
  %v1133 = vadd.f32 %v1132, %v846
  %v1134 = vadd.f32 %v1133, %v852
  %v1135 = vadd.f32 %v1134, %v856
  %v1136 = vadd.f32 %v1135, %v862
  %v1137 = vadd.f32 %v1136, %v866
  %v1138 = vadd.f32 %v1137, %v872
  %v1139 = vadd.f32 %v1138, %v876
  %v1140 = vrot.slane %v1139, 4
  %v1141 = vadd.f32 %v1139, %v1140
  %v1142 = vrot.slane %v1141, 2
  %v1143 = vadd.f32 %v1141, %v1142
  %v1144 = vrot.slane %v1143, 1
  %v1145 = vadd.f32 %v1143, %v1144
  %v1146 = vadd.f32 %v1026, %v1030
  %v1147 = vadd.f32 %v1146, %v1036
  %v1148 = vadd.f32 %v1147, %v1040
  %v1149 = vadd.f32 %v1148, %v1046
  %v1150 = vadd.f32 %v1149, %v1050
  %v1151 = vadd.f32 %v1150, %v1056
  %v1152 = vadd.f32 %v1151, %v1060
  %v1153 = vadd.f32 %v1152, %v1066
  %v1154 = vadd.f32 %v1153, %v1070
  %v1155 = vadd.f32 %v1154, %v1076
  %v1156 = vadd.f32 %v1155, %v1080
  %v1157 = vadd.f32 %v1156, %v1086
  %v1158 = vadd.f32 %v1157, %v1090
  %v1159 = vadd.f32 %v1158, %v1096
  %v1160 = vadd.f32 %v1159, %v1100
  %v1161 = vrot.slane %v1160, 4
  %v1162 = vadd.f32 %v1160, %v1161
  %v1163 = vrot.slane %v1162, 2
  %v1164 = vadd.f32 %v1162, %v1163
  %v1165 = vrot.slane %v1164, 1
  %v1166 = vadd.f32 %v1164, %v1165
  %v1167 = vadd.f32 %v1028, %v1032
  %v1168 = vadd.f32 %v1167, %v1038
  %v1169 = vadd.f32 %v1168, %v1042
  %v1170 = vadd.f32 %v1169, %v1048
  %v1171 = vadd.f32 %v1170, %v1052
  %v1172 = vadd.f32 %v1171, %v1058
  %v1173 = vadd.f32 %v1172, %v1062
  %v1174 = vadd.f32 %v1173, %v1068
  %v1175 = vadd.f32 %v1174, %v1072
  %v1176 = vadd.f32 %v1175, %v1078
  %v1177 = vadd.f32 %v1176, %v1082
  %v1178 = vadd.f32 %v1177, %v1088
  %v1179 = vadd.f32 %v1178, %v1092
  %v1180 = vadd.f32 %v1179, %v1098
  %v1181 = vadd.f32 %v1180, %v1102
  %v1182 = vrot.slane %v1181, 4
  %v1183 = vadd.f32 %v1181, %v1182
  %v1184 = vrot.slane %v1183, 2
  %v1185 = vadd.f32 %v1183, %v1184
  %v1186 = vrot.slane %v1185, 1
  %v1187 = vadd.f32 %v1185, %v1186
  %v1188 = vmul.f32 %v800, %v800
  %v1189 = vmul.f32 %v802, %v802
  %v1190 = vmul.f32 %v1026, %v1026
  %v1191 = vmul.f32 %v1028, %v1028
  %v1192 = vmul.f32 %v804, %v804
  %v1193 = vmul.f32 %v806, %v806
  %v1194 = vmul.f32 %v1030, %v1030
  %v1195 = vmul.f32 %v1032, %v1032
  %v1196 = vmul.f32 %v810, %v810
  %v1197 = vmul.f32 %v812, %v812
  %v1198 = vmul.f32 %v1036, %v1036
  %v1199 = vmul.f32 %v1038, %v1038
  %v1200 = vmul.f32 %v814, %v814
  %v1201 = vmul.f32 %v816, %v816
  %v1202 = vmul.f32 %v1040, %v1040
  %v1203 = vmul.f32 %v1042, %v1042
  %v1204 = vmul.f32 %v820, %v820
  %v1205 = vmul.f32 %v822, %v822
  %v1206 = vmul.f32 %v1046, %v1046
  %v1207 = vmul.f32 %v1048, %v1048
  %v1208 = vmul.f32 %v824, %v824
  %v1209 = vmul.f32 %v826, %v826
  %v1210 = vmul.f32 %v1050, %v1050
  %v1211 = vmul.f32 %v1052, %v1052
  %v1212 = vmul.f32 %v830, %v830
  %v1213 = vmul.f32 %v832, %v832
  %v1214 = vmul.f32 %v1056, %v1056
  %v1215 = vmul.f32 %v1058, %v1058
  %v1216 = vmul.f32 %v834, %v834
  %v1217 = vmul.f32 %v836, %v836
  %v1218 = vmul.f32 %v1060, %v1060
  %v1219 = vmul.f32 %v1062, %v1062
  %v1220 = vmul.f32 %v840, %v840
  %v1221 = vmul.f32 %v842, %v842
  %v1222 = vmul.f32 %v1066, %v1066
  %v1223 = vmul.f32 %v1068, %v1068
  %v1224 = vmul.f32 %v844, %v844
  %v1225 = vmul.f32 %v846, %v846
  %v1226 = vmul.f32 %v1070, %v1070
  %v1227 = vmul.f32 %v1072, %v1072
  %v1228 = vmul.f32 %v850, %v850
  %v1229 = vmul.f32 %v852, %v852
  %v1230 = vmul.f32 %v1076, %v1076
  %v1231 = vmul.f32 %v1078, %v1078
  %v1232 = vmul.f32 %v854, %v854
  %v1233 = vmul.f32 %v856, %v856
  %v1234 = vmul.f32 %v1080, %v1080
  %v1235 = vmul.f32 %v1082, %v1082
  %v1236 = vmul.f32 %v860, %v860
  %v1237 = vmul.f32 %v862, %v862
  %v1238 = vmul.f32 %v1086, %v1086
  %v1239 = vmul.f32 %v1088, %v1088
  %v1240 = vmul.f32 %v864, %v864
  %v1241 = vmul.f32 %v866, %v866
  %v1242 = vmul.f32 %v1090, %v1090
  %v1243 = vmul.f32 %v1092, %v1092
  %v1244 = vmul.f32 %v870, %v870
  %v1245 = vmul.f32 %v872, %v872
  %v1246 = vmul.f32 %v1096, %v1096
  %v1247 = vmul.f32 %v1098, %v1098
  %v1248 = vmul.f32 %v874, %v874
  %v1249 = vmul.f32 %v876, %v876
  %v1250 = vmul.f32 %v1100, %v1100
  %v1251 = vmul.f32 %v1102, %v1102
  %v1252 = vadd.f32 %v1188, %v1192
  %v1253 = vadd.f32 %v1252, %v1196
  %v1254 = vadd.f32 %v1253, %v1200
  %v1255 = vadd.f32 %v1254, %v1204
  %v1256 = vadd.f32 %v1255, %v1208
  %v1257 = vadd.f32 %v1256, %v1212
  %v1258 = vadd.f32 %v1257, %v1216
  %v1259 = vadd.f32 %v1258, %v1220
  %v1260 = vadd.f32 %v1259, %v1224
  %v1261 = vadd.f32 %v1260, %v1228
  %v1262 = vadd.f32 %v1261, %v1232
  %v1263 = vadd.f32 %v1262, %v1236
  %v1264 = vadd.f32 %v1263, %v1240
  %v1265 = vadd.f32 %v1264, %v1244
  %v1266 = vadd.f32 %v1265, %v1248
  %v1267 = vrot.slane %v1266, 4
  %v1268 = vadd.f32 %v1266, %v1267
  %v1269 = vrot.slane %v1268, 2
  %v1270 = vadd.f32 %v1268, %v1269
  %v1271 = vrot.slane %v1270, 1
  %v1272 = vadd.f32 %v1270, %v1271
  %v1273 = vadd.f32 %v1189, %v1193
  %v1274 = vadd.f32 %v1273, %v1197
  %v1275 = vadd.f32 %v1274, %v1201
  %v1276 = vadd.f32 %v1275, %v1205
  %v1277 = vadd.f32 %v1276, %v1209
  %v1278 = vadd.f32 %v1277, %v1213
  %v1279 = vadd.f32 %v1278, %v1217
  %v1280 = vadd.f32 %v1279, %v1221
  %v1281 = vadd.f32 %v1280, %v1225
  %v1282 = vadd.f32 %v1281, %v1229
  %v1283 = vadd.f32 %v1282, %v1233
  %v1284 = vadd.f32 %v1283, %v1237
  %v1285 = vadd.f32 %v1284, %v1241
  %v1286 = vadd.f32 %v1285, %v1245
  %v1287 = vadd.f32 %v1286, %v1249
  %v1288 = vrot.slane %v1287, 4
  %v1289 = vadd.f32 %v1287, %v1288
  %v1290 = vrot.slane %v1289, 2
  %v1291 = vadd.f32 %v1289, %v1290
  %v1292 = vrot.slane %v1291, 1
  %v1293 = vadd.f32 %v1291, %v1292
  %v1294 = vadd.f32 %v1190, %v1194
  %v1295 = vadd.f32 %v1294, %v1198
  %v1296 = vadd.f32 %v1295, %v1202
  %v1297 = vadd.f32 %v1296, %v1206
  %v1298 = vadd.f32 %v1297, %v1210
  %v1299 = vadd.f32 %v1298, %v1214
  %v1300 = vadd.f32 %v1299, %v1218
  %v1301 = vadd.f32 %v1300, %v1222
  %v1302 = vadd.f32 %v1301, %v1226
  %v1303 = vadd.f32 %v1302, %v1230
  %v1304 = vadd.f32 %v1303, %v1234
  %v1305 = vadd.f32 %v1304, %v1238
  %v1306 = vadd.f32 %v1305, %v1242
  %v1307 = vadd.f32 %v1306, %v1246
  %v1308 = vadd.f32 %v1307, %v1250
  %v1309 = vrot.slane %v1308, 4
  %v1310 = vadd.f32 %v1308, %v1309
  %v1311 = vrot.slane %v1310, 2
  %v1312 = vadd.f32 %v1310, %v1311
  %v1313 = vrot.slane %v1312, 1
  %v1314 = vadd.f32 %v1312, %v1313
  %v1315 = vadd.f32 %v1191, %v1195
  %v1316 = vadd.f32 %v1315, %v1199
  %v1317 = vadd.f32 %v1316, %v1203
  %v1318 = vadd.f32 %v1317, %v1207
  %v1319 = vadd.f32 %v1318, %v1211
  %v1320 = vadd.f32 %v1319, %v1215
  %v1321 = vadd.f32 %v1320, %v1219
  %v1322 = vadd.f32 %v1321, %v1223
  %v1323 = vadd.f32 %v1322, %v1227
  %v1324 = vadd.f32 %v1323, %v1231
  %v1325 = vadd.f32 %v1324, %v1235
  %v1326 = vadd.f32 %v1325, %v1239
  %v1327 = vadd.f32 %v1326, %v1243
  %v1328 = vadd.f32 %v1327, %v1247
  %v1329 = vadd.f32 %v1328, %v1251
  %v1330 = vrot.slane %v1329, 4
  %v1331 = vadd.f32 %v1329, %v1330
  %v1332 = vrot.slane %v1331, 2
  %v1333 = vadd.f32 %v1331, %v1332
  %v1334 = vrot.slane %v1333, 1
  %v1335 = vadd.f32 %v1333, %v1334
  %v1336 = vadd.f32 %v1124, %v1145
  %v1337 = vadd.f32 %v1272, %v1293
  %v1338 = vadd.f32 %v1336, %v1166
  %v1339 = vadd.f32 %v1337, %v1314
  %v1340 = vadd.f32 %v1338, %v1187
  %v1341 = vadd.f32 %v1339, %v1335
  %v1342 = vmul.f32 %v1340, 0.001953125
  %v1343 = vmul.f32 %v1341, 0.001953125
  %v1344 = vmul.f32 %v1342, %v1342
  %v1345 = vsub.f32 %v1343, %v1344
  %v1346 = vmax.f32 %v1345, 0.0
  %v1347 = vadd.f32 %v1346, 1e-05
  %v1348 = vrsqrt.pop %v1347
  %v1349 = vld [vmem:[%s3] sm:$0x1]
  %v1350 = vmul.f32 %v1349, %v1348
  %v1351 = vld [vmem:[%s4] sm:$0x1]
  %v1352 = vmul.f32 %v1342, %v1350
  %v1353 = vsub.f32 %v1351, %v1352
  %v1354 = vlaneseq
  %v1355 = vshrl.u32 %v1354, 7
  %v1356 = vsub.s32 0, %v1355
  %v1357 = vrot.slane %v1350, %v1356
  %v1358 = vmul.f32 %v800, %v1357
  %v1359 = vmul.f32 %v802, %v1357
  %v1360 = vmul.f32 %v1026, %v1357
  %v1361 = vmul.f32 %v1028, %v1357
  %v1362 = vmul.f32 %v804, %v1357
  %v1363 = vmul.f32 %v806, %v1357
  %v1364 = vmul.f32 %v1030, %v1357
  %v1365 = vmul.f32 %v1032, %v1357
  %v1366 = vmul.f32 %v810, %v1357
  %v1367 = vmul.f32 %v812, %v1357
  %v1368 = vmul.f32 %v1036, %v1357
  %v1369 = vmul.f32 %v1038, %v1357
  %v1370 = vmul.f32 %v814, %v1357
  %v1371 = vmul.f32 %v816, %v1357
  %v1372 = vmul.f32 %v1040, %v1357
  %v1373 = vmul.f32 %v1042, %v1357
  %v1374 = vmul.f32 %v820, %v1357
  %v1375 = vmul.f32 %v822, %v1357
  %v1376 = vmul.f32 %v1046, %v1357
  %v1377 = vmul.f32 %v1048, %v1357
  %v1378 = vmul.f32 %v824, %v1357
  %v1379 = vmul.f32 %v826, %v1357
  %v1380 = vmul.f32 %v1050, %v1357
  %v1381 = vmul.f32 %v1052, %v1357
  %v1382 = vmul.f32 %v830, %v1357
  %v1383 = vmul.f32 %v832, %v1357
  %v1384 = vmul.f32 %v1056, %v1357
  %v1385 = vmul.f32 %v1058, %v1357
  %v1386 = vmul.f32 %v834, %v1357
  %v1387 = vmul.f32 %v836, %v1357
  %v1388 = vmul.f32 %v1060, %v1357
  %v1389 = vmul.f32 %v1062, %v1357
  %v1390 = vmul.f32 %v840, %v1357
  %v1391 = vmul.f32 %v842, %v1357
  %v1392 = vmul.f32 %v1066, %v1357
  %v1393 = vmul.f32 %v1068, %v1357
  %v1394 = vmul.f32 %v844, %v1357
  %v1395 = vmul.f32 %v846, %v1357
  %v1396 = vmul.f32 %v1070, %v1357
  %v1397 = vmul.f32 %v1072, %v1357
  %v1398 = vmul.f32 %v850, %v1357
  %v1399 = vmul.f32 %v852, %v1357
  %v1400 = vmul.f32 %v1076, %v1357
  %v1401 = vmul.f32 %v1078, %v1357
  %v1402 = vmul.f32 %v854, %v1357
  %v1403 = vmul.f32 %v856, %v1357
  %v1404 = vmul.f32 %v1080, %v1357
  %v1405 = vmul.f32 %v1082, %v1357
  %v1406 = vmul.f32 %v860, %v1357
  %v1407 = vmul.f32 %v862, %v1357
  %v1408 = vmul.f32 %v1086, %v1357
  %v1409 = vmul.f32 %v1088, %v1357
  %v1410 = vmul.f32 %v864, %v1357
  %v1411 = vmul.f32 %v866, %v1357
  %v1412 = vmul.f32 %v1090, %v1357
  %v1413 = vmul.f32 %v1092, %v1357
  %v1414 = vmul.f32 %v870, %v1357
  %v1415 = vmul.f32 %v872, %v1357
  %v1416 = vmul.f32 %v1096, %v1357
  %v1417 = vmul.f32 %v1098, %v1357
  %v1418 = vmul.f32 %v874, %v1357
  %v1419 = vmul.f32 %v876, %v1357
  %v1420 = vmul.f32 %v1100, %v1357
  %v1421 = vmul.f32 %v1102, %v1357
  %v1422 = vlaneseq
  %v1423 = vshrl.u32 %v1422, 7
  %v1424 = vsub.s32 0, %v1423
  %v1425 = vrot.slane %v1353, %v1424
  %v1426 = vadd.f32 %v1358, %v1425
  %v1427 = vadd.f32 %v1359, %v1425
  %v1428 = vadd.f32 %v1360, %v1425
  %v1429 = vadd.f32 %v1361, %v1425
  %v1430 = vadd.f32 %v1362, %v1425
  %v1431 = vadd.f32 %v1363, %v1425
  %v1432 = vadd.f32 %v1364, %v1425
  %v1433 = vadd.f32 %v1365, %v1425
  %v1434 = vadd.f32 %v1366, %v1425
  %v1435 = vadd.f32 %v1367, %v1425
  %v1436 = vadd.f32 %v1368, %v1425
  %v1437 = vadd.f32 %v1369, %v1425
  %v1438 = vadd.f32 %v1370, %v1425
  %v1439 = vadd.f32 %v1371, %v1425
  %v1440 = vadd.f32 %v1372, %v1425
  %v1441 = vadd.f32 %v1373, %v1425
  %v1442 = vadd.f32 %v1374, %v1425
  %v1443 = vadd.f32 %v1375, %v1425
  %v1444 = vadd.f32 %v1376, %v1425
  %v1445 = vadd.f32 %v1377, %v1425
  %v1446 = vadd.f32 %v1378, %v1425
  %v1447 = vadd.f32 %v1379, %v1425
  %v1448 = vadd.f32 %v1380, %v1425
  %v1449 = vadd.f32 %v1381, %v1425
  %v1450 = vadd.f32 %v1382, %v1425
  %v1451 = vadd.f32 %v1383, %v1425
  %v1452 = vadd.f32 %v1384, %v1425
  %v1453 = vadd.f32 %v1385, %v1425
  %v1454 = vadd.f32 %v1386, %v1425
  %v1455 = vadd.f32 %v1387, %v1425
  %v1456 = vadd.f32 %v1388, %v1425
  %v1457 = vadd.f32 %v1389, %v1425
  %v1458 = vadd.f32 %v1390, %v1425
  %v1459 = vadd.f32 %v1391, %v1425
  %v1460 = vadd.f32 %v1392, %v1425
  %v1461 = vadd.f32 %v1393, %v1425
  %v1462 = vadd.f32 %v1394, %v1425
  %v1463 = vadd.f32 %v1395, %v1425
  %v1464 = vadd.f32 %v1396, %v1425
  %v1465 = vadd.f32 %v1397, %v1425
  %v1466 = vadd.f32 %v1398, %v1425
  %v1467 = vadd.f32 %v1399, %v1425
  %v1468 = vadd.f32 %v1400, %v1425
  %v1469 = vadd.f32 %v1401, %v1425
  %v1470 = vadd.f32 %v1402, %v1425
  %v1471 = vadd.f32 %v1403, %v1425
  %v1472 = vadd.f32 %v1404, %v1425
  %v1473 = vadd.f32 %v1405, %v1425
  %v1474 = vadd.f32 %v1406, %v1425
  %v1475 = vadd.f32 %v1407, %v1425
  %v1476 = vadd.f32 %v1408, %v1425
  %v1477 = vadd.f32 %v1409, %v1425
  %v1478 = vadd.f32 %v1410, %v1425
  %v1479 = vadd.f32 %v1411, %v1425
  %v1480 = vadd.f32 %v1412, %v1425
  %v1481 = vadd.f32 %v1413, %v1425
  %v1482 = vadd.f32 %v1414, %v1425
  %v1483 = vadd.f32 %v1415, %v1425
  %v1484 = vadd.f32 %v1416, %v1425
  %v1485 = vadd.f32 %v1417, %v1425
  %v1486 = vadd.f32 %v1418, %v1425
  %v1487 = vadd.f32 %v1419, %v1425
  %v1488 = vadd.f32 %v1420, %v1425
  %v1489 = vadd.f32 %v1421, %v1425
  %v1490 = vmax.f32 %v1426, 0.0
  %v1491 = vmax.f32 %v1427, 0.0
  %v1492 = vmax.f32 %v1428, 0.0
  %v1493 = vmax.f32 %v1429, 0.0
  %v1494 = vmax.f32 %v1430, 0.0
  %v1495 = vmax.f32 %v1431, 0.0
  %v1496 = vmax.f32 %v1432, 0.0
  %v1497 = vmax.f32 %v1433, 0.0
  %v1498 = vmax.f32 %v1434, 0.0
  %v1499 = vmax.f32 %v1435, 0.0
  %v1500 = vmax.f32 %v1436, 0.0
  %v1501 = vmax.f32 %v1437, 0.0
  %v1502 = vmax.f32 %v1438, 0.0
  %v1503 = vmax.f32 %v1439, 0.0
  %v1504 = vmax.f32 %v1440, 0.0
  %v1505 = vmax.f32 %v1441, 0.0
  %v1506 = vmax.f32 %v1442, 0.0
  %v1507 = vmax.f32 %v1443, 0.0
  %v1508 = vmax.f32 %v1444, 0.0
  %v1509 = vmax.f32 %v1445, 0.0
  %v1510 = vmax.f32 %v1446, 0.0
  %v1511 = vmax.f32 %v1447, 0.0
  %v1512 = vmax.f32 %v1448, 0.0
  %v1513 = vmax.f32 %v1449, 0.0
  %v1514 = vmax.f32 %v1450, 0.0
  %v1515 = vmax.f32 %v1451, 0.0
  %v1516 = vmax.f32 %v1452, 0.0
  %v1517 = vmax.f32 %v1453, 0.0
  %v1518 = vmax.f32 %v1454, 0.0
  %v1519 = vmax.f32 %v1455, 0.0
  %v1520 = vmax.f32 %v1456, 0.0
  %v1521 = vmax.f32 %v1457, 0.0
  %v1522 = vmax.f32 %v1458, 0.0
  %v1523 = vmax.f32 %v1459, 0.0
  %v1524 = vmax.f32 %v1460, 0.0
  %v1525 = vmax.f32 %v1461, 0.0
  %v1526 = vmax.f32 %v1462, 0.0
  %v1527 = vmax.f32 %v1463, 0.0
  %v1528 = vmax.f32 %v1464, 0.0
  %v1529 = vmax.f32 %v1465, 0.0
  %v1530 = vmax.f32 %v1466, 0.0
  %v1531 = vmax.f32 %v1467, 0.0
  %v1532 = vmax.f32 %v1468, 0.0
  %v1533 = vmax.f32 %v1469, 0.0
  %v1534 = vmax.f32 %v1470, 0.0
  %v1535 = vmax.f32 %v1471, 0.0
  %v1536 = vmax.f32 %v1472, 0.0
  %v1537 = vmax.f32 %v1473, 0.0
  %v1538 = vmax.f32 %v1474, 0.0
  %v1539 = vmax.f32 %v1475, 0.0
  %v1540 = vmax.f32 %v1476, 0.0
  %v1541 = vmax.f32 %v1477, 0.0
  %v1542 = vmax.f32 %v1478, 0.0
  %v1543 = vmax.f32 %v1479, 0.0
  %v1544 = vmax.f32 %v1480, 0.0
  %v1545 = vmax.f32 %v1481, 0.0
  %v1546 = vmax.f32 %v1482, 0.0
  %v1547 = vmax.f32 %v1483, 0.0
  %v1548 = vmax.f32 %v1484, 0.0
  %v1549 = vmax.f32 %v1485, 0.0
  %v1550 = vmax.f32 %v1486, 0.0
  %v1551 = vmax.f32 %v1487, 0.0
  %v1552 = vmax.f32 %v1488, 0.0
  %v1553 = vmax.f32 %v1489, 0.0
  %1554 = vst [vmem:[%s5] sm:$0xff] %v1490
  %1555 = vst [vmem:[%s5 + $0x8] sm:$0xff] %v1491
  %1556 = vst [vmem:[%s5 + $0x10] sm:$0xff] %v1492
  %1557 = vst [vmem:[%s5 + $0x18] sm:$0xff] %v1493
  %1558 = vst [vmem:[%s5 + $0x20] sm:$0xff] %v1494
  %1559 = vst [vmem:[%s5 + $0x28] sm:$0xff] %v1495
  %1560 = vst [vmem:[%s5 + $0x30] sm:$0xff] %v1496
  %1561 = vst [vmem:[%s5 + $0x38] sm:$0xff] %v1497
  %1562 = vst [vmem:[%s5 + $0x40] sm:$0xff] %v1498
  %1563 = vst [vmem:[%s5 + $0x48] sm:$0xff] %v1499
  %1564 = vst [vmem:[%s5 + $0x50] sm:$0xff] %v1500
  %1565 = vst [vmem:[%s5 + $0x58] sm:$0xff] %v1501
  %1566 = vst [vmem:[%s5 + $0x60] sm:$0xff] %v1502
  %1567 = vst [vmem:[%s5 + $0x68] sm:$0xff] %v1503
  %1568 = vst [vmem:[%s5 + $0x70] sm:$0xff] %v1504
  %1569 = vst [vmem:[%s5 + $0x78] sm:$0xff] %v1505
  %1570 = vst [vmem:[%s5 + $0x80] sm:$0xff] %v1506
  %1571 = vst [vmem:[%s5 + $0x88] sm:$0xff] %v1507
  %1572 = vst [vmem:[%s5 + $0x90] sm:$0xff] %v1508
  %1573 = vst [vmem:[%s5 + $0x98] sm:$0xff] %v1509
  %1574 = vst [vmem:[%s5 + $0xa0] sm:$0xff] %v1510
  %1575 = vst [vmem:[%s5 + $0xa8] sm:$0xff] %v1511
  %1576 = vst [vmem:[%s5 + $0xb0] sm:$0xff] %v1512
  %1577 = vst [vmem:[%s5 + $0xb8] sm:$0xff] %v1513
  %1578 = vst [vmem:[%s5 + $0xc0] sm:$0xff] %v1514
  %1579 = vst [vmem:[%s5 + $0xc8] sm:$0xff] %v1515
  %1580 = vst [vmem:[%s5 + $0xd0] sm:$0xff] %v1516
  %1581 = vst [vmem:[%s5 + $0xd8] sm:$0xff] %v1517
  %1582 = vst [vmem:[%s5 + $0xe0] sm:$0xff] %v1518
  %1583 = vst [vmem:[%s5 + $0xe8] sm:$0xff] %v1519
  %1584 = vst [vmem:[%s5 + $0xf0] sm:$0xff] %v1520
  %1585 = vst [vmem:[%s5 + $0xf8] sm:$0xff] %v1521
  %1586 = vst [vmem:[%s5 + $0x100] sm:$0xff] %v1522
  %1587 = vst [vmem:[%s5 + $0x108] sm:$0xff] %v1523
  %1588 = vst [vmem:[%s5 + $0x110] sm:$0xff] %v1524
  %1589 = vst [vmem:[%s5 + $0x118] sm:$0xff] %v1525
  %1590 = vst [vmem:[%s5 + $0x120] sm:$0xff] %v1526
  %1591 = vst [vmem:[%s5 + $0x128] sm:$0xff] %v1527
  %1592 = vst [vmem:[%s5 + $0x130] sm:$0xff] %v1528
  %1593 = vst [vmem:[%s5 + $0x138] sm:$0xff] %v1529
  %1594 = vst [vmem:[%s5 + $0x140] sm:$0xff] %v1530
  %1595 = vst [vmem:[%s5 + $0x148] sm:$0xff] %v1531
  %1596 = vst [vmem:[%s5 + $0x150] sm:$0xff] %v1532
  %1597 = vst [vmem:[%s5 + $0x158] sm:$0xff] %v1533
  %1598 = vst [vmem:[%s5 + $0x160] sm:$0xff] %v1534
  %1599 = vst [vmem:[%s5 + $0x168] sm:$0xff] %v1535
  %1600 = vst [vmem:[%s5 + $0x170] sm:$0xff] %v1536
  %1601 = vst [vmem:[%s5 + $0x178] sm:$0xff] %v1537
  %1602 = vst [vmem:[%s5 + $0x180] sm:$0xff] %v1538
  %1603 = vst [vmem:[%s5 + $0x188] sm:$0xff] %v1539
  %1604 = vst [vmem:[%s5 + $0x190] sm:$0xff] %v1540
  %1605 = vst [vmem:[%s5 + $0x198] sm:$0xff] %v1541
  %1606 = vst [vmem:[%s5 + $0x1a0] sm:$0xff] %v1542
  %1607 = vst [vmem:[%s5 + $0x1a8] sm:$0xff] %v1543
  %1608 = vst [vmem:[%s5 + $0x1b0] sm:$0xff] %v1544
  %1609 = vst [vmem:[%s5 + $0x1b8] sm:$0xff] %v1545
  %1610 = vst [vmem:[%s5 + $0x1c0] sm:$0xff] %v1546
  %1611 = vst [vmem:[%s5 + $0x1c8] sm:$0xff] %v1547
  %1612 = vst [vmem:[%s5 + $0x1d0] sm:$0xff] %v1548
  %1613 = vst [vmem:[%s5 + $0x1d8] sm:$0xff] %v1549
  %1614 = vst [vmem:[%s5 + $0x1e0] sm:$0xff] %v1550
  %1615 = vst [vmem:[%s5 + $0x1e8] sm:$0xff] %v1551
  %1616 = vst [vmem:[%s5 + $0x1f0] sm:$0xff] %v1552
  %1617 = vst [vmem:[%s5 + $0x1f8] sm:$0xff] %v1553
  // Predicated region
  $region22: #{_lambda_.6} parent=0 // pred_check
    _
  $region23: #{_lambda_.6} parent=0 // pred_check_branch
    %1619 = sbr.rel (0) target = $region25
  $region24: #{_lambda_.6} parent=0 // pred_region
    _
  $region25: #{_lambda_.6} parent=0 // pred_fallthru
    _
  // Predicated region
  $region26: #{_lambda_.6} parent=0 // pred_check
    _
  $region27: #{_lambda_.6} parent=0 // pred_check_branch
    %1621 = sbr.rel (0) target = $region29
  $region28: #{_lambda_.6} parent=0 // pred_region
    _
  $region29: #{_lambda_.6} parent=0 // pred_fallthru
    _

// kernel: _lambda_.7
$region0: #{_lambda_.7}
  #allocation0 [shape = 'u32[]', space=smem, size = 0x4, offset = 0x4, fixed_abs, tag = 'smem constant byte address 0x4 - core index']
  #allocation1 [shape = 'u32[144,128]{1,0:T(1,128)}', space=vmem, size = 0x12000, scoped, tag = 'internal scratch']
  %s0 = inlined_call_operand.vmem [shape: bf16[512,144], index: 0, kind: input, shape index: {}]
  %s1 = inlined_call_operand.vmem [shape: bf16[144,512], index: 1, kind: input, shape index: {}]
  %s2 = inlined_call_operand.vmem [shape: f32[1,512], index: 2, kind: input, shape index: {}]
  %s3 = inlined_call_operand.vmem [shape: f32[512,512], index: 3, kind: output, shape index: {}]
  %s4 = sld [smem:[#allocation0]]
  $region45: #{_lambda_.7} parent=0
    _
  %s6 = ssub.s32 1, %s4
  %s7 = scalar_select 0, %s6, %s4
  loop: start=0, step=1, limit=4
  $region2: #{_lambda_.7} parent=0 // loop_pre_header
    _
  $region3: #{_lambda_.7} parent=0 // loop_header
    %s9 = sphi 0, %s13
    %p10 = scmp.ge.s32.totalorder %s9, 4
    %s19 = sphi 0, %s21
    %s22 = sphi 0, %s19
    %s23 = sphi 0, %s22
    %s39 = sphi 0, %s23
    %s43 = sphi 0, %s43
    %s45 = sphi 0, %s43
    %s46 = sphi 0, %s45
    %s60 = sphi 0, %s46
    %s64 = sphi 0, %s64
    %s66 = sphi 0, %s64
    %s67 = sphi 0, %s66
    %s81 = sphi 0, %s67
    %s87 = sphi 0, %s89
    %s90 = sphi 0, %s87
    %s91 = sphi 0, %s90
    %s107 = sphi 0, %s91
  $region4: #{_lambda_.7} parent=0 // loop_header_branch
    %12 = sbr.rel (%p10) target = $region8
  $region5: #{_lambda_.7} parent=0 // loop_body
    %s14 = ssub.s32 %s9, 1
    %s15 = ssub.s32 %s9, 2
    %s16 = sadd.s32 %s9, 1
    %s17 = ssub.s32 %s9, %s16
    %p18 = scmp.eq.s32.totalorder %s17, 0
    %s20 = sadd.s32 %s19, 1
    %s21 = scalar_select %p18, %s19, %s20
    %p24 = pneg %p18
    %p25 = scmp.eq.s32.totalorder %s9, 1
    %p26 = por %p24, %p25
    %p27 = scmp.ne.s32.totalorder %s19, %s22
    %p28 = scmp.eq.s32.totalorder %s9, 0
    %p29 = por %p27, %p28
    %p30 = scmp.ne.s32.totalorder %s19, %s22
    %p31 = scmp.eq.s32.totalorder %s14, 1
    %p32 = por %p30, %p31
    %p33 = scmp.ne.s32.totalorder %s22, %s23
    %p34 = scmp.eq.s32.totalorder %s14, 0
    %p35 = por %p33, %p34
    %p36 = scmp.ne.s32.totalorder %s22, %s23
    %p37 = scmp.eq.s32.totalorder %s15, 1
    %p38 = por %p36, %p37
    %p40 = scmp.ne.s32.totalorder %s23, %s39
    %p41 = scmp.eq.s32.totalorder %s15, 0
    %p42 = por %p40, %p41
    %s44 = sadd.s32 %s43, 1
    %p47 = scmp.eq.s32.totalorder %s9, 1
    %p48 = scmp.ne.s32.totalorder %s43, %s45
    %p49 = scmp.eq.s32.totalorder %s9, 0
    %p50 = por %p48, %p49
    %p51 = scmp.ne.s32.totalorder %s43, %s45
    %p52 = scmp.eq.s32.totalorder %s14, 1
    %p53 = por %p51, %p52
    %p54 = scmp.ne.s32.totalorder %s45, %s46
    %p55 = scmp.eq.s32.totalorder %s14, 0
    %p56 = por %p54, %p55
    %p57 = scmp.ne.s32.totalorder %s45, %s46
    %p58 = scmp.eq.s32.totalorder %s15, 1
    %p59 = por %p57, %p58
    %p61 = scmp.ne.s32.totalorder %s46, %s60
    %p62 = scmp.eq.s32.totalorder %s15, 0
    %p63 = por %p61, %p62
    %s65 = sadd.s32 %s64, 1
    %p68 = scmp.eq.s32.totalorder %s9, 1
    %p69 = scmp.ne.s32.totalorder %s64, %s66
    %p70 = scmp.eq.s32.totalorder %s9, 0
    %p71 = por %p69, %p70
    %p72 = scmp.ne.s32.totalorder %s64, %s66
    %p73 = scmp.eq.s32.totalorder %s14, 1
    %p74 = por %p72, %p73
    %p75 = scmp.ne.s32.totalorder %s66, %s67
    %p76 = scmp.eq.s32.totalorder %s14, 0
    %p77 = por %p75, %p76
    %p78 = scmp.ne.s32.totalorder %s66, %s67
    %p79 = scmp.eq.s32.totalorder %s15, 1
    %p80 = por %p78, %p79
    %p82 = scmp.ne.s32.totalorder %s67, %s81
    %p83 = scmp.eq.s32.totalorder %s15, 0
    %p84 = por %p82, %p83
    %s85 = ssub.s32 %s9, %s16
    %p86 = scmp.eq.s32.totalorder %s85, 0
    %s88 = sadd.s32 %s87, 1
    %s89 = scalar_select %p86, %s87, %s88
    %p92 = pneg %p86
    %p93 = scmp.eq.s32.totalorder %s9, 1
    %p94 = por %p92, %p93
    %p95 = scmp.ne.s32.totalorder %s87, %s90
    %p96 = scmp.eq.s32.totalorder %s9, 0
    %p97 = por %p95, %p96
    %p98 = scmp.ne.s32.totalorder %s87, %s90
    %p99 = scmp.eq.s32.totalorder %s14, 1
    %p100 = por %p98, %p99
    %p101 = scmp.ne.s32.totalorder %s90, %s91
    %p102 = scmp.eq.s32.totalorder %s14, 0
    %p103 = por %p101, %p102
    %p104 = scmp.ne.s32.totalorder %s90, %s91
    %p105 = scmp.eq.s32.totalorder %s15, 1
    %p106 = por %p104, %p105
    %p108 = scmp.ne.s32.totalorder %s91, %s107
    %p109 = scmp.eq.s32.totalorder %s15, 0
    %p110 = por %p108, %p109
    %p111 = scmp.le.s32.totalorder 1, %s9
    %p112 = scmp.lt.s32.totalorder %s9, 3
    %p113 = pnand %p111, %p112
    %p114 = pneg %p113
    // Predicated region
    $region9: #{_lambda_.7} parent=5 // pred_check
      _
    $region10: #{_lambda_.7} parent=5 // pred_check_branch
      %116 = sbr.rel (%p113) target = $region12
    $region11: #{_lambda_.7} parent=5 // pred_region
      %s117 = ssub.s32 %s9, 1
      // Predicated region
      $region13: #{_lambda_.7} parent=11 // pred_check
        %p118 = pneg %p56
      $region14: #{_lambda_.7} parent=11 // pred_check_branch
        %120 = sbr.rel (%p118) target = $region16
      $region15: #{_lambda_.7} parent=11 // pred_region
        _
      $region16: #{_lambda_.7} parent=11 // pred_fallthru
        _
      // Predicated region
      $region17: #{_lambda_.7} parent=11 // pred_check
        %p121 = pneg %p77
      $region18: #{_lambda_.7} parent=11 // pred_check_branch
        %123 = sbr.rel (%p121) target = $region20
      $region19: #{_lambda_.7} parent=11 // pred_region
        _
      $region20: #{_lambda_.7} parent=11 // pred_fallthru
        _
    $region12: #{_lambda_.7} parent=5 // pred_fallthru
      _
    %p124 = scmp.lt.s32.totalorder %s9, 2
    // Predicated region
    $region21: #{_lambda_.7} parent=5 // pred_check
      %p125 = pneg %p124
    $region22: #{_lambda_.7} parent=5 // pred_check_branch
      %127 = sbr.rel (%p125) target = $region24
    $region23: #{_lambda_.7} parent=5 // pred_region
      // Predicated region
      $region25: #{_lambda_.7} parent=23 // pred_check
        %p128 = pneg %p29
      $region26: #{_lambda_.7} parent=23 // pred_check_branch
        %130 = sbr.rel (%p128) target = $region28
      $region27: #{_lambda_.7} parent=23 // pred_region
        %s131 = smul.u32 32, %s9
        %p132 = scmp.lt.s32.totalorder %s131, 63
        %s133 = scalar_select %p132, %s131, 63
        %s134 = smul.addr %s133, 2
        %s135 = smul.addr %s134, 4
        %s136 = scalar_lea.vmem %s0, %s135
        %s137 = smul.u32 32, %s9
      $region28: #{_lambda_.7} parent=23 // pred_fallthru
        _
    $region24: #{_lambda_.7} parent=5 // pred_fallthru
      _
    %p138 = scmp.le.s32.totalorder 1, %s9
    %p139 = scmp.lt.s32.totalorder %s9, 3
    %p140 = pnand %p138, %p139
    %p141 = pneg %p140
    // Predicated region
    $region29: #{_lambda_.7} parent=5 // pred_check
      _
    $region30: #{_lambda_.7} parent=5 // pred_check_branch
      %143 = sbr.rel (%p140) target = $region32
    $region31: #{_lambda_.7} parent=5 // pred_region
      %s144 = ssub.s32 %s9, 1
      %s145 = smul.u32 32, %s14
      %p146 = scmp.lt.s32.totalorder %s145, 63
      %s147 = scalar_select %p146, %s145, 63
      %s148 = smul.addr %s147, 2
      %s149 = smul.addr %s148, 4
      %s150 = scalar_lea.vmem %s0, %s149
      %p151 = pneg %p35
      %p152 = pneg %p32
      %p153 = pneg %p56
      %p154 = pneg %p53
      %p155 = pneg %p77
      %p156 = pneg %p74
      %p157 = pneg %p103
      %p158 = pneg %p100
      %s159 = smul.u32 32, %s14
      %p160 = scmp.lt.s32.totalorder %s159, 63
      %s161 = scalar_select %p160, %s159, 63
      %s162 = smul.addr %s161, 4
      %s163 = smul.addr %s162, 8
      %s164 = scalar_lea.vmem %s3, %s163
      %s165 = smul.u32 32, %s14
      %p166 = scmp.lt.s32.totalorder %s165, 63
      %s167 = scalar_select %p166, %s165, 63
      %s168 = smul.addr %s167, 2
      %s169 = smul.addr %s168, 4
      %s170 = scalar_lea.vmem %s0, %s169
      %s171 = smul.u32 32, %s14
      %s172 = smul.u32 32, %s14
      %p173 = scmp.lt.s32.totalorder %s172, 63
      %s174 = scalar_select %p173, %s172, 63
      %s175 = smul.addr %s174, 4
      %s176 = smul.addr %s175, 8
      %s177 = scalar_lea.vmem %s3, %s176
      %s178 = smul.u32 32, %s14
      %v180 = vld [vmem:[%s170] sm:$0xff]
      %v181 = vld [vmem:[%s170 + $0x8] sm:$0xff]
      %v182 = vld [vmem:[%s170 + $0x10] sm:$0xff]
      %v183 = vld [vmem:[%s170 + $0x18] sm:$0xff]
      %v184 = vld [vmem:[%s170 + $0x20] sm:$0xff]
      %v185 = vld [vmem:[%s170 + $0x28] sm:$0xff]
      %v186 = vld [vmem:[%s170 + $0x30] sm:$0xff]
      %v187 = vld [vmem:[%s170 + $0x38] sm:$0xff]
      %v188 = vld [vmem:[%s170 + $0x40] sm:$0xff]
      %v189 = vld [vmem:[%s170 + $0x48] sm:$0xff]
      %v190 = vld [vmem:[%s170 + $0x50] sm:$0xff]
      %v191 = vld [vmem:[%s170 + $0x58] sm:$0xff]
      %v192 = vld [vmem:[%s170 + $0x60] sm:$0xff]
      %v193 = vld [vmem:[%s170 + $0x68] sm:$0xff]
      %v194 = vld [vmem:[%s170 + $0x70] sm:$0xff]
      %v195 = vld [vmem:[%s170 + $0x78] sm:$0xff]
      %v196 = vld [vmem:[%s170 + $0x80] sm:$0xff]
      %v197 = vld [vmem:[%s170 + $0x88] sm:$0xff]
      %v198 = vld [vmem:[%s170 + $0x90] sm:$0xff]
      %v199 = vld [vmem:[%s170 + $0x98] sm:$0xff]
      %v200 = vld [vmem:[%s170 + $0xa0] sm:$0xff]
      %v201 = vld [vmem:[%s170 + $0xa8] sm:$0xff]
      %v202 = vld [vmem:[%s170 + $0xb0] sm:$0xff]
      %v203 = vld [vmem:[%s170 + $0xb8] sm:$0xff]
      %v204 = vld [vmem:[%s170 + $0xc0] sm:$0xff]
      %v205 = vld [vmem:[%s170 + $0xc8] sm:$0xff]
      %v206 = vld [vmem:[%s170 + $0xd0] sm:$0xff]
      %v207 = vld [vmem:[%s170 + $0xd8] sm:$0xff]
      %v208 = vld [vmem:[%s170 + $0xe0] sm:$0xff]
      %v209 = vld [vmem:[%s170 + $0xe8] sm:$0xff]
      %v210 = vld [vmem:[%s170 + $0xf0] sm:$0xff]
      %v211 = vld [vmem:[%s170 + $0xf8] sm:$0xff]
      %v212 = vld [vmem:[%s1] sm:$0xff]
      %v213 = vld [vmem:[%s1 + $0x8] sm:$0xff]
      %v214 = vld [vmem:[%s1 + $0x10] sm:$0xff]
      %v215 = vld [vmem:[%s1 + $0x18] sm:$0xff]
      %v216 = vld [vmem:[%s1 + $0x20] sm:$0xff]
      %v217 = vld [vmem:[%s1 + $0x28] sm:$0xff]
      %v218 = vld [vmem:[%s1 + $0x30] sm:$0xff]
      %v219 = vld [vmem:[%s1 + $0x38] sm:$0xff]
      %v220 = vld [vmem:[%s1 + $0x40] sm:$0xff]
      %v221 = vld [vmem:[%s1 + $0x48] sm:$0xff]
      %v222 = vld [vmem:[%s1 + $0x50] sm:$0xff]
      %v223 = vld [vmem:[%s1 + $0x58] sm:$0xff]
      %v224 = vld [vmem:[%s1 + $0x60] sm:$0xff]
      %v225 = vld [vmem:[%s1 + $0x68] sm:$0xff]
      %v226 = vld [vmem:[%s1 + $0x70] sm:$0xff]
      %v227 = vld [vmem:[%s1 + $0x78] sm:$0xff]
      %v228 = vld [vmem:[%s1 + $0x80] sm:$0xff]
      %v229 = vld [vmem:[%s1 + $0x88] sm:$0xff]
      %v230 = vld [vmem:[%s1 + $0x90] sm:$0xff]
      %v231 = vld [vmem:[%s1 + $0x98] sm:$0xff]
      %v232 = vld [vmem:[%s1 + $0xa0] sm:$0xff]
      %v233 = vld [vmem:[%s1 + $0xa8] sm:$0xff]
      %v234 = vld [vmem:[%s1 + $0xb0] sm:$0xff]
      %v235 = vld [vmem:[%s1 + $0xb8] sm:$0xff]
      %v236 = vld [vmem:[%s1 + $0xc0] sm:$0xff]
      %v237 = vld [vmem:[%s1 + $0xc8] sm:$0xff]
      %v238 = vld [vmem:[%s1 + $0xd0] sm:$0xff]
      %v239 = vld [vmem:[%s1 + $0xd8] sm:$0xff]
      %v240 = vld [vmem:[%s1 + $0xe0] sm:$0xff]
      %v241 = vld [vmem:[%s1 + $0xe8] sm:$0xff]
      %v242 = vld [vmem:[%s1 + $0xf0] sm:$0xff]
      %v243 = vld [vmem:[%s1 + $0xf8] sm:$0xff]
      %v244 = vld [vmem:[%s1 + $0x100] sm:$0xff]
      %v245 = vld [vmem:[%s1 + $0x108] sm:$0xff]
      %v246 = vld [vmem:[%s1 + $0x110] sm:$0xff]
      %v247 = vld [vmem:[%s1 + $0x118] sm:$0xff]
      %v248 = vld [vmem:[%s2] sm:$0xf]
      %v250 = vlaneseq
      %v251 = vshrl.u32 %v250, 7
      %v252 = vsub.s32 0, %v251
      %v253 = vrot.slane %v248, %v252
      %v254 = vlaneseq
      %v255 = vshrl.u32 %v254, 7
      %v256 = vsub.s32 1, %v255
      %v257 = vrot.slane %v248, %v256
      %v258 = vlaneseq
      %v259 = vshrl.u32 %v258, 7
      %v260 = vsub.s32 2, %v259
      %v261 = vrot.slane %v248, %v260
      %v262 = vlaneseq
      %v263 = vshrl.u32 %v262, 7
      %v264 = vsub.s32 3, %v263
      %v265 = vrot.slane %v248, %v264
      %v302 = vunpack.c.l.b16 %v180
      %v303 = vunpack.c.h.b16 %v180
      %v304 = vunpack.c.l.b16 %v181
      %v305 = vunpack.c.h.b16 %v181
      %v306 = vunpack.c.l.b16 %v182
      %v307 = vunpack.c.h.b16 %v182
      %v308 = vunpack.c.l.b16 %v183
      %v309 = vunpack.c.h.b16 %v183
      %v310 = vunpack.c.l.b16 %v184
      %v311 = vunpack.c.h.b16 %v184
      %v312 = vunpack.c.l.b16 %v185
      %v313 = vunpack.c.h.b16 %v185
      %v314 = vunpack.c.l.b16 %v186
      %v315 = vunpack.c.h.b16 %v186
      %v316 = vunpack.c.l.b16 %v187
      %v317 = vunpack.c.h.b16 %v187
      %v318 = vunpack.c.l.b16 %v188
      %v319 = vunpack.c.h.b16 %v188
      %v320 = vunpack.c.l.b16 %v189
      %v321 = vunpack.c.h.b16 %v189
      %v322 = vunpack.c.l.b16 %v190
      %v323 = vunpack.c.h.b16 %v190
      %v324 = vunpack.c.l.b16 %v191
      %v325 = vunpack.c.h.b16 %v191
      %v326 = vunpack.c.l.b16 %v192
      %v327 = vunpack.c.h.b16 %v192
      %v328 = vunpack.c.l.b16 %v193
      %v329 = vunpack.c.h.b16 %v193
      %v330 = vunpack.c.l.b16 %v194
      %v331 = vunpack.c.h.b16 %v194
      %v332 = vunpack.c.l.b16 %v195
      %v333 = vunpack.c.h.b16 %v195
      %v334 = vunpack.c.l.b16 %v196
      %v335 = vunpack.c.h.b16 %v196
      %v336 = vunpack.c.l.b16 %v197
      %v337 = vunpack.c.h.b16 %v197
      %v338 = vunpack.c.l.b16 %v198
      %v339 = vunpack.c.h.b16 %v198
      %v340 = vunpack.c.l.b16 %v199
      %v341 = vunpack.c.h.b16 %v199
      %v342 = vunpack.c.l.b16 %v200
      %v343 = vunpack.c.h.b16 %v200
      %v344 = vunpack.c.l.b16 %v201
      %v345 = vunpack.c.h.b16 %v201
      %v346 = vunpack.c.l.b16 %v202
      %v347 = vunpack.c.h.b16 %v202
      %v348 = vunpack.c.l.b16 %v203
      %v349 = vunpack.c.h.b16 %v203
      %v350 = vunpack.c.l.b16 %v204
      %v351 = vunpack.c.h.b16 %v204
      %v352 = vunpack.c.l.b16 %v205
      %v353 = vunpack.c.h.b16 %v205
      %v354 = vunpack.c.l.b16 %v206
      %v355 = vunpack.c.h.b16 %v206
      %v356 = vunpack.c.l.b16 %v207
      %v357 = vunpack.c.h.b16 %v207
      %v358 = vunpack.c.l.b16 %v208
      %v359 = vunpack.c.h.b16 %v208
      %v360 = vunpack.c.l.b16 %v209
      %v361 = vunpack.c.h.b16 %v209
      %v362 = vunpack.c.l.b16 %v210
      %v363 = vunpack.c.h.b16 %v210
      %v364 = vunpack.c.l.b16 %v211
      %v365 = vunpack.c.h.b16 %v211
      %v366 = vpack.c.b16 %v304, %v302
      %v367 = vpack.c.b16 %v305, %v303
      %v368 = vpack.c.b16 %v308, %v306
      %v369 = vpack.c.b16 %v309, %v307
      %v370 = vpack.c.b16 %v312, %v310
      %v371 = vpack.c.b16 %v313, %v311
      %v372 = vpack.c.b16 %v316, %v314
      %v373 = vpack.c.b16 %v317, %v315
      %v374 = vpack.c.b16 %v320, %v318
      %v375 = vpack.c.b16 %v321, %v319
      %v376 = vpack.c.b16 %v324, %v322
      %v377 = vpack.c.b16 %v325, %v323
      %v378 = vpack.c.b16 %v328, %v326
      %v379 = vpack.c.b16 %v329, %v327
      %v380 = vpack.c.b16 %v332, %v330
      %v381 = vpack.c.b16 %v333, %v331
      %v382 = vpack.c.b16 %v336, %v334
      %v383 = vpack.c.b16 %v337, %v335
      %v384 = vpack.c.b16 %v340, %v338
      %v385 = vpack.c.b16 %v341, %v339
      %v386 = vpack.c.b16 %v344, %v342
      %v387 = vpack.c.b16 %v345, %v343
      %v388 = vpack.c.b16 %v348, %v346
      %v389 = vpack.c.b16 %v349, %v347
      %v390 = vpack.c.b16 %v352, %v350
      %v391 = vpack.c.b16 %v353, %v351
      %v392 = vpack.c.b16 %v356, %v354
      %v393 = vpack.c.b16 %v357, %v355
      %v394 = vpack.c.b16 %v360, %v358
      %v395 = vpack.c.b16 %v361, %v359
      %v396 = vpack.c.b16 %v364, %v362
      %v397 = vpack.c.b16 %v365, %v363
      %v450 = vunpack.c.l.b16 %v212
      %v451 = vunpack.c.h.b16 %v212
      %v452 = vunpack.c.l.b16 %v213
      %v453 = vunpack.c.h.b16 %v213
      %v454 = vunpack.c.l.b16 %v214
      %v455 = vunpack.c.h.b16 %v214
      %v456 = vunpack.c.l.b16 %v215
      %v457 = vunpack.c.h.b16 %v215
      %v458 = vunpack.c.l.b16 %v216
      %v459 = vunpack.c.h.b16 %v216
      %v460 = vunpack.c.l.b16 %v217
      %v461 = vunpack.c.h.b16 %v217
      %v462 = vunpack.c.l.b16 %v218
      %v463 = vunpack.c.h.b16 %v218
      %v464 = vunpack.c.l.b16 %v219
      %v465 = vunpack.c.h.b16 %v219
      %v466 = vunpack.c.l.b16 %v220
      %v467 = vunpack.c.h.b16 %v220
      %v468 = vunpack.c.l.b16 %v221
      %v469 = vunpack.c.h.b16 %v221
      %v470 = vunpack.c.l.b16 %v222
      %v471 = vunpack.c.h.b16 %v222
      %v472 = vunpack.c.l.b16 %v223
      %v473 = vunpack.c.h.b16 %v223
      %v474 = vunpack.c.l.b16 %v224
      %v475 = vunpack.c.h.b16 %v224
      %v476 = vunpack.c.l.b16 %v225
      %v477 = vunpack.c.h.b16 %v225
      %v478 = vunpack.c.l.b16 %v226
      %v479 = vunpack.c.h.b16 %v226
      %v480 = vunpack.c.l.b16 %v227
      %v481 = vunpack.c.h.b16 %v227
      %v482 = vunpack.c.l.b16 %v228
      %v483 = vunpack.c.h.b16 %v228
      %v484 = vunpack.c.l.b16 %v229
      %v485 = vunpack.c.h.b16 %v229
      %v486 = vunpack.c.l.b16 %v230
      %v487 = vunpack.c.h.b16 %v230
      %v488 = vunpack.c.l.b16 %v231
      %v489 = vunpack.c.h.b16 %v231
      %v490 = vunpack.c.l.b16 %v232
      %v491 = vunpack.c.h.b16 %v232
      %v492 = vunpack.c.l.b16 %v233
      %v493 = vunpack.c.h.b16 %v233
      %v494 = vunpack.c.l.b16 %v234
      %v495 = vunpack.c.h.b16 %v234
      %v496 = vunpack.c.l.b16 %v235
      %v497 = vunpack.c.h.b16 %v235
      %v498 = vunpack.c.l.b16 %v236
      %v499 = vunpack.c.h.b16 %v236
      %v500 = vunpack.c.l.b16 %v237
      %v501 = vunpack.c.h.b16 %v237
      %v502 = vunpack.c.l.b16 %v238
      %v503 = vunpack.c.h.b16 %v238
      %v504 = vunpack.c.l.b16 %v239
      %v505 = vunpack.c.h.b16 %v239
      %v506 = vunpack.c.l.b16 %v240
      %v507 = vunpack.c.h.b16 %v240
      %v508 = vunpack.c.l.b16 %v241
      %v509 = vunpack.c.h.b16 %v241
      %v510 = vunpack.c.l.b16 %v242
      %v511 = vunpack.c.h.b16 %v242
      %v512 = vunpack.c.l.b16 %v243
      %v513 = vunpack.c.h.b16 %v243
      %v514 = vunpack.c.l.b16 %v244
      %v515 = vunpack.c.h.b16 %v244
      %v516 = vunpack.c.l.b16 %v245
      %v517 = vunpack.c.h.b16 %v245
      %v518 = vunpack.c.l.b16 %v246
      %v519 = vunpack.c.h.b16 %v246
      %v520 = vunpack.c.l.b16 %v247
      %v521 = vunpack.c.h.b16 %v247
      %v522 = vpack.c.b16 %v454, %v450
      %v523 = vpack.c.b16 %v455, %v451
      %v524 = vpack.c.b16 %v456, %v452
      %v525 = vpack.c.b16 %v457, %v453
      %v526 = vpack.c.b16 %v462, %v458
      %v527 = vpack.c.b16 %v463, %v459
      %v528 = vpack.c.b16 %v464, %v460
      %v529 = vpack.c.b16 %v465, %v461
      %v530 = vpack.c.b16 %v470, %v466
      %v531 = vpack.c.b16 %v471, %v467
      %v532 = vpack.c.b16 %v472, %v468
      %v533 = vpack.c.b16 %v473, %v469
      %v534 = vpack.c.b16 %v478, %v474
      %v535 = vpack.c.b16 %v479, %v475
      %v536 = vpack.c.b16 %v480, %v476
      %v537 = vpack.c.b16 %v481, %v477
      %v538 = vpack.c.b16 %v486, %v482
      %v539 = vpack.c.b16 %v487, %v483
      %v540 = vpack.c.b16 %v488, %v484
      %v541 = vpack.c.b16 %v489, %v485
      %v542 = vpack.c.b16 %v494, %v490
      %v543 = vpack.c.b16 %v495, %v491
      %v544 = vpack.c.b16 %v496, %v492
      %v545 = vpack.c.b16 %v497, %v493
      %v546 = vpack.c.b16 %v502, %v498
      %v547 = vpack.c.b16 %v503, %v499
      %v548 = vpack.c.b16 %v504, %v500
      %v549 = vpack.c.b16 %v505, %v501
      %v550 = vpack.c.b16 %v510, %v506
      %v551 = vpack.c.b16 %v511, %v507
      %v552 = vpack.c.b16 %v512, %v508
      %v553 = vpack.c.b16 %v513, %v509
      %v554 = vpack.c.b16 %v518, %v514
      %v555 = vpack.c.b16 %v519, %v515
      %v556 = vpack.c.b16 %v520, %v516
      %v557 = vpack.c.b16 %v521, %v517
      %vm594 = vcmask 130048
      %v596 = vsel %vm594, %v367, 0
      %v599 = vsel %vm594, %v369, 0
      %v602 = vsel %vm594, %v371, 0
      %v605 = vsel %vm594, %v373, 0
      %v608 = vsel %vm594, %v375, 0
      %v611 = vsel %vm594, %v377, 0
      %v614 = vsel %vm594, %v379, 0
      %v617 = vsel %vm594, %v381, 0
      %v620 = vsel %vm594, %v383, 0
      %v623 = vsel %vm594, %v385, 0
      %v626 = vsel %vm594, %v387, 0
      %v629 = vsel %vm594, %v389, 0
      %v632 = vsel %vm594, %v391, 0
      %v635 = vsel %vm594, %v393, 0
      %v638 = vsel %vm594, %v395, 0
      %v641 = vsel %vm594, %v397, 0
      %643 = vmatprep.subr.bf16.mxu0 %v523
      %644 = vmatpush1.bf16.msra.mxu0 %v522
      %645 = vmatprep.subr.bf16.mxu0 %v527
      %646 = vmatpush1.bf16.msra.mxu0 %v526
      %647 = vmatprep.subr.bf16.mxu0 %v531
      %648 = vmatpush1.bf16.msra.mxu0 %v530
      %649 = vmatprep.subr.bf16.mxu0 %v535
      %650 = vmatpush1.bf16.msra.mxu0 %v534
      %651 = vmatprep.subr.bf16.mxu0 %v539
      %652 = vmatpush1.bf16.msra.mxu0 %v538
      %653 = vmatprep.subr.bf16.mxu0 %v543
      %654 = vmatpush1.bf16.msra.mxu0 %v542
      %655 = vmatprep.subr.bf16.mxu0 %v547
      %656 = vmatpush1.bf16.msra.mxu0 %v546
      %657 = vmatprep.subr.bf16.mxu0 %v551
      %658 = vmatpush1.bf16.msra.mxu0 %v550
      %659 = vmatprep.subr.bf16.mxu0 %v555
      %660 = vmatpush1.bf16.msra.mxu0 %v554
      %661 = vmatprep.subr.bf16.mxu0 0
      %662 = vmatpush1.bf16.msra.mxu0 0
      %663 = vmatprep.subr.bf16.mxu0 0
      %664 = vmatpush1.bf16.msra.mxu0 0
      %665 = vmatprep.subr.bf16.mxu0 0
      %666 = vmatpush1.bf16.msra.mxu0 0
      %667 = vmatprep.subr.bf16.mxu0 0
      %668 = vmatpush1.bf16.msra.mxu0 0
      %669 = vmatprep.subr.bf16.mxu0 0
      %670 = vmatpush1.bf16.msra.mxu0 0
      %671 = vmatprep.subr.bf16.mxu0 0
      %672 = vmatpush1.bf16.msra.mxu0 0
      %673 = vmatprep.subr.bf16.mxu0 0
      %674 = vmatpush1.bf16.msra.mxu0 0
      %675 = vmatprep.mubr.bf16.mxu0 %v596
      %676 = vmatmul.mubr.bf16.gmra.mrb[0].mxu0 %v366
      %v677 = vpop.f32.mrb[0].mxu0
      %v678 = vadd.f32 %v253, %v677
      %v679 = vpop.f32.mrb[0].mxu0
      %v680 = vadd.f32 %v257, %v679
      %v681 = vpop.f32.mrb[0].mxu0
      %v682 = vadd.f32 %v253, %v681
      %v683 = vpop.f32.mrb[0].mxu0
      %v684 = vadd.f32 %v257, %v683
      %685 = vmatprep.mubr.bf16.mxu0 %v599
      %686 = vmatmul.mubr.bf16.gmra.mrb[0].mxu0 %v368
      %v687 = vpop.f32.mrb[0].mxu0
      %v688 = vadd.f32 %v253, %v687
      %v689 = vpop.f32.mrb[0].mxu0
      %v690 = vadd.f32 %v257, %v689
      %v691 = vpop.f32.mrb[0].mxu0
      %v692 = vadd.f32 %v253, %v691
      %v693 = vpop.f32.mrb[0].mxu0
      %v694 = vadd.f32 %v257, %v693
      %695 = vmatprep.mubr.bf16.mxu0 %v602
      %696 = vmatmul.mubr.bf16.gmra.mrb[0].mxu0 %v370
      %v697 = vpop.f32.mrb[0].mxu0
      %v698 = vadd.f32 %v253, %v697
      %v699 = vpop.f32.mrb[0].mxu0
      %v700 = vadd.f32 %v257, %v699
      %v701 = vpop.f32.mrb[0].mxu0
      %v702 = vadd.f32 %v253, %v701
      %v703 = vpop.f32.mrb[0].mxu0
      %v704 = vadd.f32 %v257, %v703
      %705 = vmatprep.mubr.bf16.mxu0 %v605
      %706 = vmatmul.mubr.bf16.gmra.mrb[0].mxu0 %v372
      %v707 = vpop.f32.mrb[0].mxu0
      %v708 = vadd.f32 %v253, %v707
      %v709 = vpop.f32.mrb[0].mxu0
      %v710 = vadd.f32 %v257, %v709
      %v711 = vpop.f32.mrb[0].mxu0
      %v712 = vadd.f32 %v253, %v711
      %v713 = vpop.f32.mrb[0].mxu0
      %v714 = vadd.f32 %v257, %v713
      %715 = vmatprep.mubr.bf16.mxu0 %v608
      %716 = vmatmul.mubr.bf16.gmra.mrb[0].mxu0 %v374
      %v717 = vpop.f32.mrb[0].mxu0
      %v718 = vadd.f32 %v253, %v717
      %v719 = vpop.f32.mrb[0].mxu0
      %v720 = vadd.f32 %v257, %v719
      %v721 = vpop.f32.mrb[0].mxu0
      %v722 = vadd.f32 %v253, %v721
      %v723 = vpop.f32.mrb[0].mxu0
      %v724 = vadd.f32 %v257, %v723
      %725 = vmatprep.mubr.bf16.mxu0 %v611
      %726 = vmatmul.mubr.bf16.gmra.mrb[0].mxu0 %v376
      %v727 = vpop.f32.mrb[0].mxu0
      %v728 = vadd.f32 %v253, %v727
      %v729 = vpop.f32.mrb[0].mxu0
      %v730 = vadd.f32 %v257, %v729
      %v731 = vpop.f32.mrb[0].mxu0
      %v732 = vadd.f32 %v253, %v731
      %v733 = vpop.f32.mrb[0].mxu0
      %v734 = vadd.f32 %v257, %v733
      %735 = vmatprep.mubr.bf16.mxu0 %v614
      %736 = vmatmul.mubr.bf16.gmra.mrb[0].mxu0 %v378
      %v737 = vpop.f32.mrb[0].mxu0
      %v738 = vadd.f32 %v253, %v737
      %v739 = vpop.f32.mrb[0].mxu0
      %v740 = vadd.f32 %v257, %v739
      %v741 = vpop.f32.mrb[0].mxu0
      %v742 = vadd.f32 %v253, %v741
      %v743 = vpop.f32.mrb[0].mxu0
      %v744 = vadd.f32 %v257, %v743
      %745 = vmatprep.mubr.bf16.mxu0 %v617
      %746 = vmatmul.mubr.bf16.gmra.mrb[0].mxu0 %v380
      %v747 = vpop.f32.mrb[0].mxu0
      %v748 = vadd.f32 %v253, %v747
      %v749 = vpop.f32.mrb[0].mxu0
      %v750 = vadd.f32 %v257, %v749
      %v751 = vpop.f32.mrb[0].mxu0
      %v752 = vadd.f32 %v253, %v751
      %v753 = vpop.f32.mrb[0].mxu0
      %v754 = vadd.f32 %v257, %v753
      %755 = vmatprep.mubr.bf16.mxu0 %v620
      %756 = vmatmul.mubr.bf16.gmra.mrb[0].mxu0 %v382
      %v757 = vpop.f32.mrb[0].mxu0
      %v758 = vadd.f32 %v253, %v757
      %v759 = vpop.f32.mrb[0].mxu0
      %v760 = vadd.f32 %v257, %v759
      %v761 = vpop.f32.mrb[0].mxu0
      %v762 = vadd.f32 %v253, %v761
      %v763 = vpop.f32.mrb[0].mxu0
      %v764 = vadd.f32 %v257, %v763
      %765 = vmatprep.mubr.bf16.mxu0 %v623
      %766 = vmatmul.mubr.bf16.gmra.mrb[0].mxu0 %v384
      %v767 = vpop.f32.mrb[0].mxu0
      %v768 = vadd.f32 %v253, %v767
      %v769 = vpop.f32.mrb[0].mxu0
      %v770 = vadd.f32 %v257, %v769
      %v771 = vpop.f32.mrb[0].mxu0
      %v772 = vadd.f32 %v253, %v771
      %v773 = vpop.f32.mrb[0].mxu0
      %v774 = vadd.f32 %v257, %v773
      %775 = vmatprep.mubr.bf16.mxu0 %v626
      %776 = vmatmul.mubr.bf16.gmra.mrb[0].mxu0 %v386
      %v777 = vpop.f32.mrb[0].mxu0
      %v778 = vadd.f32 %v253, %v777
      %v779 = vpop.f32.mrb[0].mxu0
      %v780 = vadd.f32 %v257, %v779
      %v781 = vpop.f32.mrb[0].mxu0
      %v782 = vadd.f32 %v253, %v781
      %v783 = vpop.f32.mrb[0].mxu0
      %v784 = vadd.f32 %v257, %v783
      %785 = vmatprep.mubr.bf16.mxu0 %v629
      %786 = vmatmul.mubr.bf16.gmra.mrb[0].mxu0 %v388
      %v787 = vpop.f32.mrb[0].mxu0
      %v788 = vadd.f32 %v253, %v787
      %v789 = vpop.f32.mrb[0].mxu0
      %v790 = vadd.f32 %v257, %v789
      %v791 = vpop.f32.mrb[0].mxu0
      %v792 = vadd.f32 %v253, %v791
      %v793 = vpop.f32.mrb[0].mxu0
      %v794 = vadd.f32 %v257, %v793
      %795 = vmatprep.mubr.bf16.mxu0 %v632
      %796 = vmatmul.mubr.bf16.gmra.mrb[0].mxu0 %v390
      %v797 = vpop.f32.mrb[0].mxu0
      %v798 = vadd.f32 %v253, %v797
      %v799 = vpop.f32.mrb[0].mxu0
      %v800 = vadd.f32 %v257, %v799
      %v801 = vpop.f32.mrb[0].mxu0
      %v802 = vadd.f32 %v253, %v801
      %v803 = vpop.f32.mrb[0].mxu0
      %v804 = vadd.f32 %v257, %v803
      %805 = vmatprep.mubr.bf16.mxu0 %v635
      %806 = vmatmul.mubr.bf16.gmra.mrb[0].mxu0 %v392
      %v807 = vpop.f32.mrb[0].mxu0
      %v808 = vadd.f32 %v253, %v807
      %v809 = vpop.f32.mrb[0].mxu0
      %v810 = vadd.f32 %v257, %v809
      %v811 = vpop.f32.mrb[0].mxu0
      %v812 = vadd.f32 %v253, %v811
      %v813 = vpop.f32.mrb[0].mxu0
      %v814 = vadd.f32 %v257, %v813
      %815 = vmatprep.mubr.bf16.mxu0 %v638
      %816 = vmatmul.mubr.bf16.gmra.mrb[0].mxu0 %v394
      %v817 = vpop.f32.mrb[0].mxu0
      %v818 = vadd.f32 %v253, %v817
      %v819 = vpop.f32.mrb[0].mxu0
      %v820 = vadd.f32 %v257, %v819
      %v821 = vpop.f32.mrb[0].mxu0
      %v822 = vadd.f32 %v253, %v821
      %v823 = vpop.f32.mrb[0].mxu0
      %v824 = vadd.f32 %v257, %v823
      %825 = vmatprep.mubr.bf16.mxu0 %v641
      %826 = vmatmul.mubr.bf16.gmra.mrb[0].mxu0 %v396
      %v827 = vpop.f32.mrb[0].mxu0
      %v828 = vadd.f32 %v253, %v827
      %v829 = vpop.f32.mrb[0].mxu0
      %v830 = vadd.f32 %v257, %v829
      %v831 = vpop.f32.mrb[0].mxu0
      %v832 = vadd.f32 %v253, %v831
      %v833 = vpop.f32.mrb[0].mxu0
      %v834 = vadd.f32 %v257, %v833
      %835 = vdwg.mxu0
      %836 = vmatprep.subr.bf16.mxu0 %v525
      %837 = vmatpush1.bf16.msra.mxu0 %v524
      %838 = vmatprep.subr.bf16.mxu0 %v529
      %839 = vmatpush1.bf16.msra.mxu0 %v528
      %840 = vmatprep.subr.bf16.mxu0 %v533
      %841 = vmatpush1.bf16.msra.mxu0 %v532
      %842 = vmatprep.subr.bf16.mxu0 %v537
      %843 = vmatpush1.bf16.msra.mxu0 %v536
      %844 = vmatprep.subr.bf16.mxu0 %v541
      %845 = vmatpush1.bf16.msra.mxu0 %v540
      %846 = vmatprep.subr.bf16.mxu0 %v545
      %847 = vmatpush1.bf16.msra.mxu0 %v544
      %848 = vmatprep.subr.bf16.mxu0 %v549
      %849 = vmatpush1.bf16.msra.mxu0 %v548
      %850 = vmatprep.subr.bf16.mxu0 %v553
      %851 = vmatpush1.bf16.msra.mxu0 %v552
      %852 = vmatprep.subr.bf16.mxu0 %v557
      %853 = vmatpush1.bf16.msra.mxu0 %v556
      %854 = vmatprep.subr.bf16.mxu0 0
      %855 = vmatpush1.bf16.msra.mxu0 0
      %856 = vmatprep.subr.bf16.mxu0 0
      %857 = vmatpush1.bf16.msra.mxu0 0
      %858 = vmatprep.subr.bf16.mxu0 0
      %859 = vmatpush1.bf16.msra.mxu0 0
      %860 = vmatprep.subr.bf16.mxu0 0
      %861 = vmatpush1.bf16.msra.mxu0 0
      %862 = vmatprep.subr.bf16.mxu0 0
      %863 = vmatpush1.bf16.msra.mxu0 0
      %864 = vmatprep.subr.bf16.mxu0 0
      %865 = vmatpush1.bf16.msra.mxu0 0
      %866 = vmatprep.subr.bf16.mxu0 0
      %867 = vmatpush1.bf16.msra.mxu0 0
      %868 = vmatprep.mubr.bf16.mxu0 %v596
      %869 = vmatmul.mubr.bf16.gmra.mrb[0].mxu0 %v366
      %v870 = vpop.f32.mrb[0].mxu0
      %v871 = vadd.f32 %v261, %v870
      %v872 = vpop.f32.mrb[0].mxu0
      %v873 = vadd.f32 %v265, %v872
      %v874 = vpop.f32.mrb[0].mxu0
      %v875 = vadd.f32 %v261, %v874
      %v876 = vpop.f32.mrb[0].mxu0
      %v877 = vadd.f32 %v265, %v876
      %878 = vmatprep.mubr.bf16.mxu0 %v599
      %879 = vmatmul.mubr.bf16.gmra.mrb[0].mxu0 %v368
      %v880 = vpop.f32.mrb[0].mxu0
      %v881 = vadd.f32 %v261, %v880
      %v882 = vpop.f32.mrb[0].mxu0
      %v883 = vadd.f32 %v265, %v882
      %v884 = vpop.f32.mrb[0].mxu0
      %v885 = vadd.f32 %v261, %v884
      %v886 = vpop.f32.mrb[0].mxu0
      %v887 = vadd.f32 %v265, %v886
      %888 = vmatprep.mubr.bf16.mxu0 %v602
      %889 = vmatmul.mubr.bf16.gmra.mrb[0].mxu0 %v370
      %v890 = vpop.f32.mrb[0].mxu0
      %v891 = vadd.f32 %v261, %v890
      %v892 = vpop.f32.mrb[0].mxu0
      %v893 = vadd.f32 %v265, %v892
      %v894 = vpop.f32.mrb[0].mxu0
      %v895 = vadd.f32 %v261, %v894
      %v896 = vpop.f32.mrb[0].mxu0
      %v897 = vadd.f32 %v265, %v896
      %898 = vmatprep.mubr.bf16.mxu0 %v605
      %899 = vmatmul.mubr.bf16.gmra.mrb[0].mxu0 %v372
      %v900 = vpop.f32.mrb[0].mxu0
      %v901 = vadd.f32 %v261, %v900
      %v902 = vpop.f32.mrb[0].mxu0
      %v903 = vadd.f32 %v265, %v902
      %v904 = vpop.f32.mrb[0].mxu0
      %v905 = vadd.f32 %v261, %v904
      %v906 = vpop.f32.mrb[0].mxu0
      %v907 = vadd.f32 %v265, %v906
      %908 = vmatprep.mubr.bf16.mxu0 %v608
      %909 = vmatmul.mubr.bf16.gmra.mrb[0].mxu0 %v374
      %v910 = vpop.f32.mrb[0].mxu0
      %v911 = vadd.f32 %v261, %v910
      %v912 = vpop.f32.mrb[0].mxu0
      %v913 = vadd.f32 %v265, %v912
      %v914 = vpop.f32.mrb[0].mxu0
      %v915 = vadd.f32 %v261, %v914
      %v916 = vpop.f32.mrb[0].mxu0
      %v917 = vadd.f32 %v265, %v916
      %918 = vmatprep.mubr.bf16.mxu0 %v611
      %919 = vmatmul.mubr.bf16.gmra.mrb[0].mxu0 %v376
      %v920 = vpop.f32.mrb[0].mxu0
      %v921 = vadd.f32 %v261, %v920
      %v922 = vpop.f32.mrb[0].mxu0
      %v923 = vadd.f32 %v265, %v922
      %v924 = vpop.f32.mrb[0].mxu0
      %v925 = vadd.f32 %v261, %v924
      %v926 = vpop.f32.mrb[0].mxu0
      %v927 = vadd.f32 %v265, %v926
      %928 = vmatprep.mubr.bf16.mxu0 %v614
      %929 = vmatmul.mubr.bf16.gmra.mrb[0].mxu0 %v378
      %v930 = vpop.f32.mrb[0].mxu0
      %v931 = vadd.f32 %v261, %v930
      %v932 = vpop.f32.mrb[0].mxu0
      %v933 = vadd.f32 %v265, %v932
      %v934 = vpop.f32.mrb[0].mxu0
      %v935 = vadd.f32 %v261, %v934
      %v936 = vpop.f32.mrb[0].mxu0
      %v937 = vadd.f32 %v265, %v936
      %938 = vmatprep.mubr.bf16.mxu0 %v617
      %939 = vmatmul.mubr.bf16.gmra.mrb[0].mxu0 %v380
      %v940 = vpop.f32.mrb[0].mxu0
      %v941 = vadd.f32 %v261, %v940
      %v942 = vpop.f32.mrb[0].mxu0
      %v943 = vadd.f32 %v265, %v942
      %v944 = vpop.f32.mrb[0].mxu0
      %v945 = vadd.f32 %v261, %v944
      %v946 = vpop.f32.mrb[0].mxu0
      %v947 = vadd.f32 %v265, %v946
      %948 = vmatprep.mubr.bf16.mxu0 %v620
      %949 = vmatmul.mubr.bf16.gmra.mrb[0].mxu0 %v382
      %v950 = vpop.f32.mrb[0].mxu0
      %v951 = vadd.f32 %v261, %v950
      %v952 = vpop.f32.mrb[0].mxu0
      %v953 = vadd.f32 %v265, %v952
      %v954 = vpop.f32.mrb[0].mxu0
      %v955 = vadd.f32 %v261, %v954
      %v956 = vpop.f32.mrb[0].mxu0
      %v957 = vadd.f32 %v265, %v956
      %958 = vmatprep.mubr.bf16.mxu0 %v623
      %959 = vmatmul.mubr.bf16.gmra.mrb[0].mxu0 %v384
      %v960 = vpop.f32.mrb[0].mxu0
      %v961 = vadd.f32 %v261, %v960
      %v962 = vpop.f32.mrb[0].mxu0
      %v963 = vadd.f32 %v265, %v962
      %v964 = vpop.f32.mrb[0].mxu0
      %v965 = vadd.f32 %v261, %v964
      %v966 = vpop.f32.mrb[0].mxu0
      %v967 = vadd.f32 %v265, %v966
      %968 = vmatprep.mubr.bf16.mxu0 %v626
      %969 = vmatmul.mubr.bf16.gmra.mrb[0].mxu0 %v386
      %v970 = vpop.f32.mrb[0].mxu0
      %v971 = vadd.f32 %v261, %v970
      %v972 = vpop.f32.mrb[0].mxu0
      %v973 = vadd.f32 %v265, %v972
      %v974 = vpop.f32.mrb[0].mxu0
      %v975 = vadd.f32 %v261, %v974
      %v976 = vpop.f32.mrb[0].mxu0
      %v977 = vadd.f32 %v265, %v976
      %978 = vmatprep.mubr.bf16.mxu0 %v629
      %979 = vmatmul.mubr.bf16.gmra.mrb[0].mxu0 %v388
      %v980 = vpop.f32.mrb[0].mxu0
      %v981 = vadd.f32 %v261, %v980
      %v982 = vpop.f32.mrb[0].mxu0
      %v983 = vadd.f32 %v265, %v982
      %v984 = vpop.f32.mrb[0].mxu0
      %v985 = vadd.f32 %v261, %v984
      %v986 = vpop.f32.mrb[0].mxu0
      %v987 = vadd.f32 %v265, %v986
      %988 = vmatprep.mubr.bf16.mxu0 %v632
      %989 = vmatmul.mubr.bf16.gmra.mrb[0].mxu0 %v390
      %v990 = vpop.f32.mrb[0].mxu0
      %v991 = vadd.f32 %v261, %v990
      %v992 = vpop.f32.mrb[0].mxu0
      %v993 = vadd.f32 %v265, %v992
      %v994 = vpop.f32.mrb[0].mxu0
      %v995 = vadd.f32 %v261, %v994
      %v996 = vpop.f32.mrb[0].mxu0
      %v997 = vadd.f32 %v265, %v996
      %998 = vmatprep.mubr.bf16.mxu0 %v635
      %999 = vmatmul.mubr.bf16.gmra.mrb[0].mxu0 %v392
      %v1000 = vpop.f32.mrb[0].mxu0
      %v1001 = vadd.f32 %v261, %v1000
      %v1002 = vpop.f32.mrb[0].mxu0
      %v1003 = vadd.f32 %v265, %v1002
      %v1004 = vpop.f32.mrb[0].mxu0
      %v1005 = vadd.f32 %v261, %v1004
      %v1006 = vpop.f32.mrb[0].mxu0
      %v1007 = vadd.f32 %v265, %v1006
      %1008 = vmatprep.mubr.bf16.mxu0 %v638
      %1009 = vmatmul.mubr.bf16.gmra.mrb[0].mxu0 %v394
      %v1010 = vpop.f32.mrb[0].mxu0
      %v1011 = vadd.f32 %v261, %v1010
      %v1012 = vpop.f32.mrb[0].mxu0
      %v1013 = vadd.f32 %v265, %v1012
      %v1014 = vpop.f32.mrb[0].mxu0
      %v1015 = vadd.f32 %v261, %v1014
      %v1016 = vpop.f32.mrb[0].mxu0
      %v1017 = vadd.f32 %v265, %v1016
      %1018 = vmatprep.mubr.bf16.mxu0 %v641
      %1019 = vmatmul.mubr.bf16.gmra.mrb[0].mxu0 %v396
      %v1020 = vpop.f32.mrb[0].mxu0
      %v1021 = vadd.f32 %v261, %v1020
      %v1022 = vpop.f32.mrb[0].mxu0
      %v1023 = vadd.f32 %v265, %v1022
      %v1024 = vpop.f32.mrb[0].mxu0
      %v1025 = vadd.f32 %v261, %v1024
      %v1026 = vpop.f32.mrb[0].mxu0
      %v1027 = vadd.f32 %v265, %v1026
      %1028 = vdwg.mxu0
      %v1029 = vtanh.pop %v678
      %v1030 = vtanh.pop %v680
      %v1031 = vtanh.pop %v871
      %v1032 = vtanh.pop %v873
      %v1033 = vtanh.pop %v682
      %v1034 = vtanh.pop %v684
      %v1035 = vtanh.pop %v875
      %v1036 = vtanh.pop %v877
      %v1037 = vtanh.pop %v688
      %v1038 = vtanh.pop %v690
      %v1039 = vtanh.pop %v881
      %v1040 = vtanh.pop %v883
      %v1041 = vtanh.pop %v692
      %v1042 = vtanh.pop %v694
      %v1043 = vtanh.pop %v885
      %v1044 = vtanh.pop %v887
      %v1045 = vtanh.pop %v698
      %v1046 = vtanh.pop %v700
      %v1047 = vtanh.pop %v891
      %v1048 = vtanh.pop %v893
      %v1049 = vtanh.pop %v702
      %v1050 = vtanh.pop %v704
      %v1051 = vtanh.pop %v895
      %v1052 = vtanh.pop %v897
      %v1053 = vtanh.pop %v708
      %v1054 = vtanh.pop %v710
      %v1055 = vtanh.pop %v901
      %v1056 = vtanh.pop %v903
      %v1057 = vtanh.pop %v712
      %v1058 = vtanh.pop %v714
      %v1059 = vtanh.pop %v905
      %v1060 = vtanh.pop %v907
      %v1061 = vtanh.pop %v718
      %v1062 = vtanh.pop %v720
      %v1063 = vtanh.pop %v911
      %v1064 = vtanh.pop %v913
      %v1065 = vtanh.pop %v722
      %v1066 = vtanh.pop %v724
      %v1067 = vtanh.pop %v915
      %v1068 = vtanh.pop %v917
      %v1069 = vtanh.pop %v728
      %v1070 = vtanh.pop %v730
      %v1071 = vtanh.pop %v921
      %v1072 = vtanh.pop %v923
      %v1073 = vtanh.pop %v732
      %v1074 = vtanh.pop %v734
      %v1075 = vtanh.pop %v925
      %v1076 = vtanh.pop %v927
      %v1077 = vtanh.pop %v738
      %v1078 = vtanh.pop %v740
      %v1079 = vtanh.pop %v931
      %v1080 = vtanh.pop %v933
      %v1081 = vtanh.pop %v742
      %v1082 = vtanh.pop %v744
      %v1083 = vtanh.pop %v935
      %v1084 = vtanh.pop %v937
      %v1085 = vtanh.pop %v748
      %v1086 = vtanh.pop %v750
      %v1087 = vtanh.pop %v941
      %v1088 = vtanh.pop %v943
      %v1089 = vtanh.pop %v752
      %v1090 = vtanh.pop %v754
      %v1091 = vtanh.pop %v945
      %v1092 = vtanh.pop %v947
      %v1093 = vtanh.pop %v758
      %v1094 = vtanh.pop %v760
      %v1095 = vtanh.pop %v951
      %v1096 = vtanh.pop %v953
      %v1097 = vtanh.pop %v762
      %v1098 = vtanh.pop %v764
      %v1099 = vtanh.pop %v955
      %v1100 = vtanh.pop %v957
      %v1101 = vtanh.pop %v768
      %v1102 = vtanh.pop %v770
      %v1103 = vtanh.pop %v961
      %v1104 = vtanh.pop %v963
      %v1105 = vtanh.pop %v772
      %v1106 = vtanh.pop %v774
      %v1107 = vtanh.pop %v965
      %v1108 = vtanh.pop %v967
      %v1109 = vtanh.pop %v778
      %v1110 = vtanh.pop %v780
      %v1111 = vtanh.pop %v971
      %v1112 = vtanh.pop %v973
      %v1113 = vtanh.pop %v782
      %v1114 = vtanh.pop %v784
      %v1115 = vtanh.pop %v975
      %v1116 = vtanh.pop %v977
      %v1117 = vtanh.pop %v788
      %v1118 = vtanh.pop %v790
      %v1119 = vtanh.pop %v981
      %v1120 = vtanh.pop %v983
      %v1121 = vtanh.pop %v792
      %v1122 = vtanh.pop %v794
      %v1123 = vtanh.pop %v985
      %v1124 = vtanh.pop %v987
      %v1125 = vtanh.pop %v798
      %v1126 = vtanh.pop %v800
      %v1127 = vtanh.pop %v991
      %v1128 = vtanh.pop %v993
      %v1129 = vtanh.pop %v802
      %v1130 = vtanh.pop %v804
      %v1131 = vtanh.pop %v995
      %v1132 = vtanh.pop %v997
      %v1133 = vtanh.pop %v808
      %v1134 = vtanh.pop %v810
      %v1135 = vtanh.pop %v1001
      %v1136 = vtanh.pop %v1003
      %v1137 = vtanh.pop %v812
      %v1138 = vtanh.pop %v814
      %v1139 = vtanh.pop %v1005
      %v1140 = vtanh.pop %v1007
      %v1141 = vtanh.pop %v818
      %v1142 = vtanh.pop %v820
      %v1143 = vtanh.pop %v1011
      %v1144 = vtanh.pop %v1013
      %v1145 = vtanh.pop %v822
      %v1146 = vtanh.pop %v824
      %v1147 = vtanh.pop %v1015
      %v1148 = vtanh.pop %v1017
      %v1149 = vtanh.pop %v828
      %v1150 = vtanh.pop %v830
      %v1151 = vtanh.pop %v1021
      %v1152 = vtanh.pop %v1023
      %v1153 = vtanh.pop %v832
      %v1154 = vtanh.pop %v834
      %v1155 = vtanh.pop %v1025
      %v1156 = vtanh.pop %v1027
      %1157 = vst [vmem:[%s177] sm:$0xff] %v1029
      %1158 = vst [vmem:[%s177 + $0x8] sm:$0xff] %v1030
      %1159 = vst [vmem:[%s177 + $0x10] sm:$0xff] %v1031
      %1160 = vst [vmem:[%s177 + $0x18] sm:$0xff] %v1032
      %1161 = vst [vmem:[%s177 + $0x20] sm:$0xff] %v1033
      %1162 = vst [vmem:[%s177 + $0x28] sm:$0xff] %v1034
      %1163 = vst [vmem:[%s177 + $0x30] sm:$0xff] %v1035
      %1164 = vst [vmem:[%s177 + $0x38] sm:$0xff] %v1036
      %1165 = vst [vmem:[%s177 + $0x40] sm:$0xff] %v1037
      %1166 = vst [vmem:[%s177 + $0x48] sm:$0xff] %v1038
      %1167 = vst [vmem:[%s177 + $0x50] sm:$0xff] %v1039
      %1168 = vst [vmem:[%s177 + $0x58] sm:$0xff] %v1040
      %1169 = vst [vmem:[%s177 + $0x60] sm:$0xff] %v1041
      %1170 = vst [vmem:[%s177 + $0x68] sm:$0xff] %v1042
      %1171 = vst [vmem:[%s177 + $0x70] sm:$0xff] %v1043
      %1172 = vst [vmem:[%s177 + $0x78] sm:$0xff] %v1044
      %1173 = vst [vmem:[%s177 + $0x80] sm:$0xff] %v1045
      %1174 = vst [vmem:[%s177 + $0x88] sm:$0xff] %v1046
      %1175 = vst [vmem:[%s177 + $0x90] sm:$0xff] %v1047
      %1176 = vst [vmem:[%s177 + $0x98] sm:$0xff] %v1048
      %1177 = vst [vmem:[%s177 + $0xa0] sm:$0xff] %v1049
      %1178 = vst [vmem:[%s177 + $0xa8] sm:$0xff] %v1050
      %1179 = vst [vmem:[%s177 + $0xb0] sm:$0xff] %v1051
      %1180 = vst [vmem:[%s177 + $0xb8] sm:$0xff] %v1052
      %1181 = vst [vmem:[%s177 + $0xc0] sm:$0xff] %v1053
      %1182 = vst [vmem:[%s177 + $0xc8] sm:$0xff] %v1054
      %1183 = vst [vmem:[%s177 + $0xd0] sm:$0xff] %v1055
      %1184 = vst [vmem:[%s177 + $0xd8] sm:$0xff] %v1056
      %1185 = vst [vmem:[%s177 + $0xe0] sm:$0xff] %v1057
      %1186 = vst [vmem:[%s177 + $0xe8] sm:$0xff] %v1058
      %1187 = vst [vmem:[%s177 + $0xf0] sm:$0xff] %v1059
      %1188 = vst [vmem:[%s177 + $0xf8] sm:$0xff] %v1060
      %1189 = vst [vmem:[%s177 + $0x100] sm:$0xff] %v1061
      %1190 = vst [vmem:[%s177 + $0x108] sm:$0xff] %v1062
      %1191 = vst [vmem:[%s177 + $0x110] sm:$0xff] %v1063
      %1192 = vst [vmem:[%s177 + $0x118] sm:$0xff] %v1064
      %1193 = vst [vmem:[%s177 + $0x120] sm:$0xff] %v1065
      %1194 = vst [vmem:[%s177 + $0x128] sm:$0xff] %v1066
      %1195 = vst [vmem:[%s177 + $0x130] sm:$0xff] %v1067
      %1196 = vst [vmem:[%s177 + $0x138] sm:$0xff] %v1068
      %1197 = vst [vmem:[%s177 + $0x140] sm:$0xff] %v1069
      %1198 = vst [vmem:[%s177 + $0x148] sm:$0xff] %v1070
      %1199 = vst [vmem:[%s177 + $0x150] sm:$0xff] %v1071
      %1200 = vst [vmem:[%s177 + $0x158] sm:$0xff] %v1072
      %1201 = vst [vmem:[%s177 + $0x160] sm:$0xff] %v1073
      %1202 = vst [vmem:[%s177 + $0x168] sm:$0xff] %v1074
      %1203 = vst [vmem:[%s177 + $0x170] sm:$0xff] %v1075
      %1204 = vst [vmem:[%s177 + $0x178] sm:$0xff] %v1076
      %1205 = vst [vmem:[%s177 + $0x180] sm:$0xff] %v1077
      %1206 = vst [vmem:[%s177 + $0x188] sm:$0xff] %v1078
      %1207 = vst [vmem:[%s177 + $0x190] sm:$0xff] %v1079
      %1208 = vst [vmem:[%s177 + $0x198] sm:$0xff] %v1080
      %1209 = vst [vmem:[%s177 + $0x1a0] sm:$0xff] %v1081
      %1210 = vst [vmem:[%s177 + $0x1a8] sm:$0xff] %v1082
      %1211 = vst [vmem:[%s177 + $0x1b0] sm:$0xff] %v1083
      %1212 = vst [vmem:[%s177 + $0x1b8] sm:$0xff] %v1084
      %1213 = vst [vmem:[%s177 + $0x1c0] sm:$0xff] %v1085
      %1214 = vst [vmem:[%s177 + $0x1c8] sm:$0xff] %v1086
      %1215 = vst [vmem:[%s177 + $0x1d0] sm:$0xff] %v1087
      %1216 = vst [vmem:[%s177 + $0x1d8] sm:$0xff] %v1088
      %1217 = vst [vmem:[%s177 + $0x1e0] sm:$0xff] %v1089
      %1218 = vst [vmem:[%s177 + $0x1e8] sm:$0xff] %v1090
      %1219 = vst [vmem:[%s177 + $0x1f0] sm:$0xff] %v1091
      %1220 = vst [vmem:[%s177 + $0x1f8] sm:$0xff] %v1092
      %1221 = vst [vmem:[%s177 + $0x200] sm:$0xff] %v1093
      %1222 = vst [vmem:[%s177 + $0x208] sm:$0xff] %v1094
      %1223 = vst [vmem:[%s177 + $0x210] sm:$0xff] %v1095
      %1224 = vst [vmem:[%s177 + $0x218] sm:$0xff] %v1096
      %1225 = vst [vmem:[%s177 + $0x220] sm:$0xff] %v1097
      %1226 = vst [vmem:[%s177 + $0x228] sm:$0xff] %v1098
      %1227 = vst [vmem:[%s177 + $0x230] sm:$0xff] %v1099
      %1228 = vst [vmem:[%s177 + $0x238] sm:$0xff] %v1100
      %1229 = vst [vmem:[%s177 + $0x240] sm:$0xff] %v1101
      %1230 = vst [vmem:[%s177 + $0x248] sm:$0xff] %v1102
      %1231 = vst [vmem:[%s177 + $0x250] sm:$0xff] %v1103
      %1232 = vst [vmem:[%s177 + $0x258] sm:$0xff] %v1104
      %1233 = vst [vmem:[%s177 + $0x260] sm:$0xff] %v1105
      %1234 = vst [vmem:[%s177 + $0x268] sm:$0xff] %v1106
      %1235 = vst [vmem:[%s177 + $0x270] sm:$0xff] %v1107
      %1236 = vst [vmem:[%s177 + $0x278] sm:$0xff] %v1108
      %1237 = vst [vmem:[%s177 + $0x280] sm:$0xff] %v1109
      %1238 = vst [vmem:[%s177 + $0x288] sm:$0xff] %v1110
      %1239 = vst [vmem:[%s177 + $0x290] sm:$0xff] %v1111
      %1240 = vst [vmem:[%s177 + $0x298] sm:$0xff] %v1112
      %1241 = vst [vmem:[%s177 + $0x2a0] sm:$0xff] %v1113
      %1242 = vst [vmem:[%s177 + $0x2a8] sm:$0xff] %v1114
      %1243 = vst [vmem:[%s177 + $0x2b0] sm:$0xff] %v1115
      %1244 = vst [vmem:[%s177 + $0x2b8] sm:$0xff] %v1116
      %1245 = vst [vmem:[%s177 + $0x2c0] sm:$0xff] %v1117
      %1246 = vst [vmem:[%s177 + $0x2c8] sm:$0xff] %v1118
      %1247 = vst [vmem:[%s177 + $0x2d0] sm:$0xff] %v1119
      %1248 = vst [vmem:[%s177 + $0x2d8] sm:$0xff] %v1120
      %1249 = vst [vmem:[%s177 + $0x2e0] sm:$0xff] %v1121
      %1250 = vst [vmem:[%s177 + $0x2e8] sm:$0xff] %v1122
      %1251 = vst [vmem:[%s177 + $0x2f0] sm:$0xff] %v1123
      %1252 = vst [vmem:[%s177 + $0x2f8] sm:$0xff] %v1124
      %1253 = vst [vmem:[%s177 + $0x300] sm:$0xff] %v1125
      %1254 = vst [vmem:[%s177 + $0x308] sm:$0xff] %v1126
      %1255 = vst [vmem:[%s177 + $0x310] sm:$0xff] %v1127
      %1256 = vst [vmem:[%s177 + $0x318] sm:$0xff] %v1128
      %1257 = vst [vmem:[%s177 + $0x320] sm:$0xff] %v1129
      %1258 = vst [vmem:[%s177 + $0x328] sm:$0xff] %v1130
      %1259 = vst [vmem:[%s177 + $0x330] sm:$0xff] %v1131
      %1260 = vst [vmem:[%s177 + $0x338] sm:$0xff] %v1132
      %1261 = vst [vmem:[%s177 + $0x340] sm:$0xff] %v1133
      %1262 = vst [vmem:[%s177 + $0x348] sm:$0xff] %v1134
      %1263 = vst [vmem:[%s177 + $0x350] sm:$0xff] %v1135
      %1264 = vst [vmem:[%s177 + $0x358] sm:$0xff] %v1136
      %1265 = vst [vmem:[%s177 + $0x360] sm:$0xff] %v1137
      %1266 = vst [vmem:[%s177 + $0x368] sm:$0xff] %v1138
      %1267 = vst [vmem:[%s177 + $0x370] sm:$0xff] %v1139
      %1268 = vst [vmem:[%s177 + $0x378] sm:$0xff] %v1140
      %1269 = vst [vmem:[%s177 + $0x380] sm:$0xff] %v1141
      %1270 = vst [vmem:[%s177 + $0x388] sm:$0xff] %v1142
      %1271 = vst [vmem:[%s177 + $0x390] sm:$0xff] %v1143
      %1272 = vst [vmem:[%s177 + $0x398] sm:$0xff] %v1144
      %1273 = vst [vmem:[%s177 + $0x3a0] sm:$0xff] %v1145
      %1274 = vst [vmem:[%s177 + $0x3a8] sm:$0xff] %v1146
      %1275 = vst [vmem:[%s177 + $0x3b0] sm:$0xff] %v1147
      %1276 = vst [vmem:[%s177 + $0x3b8] sm:$0xff] %v1148
      %1277 = vst [vmem:[%s177 + $0x3c0] sm:$0xff] %v1149
      %1278 = vst [vmem:[%s177 + $0x3c8] sm:$0xff] %v1150
      %1279 = vst [vmem:[%s177 + $0x3d0] sm:$0xff] %v1151
      %1280 = vst [vmem:[%s177 + $0x3d8] sm:$0xff] %v1152
      %1281 = vst [vmem:[%s177 + $0x3e0] sm:$0xff] %v1153
      %1282 = vst [vmem:[%s177 + $0x3e8] sm:$0xff] %v1154
      %1283 = vst [vmem:[%s177 + $0x3f0] sm:$0xff] %v1155
      %1284 = vst [vmem:[%s177 + $0x3f8] sm:$0xff] %v1156
      %s1285 = smul.u32 32, %s14
      %p1286 = scmp.lt.s32.totalorder %s1285, 63
      %s1287 = scalar_select %p1286, %s1285, 63
      %s1288 = smul.addr %s1287, 4
      %s1289 = smul.addr %s1288, 8
      %s1290 = scalar_lea.vmem %s3, %s1289
      // Predicated region
      $region33: #{_lambda_.7} parent=31 // pred_check
        %p1291 = pneg %p100
      $region34: #{_lambda_.7} parent=31 // pred_check_branch
        %1293 = sbr.rel (%p1291) target = $region36
      $region35: #{_lambda_.7} parent=31 // pred_region
        %s1294 = smul.u32 32, %s14
      $region36: #{_lambda_.7} parent=31 // pred_fallthru
        _
    $region32: #{_lambda_.7} parent=5 // pred_fallthru
      _
    %p1295 = scmp.le.s32.totalorder 2, %s9
    // Predicated region
    $region37: #{_lambda_.7} parent=5 // pred_check
      %p1296 = pneg %p1295
    $region38: #{_lambda_.7} parent=5 // pred_check_branch
      %1298 = sbr.rel (%p1296) target = $region40
    $region39: #{_lambda_.7} parent=5 // pred_region
      %s1299 = ssub.s32 %s9, 2
      // Predicated region
      $region41: #{_lambda_.7} parent=39 // pred_check
        %p1300 = pneg %p106
      $region42: #{_lambda_.7} parent=39 // pred_check_branch
        %1302 = sbr.rel (%p1300) target = $region44
      $region43: #{_lambda_.7} parent=39 // pred_region
        %s1303 = smul.u32 32, %s15
        %p1304 = scmp.lt.s32.totalorder %s1303, 63
        %s1305 = scalar_select %p1304, %s1303, 63
        %s1306 = smul.addr %s1305, 4
        %s1307 = smul.addr %s1306, 8
        %s1308 = scalar_lea.vmem %s3, %s1307
      $region44: #{_lambda_.7} parent=39 // pred_fallthru
        _
    $region40: #{_lambda_.7} parent=5 // pred_fallthru
      _
  $region6: #{_lambda_.7} parent=0 // loop_footer
    %s13 = sadd.s32 1, %s9
  $region7: #{_lambda_.7} parent=0 // loop_footer_branch
    %8 = sbr.rel target = $region3
  $region8: #{_lambda_.7} parent=0 // loop_exit
    _

</llo_original>
